<compile_context>
chip_gen: v5e
topology: v5e:2x2
jax: 0.10.0
libtpu: 0.0.40
codegen_flags: <defaults>
</compile_context>

<pallas_src>
import functools
import math

import jax
import jax.numpy as jnp
from jax import lax
from jax.experimental import pallas as pl
from jax.experimental.pallas import tpu as pltpu

BN_EPS = 1e-5


# ------------------------------------------------------------------ fused kernel
def make_ensemble_kernel(num_gcn_layers, num_gat_layers):
    """Whole-ensemble forward; grid axis 0 selects {dual-GCN, GAT} branch."""

    def kernel(a_ref, pool_ref, xp_ref, xg_ref,
               gin_ref, gw_ref, gaux_ref, aw1_ref, ab1_ref, aw2_ref, ab2_ref,
               sel_ref, gwo_ref, gbo_ref,
               tin_ref, tw_ref, tas_ref, tad_ref, taux_ref, hsel_ref,
               two_ref, tbo_ref,
               o_ref):
        pid = pl.program_id(0)
        pool = pool_ref[...]                                       # [G, N] mean-pool

        # -------------- grid step 0: gcn1 | gcn2 lane-packed along 2H lanes --------------
        @pl.when(pid == 0)
        def _gcn_branch():
            a = a_ref[...]                                         # [N, N] bf16 D^-1/2(A+I)D^-1/2
            hp = xp_ref[...] * gin_ref[0:1, :] + gin_ref[1:2, :]   # folded input BN
            x_prev = None
            for i in range(num_gcn_layers):
                aux = gaux_ref[i]                                  # [3, 2H]: bias, bn_s, bn_t
                xw = jnp.dot(hp, gw_ref[i], preferred_element_type=jnp.float32)
                z = jnp.dot(a, xw.astype(jnp.bfloat16),            # bf16 MXU, f32 acc
                            preferred_element_type=jnp.float32) + aux[0:1, :]
                z = jnp.maximum(z, 0.0)                            # ReLU
                z = z * aux[1:2, :] + aux[2:3, :]                  # folded BatchNorm
                x_prev = z if i == 0 else z + x_prev               # residual (none at layer 0)
                hp = x_prev

            # node attention (softmax over ALL nodes, per model) -> mean pool -> Linear
            t = jnp.dot(x_prev, aw1_ref[...], preferred_element_type=jnp.float32) + ab1_ref[...]
            t = jnp.where(t > 0, t, 0.01 * t)                      # LeakyReLU(0.01)
            s = jnp.dot(t, aw2_ref[...], preferred_element_type=jnp.float32) + ab2_ref[...]
            s = s - jnp.max(s, axis=0, keepdims=True)              # [N, 2]
            es = jnp.exp(s)
            wnode = es * pl.reciprocal(jnp.sum(es, axis=0, keepdims=True), approx=True)
            wlane = jnp.dot(wnode, sel_ref[...], preferred_element_type=jnp.float32)  # [N, 2H]
            pooled = jnp.dot(pool, x_prev * wlane, preferred_element_type=jnp.float32)
            o_ref[...] = (jnp.dot(pooled, gwo_ref[...], preferred_element_type=jnp.float32)
                          + gbo_ref[...])

        # ------------------------------ grid step 1: GAT ---------------------------------
        @pl.when(pid == 1)
        def _gat_branch():
            mask = a_ref[...] > 0                                  # derived in-kernel, no adj_mask input
            neg = jnp.float32(-1e30)
            hsel = hsel_ref[...]                                   # [heads, H] per-head lane mask
            hg = xg_ref[...] * tin_ref[0:1, :] + tin_ref[1:2, :]
            g_prev = None
            for i in range(num_gat_layers):
                aux = taux_ref[i]                                  # [3, H]
                xw = jnp.dot(hg, tw_ref[i], preferred_element_type=jnp.float32)        # [N, H]
                # batched attention scores: one matmul per side for ALL heads
                a_src = lax.dot_general(tas_ref[i], xw, (((1,), (1,)), ((), ())),
                                        preferred_element_type=jnp.float32)            # [heads, N]
                a_dst = lax.dot_general(tad_ref[i], xw, (((1,), (1,)), ((), ())),
                                        preferred_element_type=jnp.float32)            # [heads, N]
                e = a_dst[:, :, None] + a_src[:, None, :]          # [heads, N_i, N_j]
                e = jnp.where(e > 0, e, 0.2 * e)                   # LeakyReLU(0.2)
                e = jnp.where(mask[None, :, :], e, neg)            # mask non-edges
                e = e - jnp.max(e, axis=2, keepdims=True)
                p = jnp.exp(e)                                     # TODO(synk): bf16 exp on v6e/v7x
                attn = p * pl.reciprocal(jnp.sum(p, axis=2, keepdims=True), approx=True)
                # lane-masked replicated XW -> ONE batched aggregation matmul, no 8-lane stores
                xw_m = (xw[None, :, :] * hsel[:, None, :]).astype(jnp.bfloat16)        # [heads, N, H]
                z3 = lax.dot_general(attn.astype(jnp.bfloat16), xw_m,
                                     (((2,), (1,)), ((0,), (0,))),
                                     preferred_element_type=jnp.float32)               # [heads, N, H]
                z = jnp.sum(z3, axis=0) + aux[0:1, :]              # head-concat == masked head sum
                z = jnp.maximum(z, 0.0)
                z = z * aux[1:2, :] + aux[2:3, :]
                g_prev = z if i == 0 else z + g_prev
                hg = g_prev

            pooled_g = jnp.dot(pool, g_prev, preferred_element_type=jnp.float32)
            o_ref[...] = (jnp.dot(pooled_g, two_ref[...], preferred_element_type=jnp.float32)
                          + tbo_ref[...])

    return kernel


def ensemble_forward(packed, x, a_norm, pool, *, hidden, num_gcn_layers, num_gat_layers):
    N, D = x.shape
    G = pool.shape[0]
    O = packed['gcn_wo'].shape[1]
    H = hidden
    assert D <= H

    x_pad = x if D == H else jnp.concatenate(
        [x, jnp.zeros((N, H - D), jnp.float32)], axis=1)           # [N, H]
    xp = jnp.concatenate([x_pad, x_pad], axis=1)                   # [N, 2H] (gcn1|gcn2)
    a_bf = a_norm.astype(jnp.bfloat16)                             # bf16 MXU operand

    args = (a_bf, pool, xp, x_pad,
            packed['gcn_in'], packed['gcn_w'], packed['gcn_aux'],
            packed['attn_w1'], packed['attn_b1'], packed['attn_w2'], packed['attn_b2'],
            packed['sel'], packed['gcn_wo'], packed['gcn_bo'],
            packed['gat_in'], packed['gat_w'], packed['gat_att_src'],
            packed['gat_att_dst'], packed['gat_aux'], packed['gat_hsel'],
            packed['gat_wo'], packed['gat_bo'])

    def full_spec(arr):
        nd = arr.ndim
        return pl.BlockSpec(arr.shape, lambda i, _nd=nd: (0,) * _nd)

    kernel = make_ensemble_kernel(num_gcn_layers, num_gat_layers)
    out = pl.pallas_call(
        kernel,
        grid=(2,),                                                  # dual-GCN half | GAT half
        out_shape=jax.ShapeDtypeStruct((2, G, O), jnp.float32),
        in_specs=[full_spec(a) for a in args],
        out_specs=pl.BlockSpec((None, G, O), lambda i: (i, 0, 0)),
        compiler_params=pltpu.CompilerParams(
            dimension_semantics=("parallel",),                      # megacore split on v7x
            vmem_limit_bytes=32 * 1024 * 1024),
    )(*args)
    return out[0] + out[1]                                          # ensemble combine


# ------------------------------------------------------------- parameter builders
def _he_normal(key, fan_in, fan_out):
    std = math.sqrt(2.0 / fan_in)
    return std * jax.random.normal(key, (fan_in, fan_out), jnp.float32)


def _init_bn(dim):
    return dict(gamma=jnp.ones((1, dim), jnp.float32),
                beta=jnp.zeros((1, dim), jnp.float32),
                mean=jnp.zeros((1, dim), jnp.float32),
                var=jnp.ones((1, dim), jnp.float32))


def init_gcn_model(key, input_dim, hidden_dim, output_dim, num_layers):
    keys = jax.random.split(key, num_layers + 3)
    p = dict(input_bn=_init_bn(input_dim), layers=[])
    din = input_dim
    for i in range(num_layers):
        p['layers'].append(dict(w=_he_normal(keys[i], din, hidden_dim),
                                b=jnp.zeros((1, hidden_dim), jnp.float32),
                                bn=_init_bn(hidden_dim)))
        din = hidden_dim
    p['attn_w1'] = _he_normal(keys[num_layers], hidden_dim, hidden_dim // 2)
    p['attn_b1'] = jnp.zeros((1, hidden_dim // 2), jnp.float32)
    p['attn_w2'] = _he_normal(keys[num_layers + 1], hidden_dim // 2, 1)
    p['attn_b2'] = jnp.zeros((1, 1), jnp.float32)
    p['wo'] = _he_normal(keys[num_layers + 2], hidden_dim, output_dim)
    p['bo'] = jnp.zeros((1, output_dim), jnp.float32)
    return p


def init_gat_model(key, input_dim, hidden_dim, output_dim, num_layers, heads):
    head_dim = hidden_dim // heads
    keys = jax.random.split(key, 3 * num_layers + 1)
    # NOTE: no Python-int config values inside the params pytree (they become
    # tracers under jit); heads / head_dim are static config instead.
    p = dict(input_bn=_init_bn(input_dim), layers=[])
    din = input_dim
    for i in range(num_layers):
        std_att = math.sqrt(2.0 / head_dim)
        p['layers'].append(dict(
            w=_he_normal(keys[3 * i], din, hidden_dim),
            att_src=std_att * jax.random.normal(keys[3 * i + 1], (heads, head_dim), jnp.float32),
            att_dst=std_att * jax.random.normal(keys[3 * i + 2], (heads, head_dim), jnp.float32),
            b=jnp.zeros((1, hidden_dim), jnp.float32),
            bn=_init_bn(hidden_dim)))
        din = hidden_dim
    p['wo'] = _he_normal(keys[-1], hidden_dim, output_dim)
    p['bo'] = jnp.zeros((1, output_dim), jnp.float32)
    return p


def init_ensemble(key, input_dim, hidden_dim=32, output_dim=2, num_layers=3, heads=4,
                  ensemble_size=3):
    k1, k2, k3 = jax.random.split(key, 3)
    return dict(
        gcn1=init_gcn_model(k1, input_dim, hidden_dim, output_dim, num_layers),
        gcn2=init_gcn_model(k2, input_dim, hidden_dim, output_dim, num_layers + 1),
        gat=init_gat_model(k3, input_dim, hidden_dim, output_dim, num_layers, heads),
        ensemble_weights=jnp.ones((ensemble_size,), jnp.float32) / ensemble_size)


# -------------------------------------------------------------- host-side packing
def _fold_bn(bn):
    scale = bn['gamma'] * lax.rsqrt(bn['var'] + BN_EPS)
    shift = bn['beta'] - bn['mean'] * scale
    return scale, shift


def pack_ensemble(params, *, input_dim, hidden, heads, out_dim):
    """Pre-fold BatchNorms, pad/stack layer weights, build block-diagonal packed
    operators so the two GCN models share every matmul, head-major attention
    vectors + per-head lane masks for the GAT, and fold the softmaxed ensemble
    weights into the output projections."""
    D, H, O = input_dim, hidden, out_dim
    assert D <= H, "packing assumes input_dim <= hidden_dim"
    assert H % heads == 0
    C = H // heads
    H2 = 2 * H
    g1, g2, gat = params['gcn1'], params['gcn2'], params['gat']
    L1, L2 = len(g1['layers']), len(g2['layers'])
    assert L1 <= L2
    ew = jax.nn.softmax(params['ensemble_weights'])

    def fold_input_bn(model):
        s, t = _fold_bn(model['input_bn'])                         # [1, D]
        if D < H:
            s = jnp.concatenate([s, jnp.ones((1, H - D), jnp.float32)], axis=1)
            t = jnp.concatenate([t, jnp.zeros((1, H - D), jnp.float32)], axis=1)
        return s, t

    def pad_w0(w):                                                  # [D, Ho] -> [H, Ho]
        if D == H:
            return w
        return jnp.concatenate([w, jnp.zeros((H - D, w.shape[1]), jnp.float32)], axis=0)

    s1, t1 = fold_input_bn(g1)
    s2, t2 = fold_input_bn(g2)
    sg, tg = fold_input_bn(gat)
    gcn_in = jnp.stack([jnp.concatenate([s1[0], s2[0]]),
                        jnp.concatenate([t1[0], t2[0]])], axis=0)   # [2, 2H]
    gat_in = jnp.stack([sg[0], tg[0]], axis=0)                      # [2, H]

    zero_h = jnp.zeros((1, H), jnp.float32)
    one_h = jnp.ones((1, H), jnp.float32)
    gw, gaux = [], []
    for i in range(L2):
        if i < L1:
            w1 = pad_w0(g1['layers'][i]['w']) if i == 0 else g1['layers'][i]['w']
            b1 = g1['layers'][i]['b']
            bs1, bt1 = _fold_bn(g1['layers'][i]['bn'])
        else:   # gcn1 has no layer i: zero update so its half passes through the residual
            w1, b1, bs1, bt1 = jnp.zeros((H, H), jnp.float32), zero_h, one_h, zero_h
        w2 = pad_w0(g2['layers'][i]['w']) if i == 0 else g2['layers'][i]['w']
        b2 = g2['layers'][i]['b']
        bs2, bt2 = _fold_bn(g2['layers'][i]['bn'])
        blk = jnp.zeros((H2, H2), jnp.float32).at[:H, :H].set(w1).at[H:, H:].set(w2)
        gw.append(blk)
        gaux.append(jnp.stack([jnp.concatenate([b1[0], b2[0]]),
                               jnp.concatenate([bs1[0], bs2[0]]),
                               jnp.concatenate([bt1[0], bt2[0]])], axis=0))   # [3, 2H]

    half = H // 2
    attn_w1 = (jnp.zeros((H2, H), jnp.float32)
               .at[:H, :half].set(g1['attn_w1'])
               .at[H:, half:].set(g2['attn_w1']))
    attn_b1 = jnp.concatenate([g1['attn_b1'], g2['attn_b1']], axis=1)         # [1, H]
    attn_w2 = (jnp.zeros((H, 2), jnp.float32)
               .at[:half, 0:1].set(g1['attn_w2'])
               .at[half:, 1:2].set(g2['attn_w2']))
    attn_b2 = jnp.concatenate([g1['attn_b2'], g2['attn_b2']], axis=1)         # [1, 2]
    sel = jnp.zeros((2, H2), jnp.float32).at[0, :H].set(1.0).at[1, H:].set(1.0)
    gcn_wo = jnp.concatenate([ew[0] * g1['wo'], ew[1] * g2['wo']], axis=0)    # [2H, O]
    gcn_bo = ew[0] * g1['bo'] + ew[1] * g2['bo']                              # [1, O]

    gat_w, tas, tad, gat_aux = [], [], [], []
    for i, l in enumerate(gat['layers']):
        gat_w.append(pad_w0(l['w']) if i == 0 else l['w'])
        asrc = jnp.zeros((heads, H), jnp.float32)
        adst = jnp.zeros((heads, H), jnp.float32)
        for h in range(heads):
            asrc = asrc.at[h, h * C:(h + 1) * C].set(l['att_src'][h])
            adst = adst.at[h, h * C:(h + 1) * C].set(l['att_dst'][h])
        tas.append(asrc)
        tad.append(adst)
        bs, bt = _fold_bn(l['bn'])
        gat_aux.append(jnp.stack([l['b'][0], bs[0], bt[0]], axis=0))          # [3, H]

    hsel = jnp.zeros((heads, H), jnp.float32)                                 # per-head lane mask
    for h in range(heads):
        hsel = hsel.at[h, h * C:(h + 1) * C].set(1.0)

    return dict(
        gcn_in=gcn_in, gcn_w=jnp.stack(gw, axis=0), gcn_aux=jnp.stack(gaux, axis=0),
        attn_w1=attn_w1, attn_b1=attn_b1, attn_w2=attn_w2, attn_b2=attn_b2,
        sel=sel, gcn_wo=gcn_wo, gcn_bo=gcn_bo,
        gat_in=gat_in, gat_w=jnp.stack(gat_w, axis=0),
        gat_att_src=jnp.stack(tas, axis=0), gat_att_dst=jnp.stack(tad, axis=0),
        gat_aux=jnp.stack(gat_aux, axis=0), gat_hsel=hsel,
        gat_wo=ew[2] * gat['wo'], gat_bo=ew[2] * gat['bo'])


# ------------------------------------------------------------------ graph plumbing
def build_graph_mats(edge_index, batch, num_nodes, num_graphs):
    src, dst = edge_index[0], edge_index[1]
    loops = jnp.arange(num_nodes, dtype=src.dtype)
    src_sl = jnp.concatenate([src, loops])
    dst_sl = jnp.concatenate([dst, loops])
    # A[target, source] with self-loops (duplicate edges collapsed)
    A = jnp.zeros((num_nodes, num_nodes), jnp.float32).at[dst_sl, src_sl].add(1.0)
    A = jnp.minimum(A, 1.0)
    deg = jnp.sum(A, axis=1)
    dinv = lax.rsqrt(deg)
    a_norm = A * dinv[:, None] * dinv[None, :]                     # D^-1/2 (A+I) D^-1/2
    onehot = (batch[None, :] == jnp.arange(num_graphs)[:, None]).astype(jnp.float32)
    pool = onehot / jnp.sum(onehot, axis=1, keepdims=True)         # [G, N] mean-pool
    return a_norm, pool


# ---------------------------------------------------------------------------- main
if __name__ == "__main__":
    NUM_NODES = 16
    INPUT_DIM = 8
    HIDDEN_DIM = 32
    OUTPUT_DIM = 2
    NUM_LAYERS = 3
    HEADS = 4
    NUM_GRAPHS = 2

    key = jax.random.PRNGKey(0)
    k_x, k_params = jax.random.split(key)

    # Node features [num_nodes, input_dim]
    x = jax.random.normal(k_x, (NUM_NODES, INPUT_DIM), jnp.float32)

    # Two 8-node ring graphs (both edge directions), batch = [0]*8 + [1]*8
    edges = []
    for g in range(NUM_GRAPHS):
        base = g * (NUM_NODES // NUM_GRAPHS)
        sz = NUM_NODES // NUM_GRAPHS
        for kk in range(sz):
            a = base + kk
            b = base + (kk + 1) % sz
            edges.append((a, b))
            edges.append((b, a))
    edge_index = jnp.array(edges, dtype=jnp.int32).T               # [2, num_edges]
    batch = jnp.repeat(jnp.arange(NUM_GRAPHS, dtype=jnp.int32), NUM_NODES // NUM_GRAPHS)

    a_norm, pool = build_graph_mats(edge_index, batch, NUM_NODES, NUM_GRAPHS)
    params = init_ensemble(k_params, INPUT_DIM, HIDDEN_DIM, OUTPUT_DIM, NUM_LAYERS, HEADS)
    packed = pack_ensemble(params, input_dim=INPUT_DIM, hidden=HIDDEN_DIM,
                           heads=HEADS, out_dim=OUTPUT_DIM)

    fwd = jax.jit(functools.partial(
        ensemble_forward, hidden=HIDDEN_DIM,
        num_gcn_layers=NUM_LAYERS + 1, num_gat_layers=NUM_LAYERS))
    out = jax.block_until_ready(fwd(packed, x, a_norm, pool))

    assert out.shape == (NUM_GRAPHS, OUTPUT_DIM)
    assert bool(jnp.all(jnp.isfinite(out)))
    print("KERNEL_OK")
</pallas_src>

<mosaic_0001>
module attributes {stable_mosaic.version = 11 : i64} {
  func.func @kernel(%arg0: i32, %arg1: memref<16x16xbf16, #tpu.memory_space<vmem>>, %arg2: memref<2x16xf32, #tpu.memory_space<vmem>>, %arg3: memref<16x64xf32, #tpu.memory_space<vmem>>, %arg4: memref<16x32xf32, #tpu.memory_space<vmem>>, %arg5: memref<2x64xf32, #tpu.memory_space<vmem>>, %arg6: memref<4x64x64xf32, #tpu.memory_space<vmem>>, %arg7: memref<4x3x64xf32, #tpu.memory_space<vmem>>, %arg8: memref<64x32xf32, #tpu.memory_space<vmem>>, %arg9: memref<1x32xf32, #tpu.memory_space<vmem>>, %arg10: memref<32x2xf32, #tpu.memory_space<vmem>>, %arg11: memref<1x2xf32, #tpu.memory_space<vmem>>, %arg12: memref<2x64xf32, #tpu.memory_space<vmem>>, %arg13: memref<64x2xf32, #tpu.memory_space<vmem>>, %arg14: memref<1x2xf32, #tpu.memory_space<vmem>>, %arg15: memref<2x32xf32, #tpu.memory_space<vmem>>, %arg16: memref<3x32x32xf32, #tpu.memory_space<vmem>>, %arg17: memref<3x4x32xf32, #tpu.memory_space<vmem>>, %arg18: memref<3x4x32xf32, #tpu.memory_space<vmem>>, %arg19: memref<3x3x32xf32, #tpu.memory_space<vmem>>, %arg20: memref<4x32xf32, #tpu.memory_space<vmem>>, %arg21: memref<32x2xf32, #tpu.memory_space<vmem>>, %arg22: memref<1x2xf32, #tpu.memory_space<vmem>>, %arg23: memref<1x2x2xf32, #tpu.memory_space<vmem>>) attributes {dimension_semantics = [#tpu.dimension_semantics<parallel>], iteration_bounds = array<i64: 2>, scalar_prefetch = 0 : i64, scratch_operands = 0 : i64, tpu.core_type = #tpu.core_type<tc>, window_params = [{pipeline_mode = #tpu.pipeline_mode<synchronous>, transform_indices = @transform_0, window_bounds = array<i64: 16, 16>}, {pipeline_mode = #tpu.pipeline_mode<synchronous>, transform_indices = @transform_1, window_bounds = array<i64: 2, 16>}, {pipeline_mode = #tpu.pipeline_mode<synchronous>, transform_indices = @transform_2, window_bounds = array<i64: 16, 64>}, {pipeline_mode = #tpu.pipeline_mode<synchronous>, transform_indices = @transform_3, window_bounds = array<i64: 16, 32>}, {pipeline_mode = #tpu.pipeline_mode<synchronous>, transform_indices = @transform_4, window_bounds = array<i64: 2, 64>}, {pipeline_mode = #tpu.pipeline_mode<synchronous>, transform_indices = @transform_5, window_bounds = array<i64: 4, 64, 64>}, {pipeline_mode = #tpu.pipeline_mode<synchronous>, transform_indices = @transform_6, window_bounds = array<i64: 4, 3, 64>}, {pipeline_mode = #tpu.pipeline_mode<synchronous>, transform_indices = @transform_7, window_bounds = array<i64: 64, 32>}, {pipeline_mode = #tpu.pipeline_mode<synchronous>, transform_indices = @transform_8, window_bounds = array<i64: 1, 32>}, {pipeline_mode = #tpu.pipeline_mode<synchronous>, transform_indices = @transform_9, window_bounds = array<i64: 32, 2>}, {pipeline_mode = #tpu.pipeline_mode<synchronous>, transform_indices = @transform_10, window_bounds = array<i64: 1, 2>}, {pipeline_mode = #tpu.pipeline_mode<synchronous>, transform_indices = @transform_11, window_bounds = array<i64: 2, 64>}, {pipeline_mode = #tpu.pipeline_mode<synchronous>, transform_indices = @transform_12, window_bounds = array<i64: 64, 2>}, {pipeline_mode = #tpu.pipeline_mode<synchronous>, transform_indices = @transform_13, window_bounds = array<i64: 1, 2>}, {pipeline_mode = #tpu.pipeline_mode<synchronous>, transform_indices = @transform_14, window_bounds = array<i64: 2, 32>}, {pipeline_mode = #tpu.pipeline_mode<synchronous>, transform_indices = @transform_15, window_bounds = array<i64: 3, 32, 32>}, {pipeline_mode = #tpu.pipeline_mode<synchronous>, transform_indices = @transform_16, window_bounds = array<i64: 3, 4, 32>}, {pipeline_mode = #tpu.pipeline_mode<synchronous>, transform_indices = @transform_17, window_bounds = array<i64: 3, 4, 32>}, {pipeline_mode = #tpu.pipeline_mode<synchronous>, transform_indices = @transform_18, window_bounds = array<i64: 3, 3, 32>}, {pipeline_mode = #tpu.pipeline_mode<synchronous>, transform_indices = @transform_19, window_bounds = array<i64: 4, 32>}, {pipeline_mode = #tpu.pipeline_mode<synchronous>, transform_indices = @transform_20, window_bounds = array<i64: 32, 2>}, {pipeline_mode = #tpu.pipeline_mode<synchronous>, transform_indices = @transform_21, window_bounds = array<i64: 1, 2>}, {transform_indices = @transform_22, window_bounds = array<i64: 1, 2, 2>}]} {
    %c0 = arith.constant 0 : index
    %c0_0 = arith.constant 0 : index
    %0 = vector.load %arg2[%c0, %c0_0] : memref<2x16xf32, #tpu.memory_space<vmem>>, vector<2x16xf32>
    %c0_i32 = arith.constant 0 : i32
    %1 = arith.cmpi eq, %arg0, %c0_i32 : i32
    %2 = arith.extui %1 : i1 to i32
    %c0_i32_1 = arith.constant 0 : i32
    %3 = arith.cmpi ne, %2, %c0_i32_1 : i32
    scf.if %3 {
      %c0_3 = arith.constant 0 : index
      %c0_4 = arith.constant 0 : index
      %7 = vector.load %arg1[%c0_3, %c0_4] : memref<16x16xbf16, #tpu.memory_space<vmem>>, vector<16x16xbf16>
      %c0_5 = arith.constant 0 : index
      %c0_6 = arith.constant 0 : index
      %8 = vector.load %arg3[%c0_5, %c0_6] : memref<16x64xf32, #tpu.memory_space<vmem>>, vector<16x64xf32>
      %c0_7 = arith.constant 0 : index
      %c0_8 = arith.constant 0 : index
      %9 = vector.load %arg5[%c0_7, %c0_8] : memref<2x64xf32, #tpu.memory_space<vmem>>, vector<1x64xf32>
      %10 = vector.broadcast %9 : vector<1x64xf32> to vector<16x64xf32>
      %11 = arith.mulf %8, %10 : vector<16x64xf32>
      %c1 = arith.constant 1 : index
      %c0_9 = arith.constant 0 : index
      %12 = vector.load %arg5[%c1, %c0_9] : memref<2x64xf32, #tpu.memory_space<vmem>>, vector<1x64xf32>
      %13 = vector.broadcast %12 : vector<1x64xf32> to vector<16x64xf32>
      %14 = arith.addf %11, %13 : vector<16x64xf32>
      %c0_10 = arith.constant 0 : index
      %c0_11 = arith.constant 0 : index
      %c0_12 = arith.constant 0 : index
      %15 = vector.load %arg7[%c0_10, %c0_11, %c0_12] : memref<4x3x64xf32, #tpu.memory_space<vmem>>, vector<1x3x64xf32>
      %16 = vector.shape_cast %15 : vector<1x3x64xf32> to vector<3x64xf32>
      %c0_13 = arith.constant 0 : index
      %c0_14 = arith.constant 0 : index
      %c0_15 = arith.constant 0 : index
      %17 = vector.load %arg6[%c0_13, %c0_14, %c0_15] : memref<4x64x64xf32, #tpu.memory_space<vmem>>, vector<1x64x64xf32>
      %18 = vector.shape_cast %17 : vector<1x64x64xf32> to vector<64x64xf32>
      %cst = arith.constant dense<0.000000e+00> : vector<16x64xf32>
      %19 = tpu.matmul %14, %18, %cst {dimension_numbers = #tpu.dot_dimension_numbers<[1], [0], [0], [1], [0, 0, 1, 1], [], []>} : vector<16x64xf32>, vector<64x64xf32>, vector<16x64xf32> -> vector<16x64xf32>
      %20 = arith.truncf %19 : vector<16x64xf32> to vector<16x64xbf16>
      %cst_16 = arith.constant dense<0.000000e+00> : vector<16x64xf32>
      %21 = tpu.matmul %7, %20, %cst_16 {dimension_numbers = #tpu.dot_dimension_numbers<[1], [0], [0], [1], [0, 0, 1, 1], [], []>} : vector<16x16xbf16>, vector<16x64xbf16>, vector<16x64xf32> -> vector<16x64xf32>
      %22 = vector.extract_strided_slice %16 {offsets = [0, 0], sizes = [1, 64], strides = [1, 1]} : vector<3x64xf32> to vector<1x64xf32>
      %23 = vector.broadcast %22 : vector<1x64xf32> to vector<16x64xf32>
      %24 = arith.addf %21, %23 : vector<16x64xf32>
      %cst_17 = arith.constant 0.000000e+00 : f32
      %25 = vector.broadcast %cst_17 : f32 to vector<16x64xf32>
      %26 = arith.maximumf %24, %25 : vector<16x64xf32>
      %27 = vector.extract_strided_slice %16 {offsets = [1, 0], sizes = [1, 64], strides = [1, 1]} : vector<3x64xf32> to vector<1x64xf32>
      %28 = vector.broadcast %27 : vector<1x64xf32> to vector<16x64xf32>
      %29 = arith.mulf %26, %28 : vector<16x64xf32>
      %30 = vector.extract_strided_slice %16 {offsets = [2, 0], sizes = [1, 64], strides = [1, 1]} : vector<3x64xf32> to vector<1x64xf32>
      %31 = vector.broadcast %30 : vector<1x64xf32> to vector<16x64xf32>
      %32 = arith.addf %29, %31 : vector<16x64xf32>
      %c1_18 = arith.constant 1 : index
      %c0_19 = arith.constant 0 : index
      %c0_20 = arith.constant 0 : index
      %33 = vector.load %arg7[%c1_18, %c0_19, %c0_20] : memref<4x3x64xf32, #tpu.memory_space<vmem>>, vector<1x3x64xf32>
      %34 = vector.shape_cast %33 : vector<1x3x64xf32> to vector<3x64xf32>
      %c1_21 = arith.constant 1 : index
      %c0_22 = arith.constant 0 : index
      %c0_23 = arith.constant 0 : index
      %35 = vector.load %arg6[%c1_21, %c0_22, %c0_23] : memref<4x64x64xf32, #tpu.memory_space<vmem>>, vector<1x64x64xf32>
      %36 = vector.shape_cast %35 : vector<1x64x64xf32> to vector<64x64xf32>
      %cst_24 = arith.constant dense<0.000000e+00> : vector<16x64xf32>
      %37 = tpu.matmul %32, %36, %cst_24 {dimension_numbers = #tpu.dot_dimension_numbers<[1], [0], [0], [1], [0, 0, 1, 1], [], []>} : vector<16x64xf32>, vector<64x64xf32>, vector<16x64xf32> -> vector<16x64xf32>
      %38 = arith.truncf %37 : vector<16x64xf32> to vector<16x64xbf16>
      %cst_25 = arith.constant dense<0.000000e+00> : vector<16x64xf32>
      %39 = tpu.matmul %7, %38, %cst_25 {dimension_numbers = #tpu.dot_dimension_numbers<[1], [0], [0], [1], [0, 0, 1, 1], [], []>} : vector<16x16xbf16>, vector<16x64xbf16>, vector<16x64xf32> -> vector<16x64xf32>
      %40 = vector.extract_strided_slice %34 {offsets = [0, 0], sizes = [1, 64], strides = [1, 1]} : vector<3x64xf32> to vector<1x64xf32>
      %41 = vector.broadcast %40 : vector<1x64xf32> to vector<16x64xf32>
      %42 = arith.addf %39, %41 : vector<16x64xf32>
      %cst_26 = arith.constant 0.000000e+00 : f32
      %43 = vector.broadcast %cst_26 : f32 to vector<16x64xf32>
      %44 = arith.maximumf %42, %43 : vector<16x64xf32>
      %45 = vector.extract_strided_slice %34 {offsets = [1, 0], sizes = [1, 64], strides = [1, 1]} : vector<3x64xf32> to vector<1x64xf32>
      %46 = vector.broadcast %45 : vector<1x64xf32> to vector<16x64xf32>
      %47 = arith.mulf %44, %46 : vector<16x64xf32>
      %48 = vector.extract_strided_slice %34 {offsets = [2, 0], sizes = [1, 64], strides = [1, 1]} : vector<3x64xf32> to vector<1x64xf32>
      %49 = vector.broadcast %48 : vector<1x64xf32> to vector<16x64xf32>
      %50 = arith.addf %47, %49 : vector<16x64xf32>
      %51 = arith.addf %50, %32 : vector<16x64xf32>
      %c2 = arith.constant 2 : index
      %c0_27 = arith.constant 0 : index
      %c0_28 = arith.constant 0 : index
      %52 = vector.load %arg7[%c2, %c0_27, %c0_28] : memref<4x3x64xf32, #tpu.memory_space<vmem>>, vector<1x3x64xf32>
      %53 = vector.shape_cast %52 : vector<1x3x64xf32> to vector<3x64xf32>
      %c2_29 = arith.constant 2 : index
      %c0_30 = arith.constant 0 : index
      %c0_31 = arith.constant 0 : index
      %54 = vector.load %arg6[%c2_29, %c0_30, %c0_31] : memref<4x64x64xf32, #tpu.memory_space<vmem>>, vector<1x64x64xf32>
      %55 = vector.shape_cast %54 : vector<1x64x64xf32> to vector<64x64xf32>
      %cst_32 = arith.constant dense<0.000000e+00> : vector<16x64xf32>
      %56 = tpu.matmul %51, %55, %cst_32 {dimension_numbers = #tpu.dot_dimension_numbers<[1], [0], [0], [1], [0, 0, 1, 1], [], []>} : vector<16x64xf32>, vector<64x64xf32>, vector<16x64xf32> -> vector<16x64xf32>
      %57 = arith.truncf %56 : vector<16x64xf32> to vector<16x64xbf16>
      %cst_33 = arith.constant dense<0.000000e+00> : vector<16x64xf32>
      %58 = tpu.matmul %7, %57, %cst_33 {dimension_numbers = #tpu.dot_dimension_numbers<[1], [0], [0], [1], [0, 0, 1, 1], [], []>} : vector<16x16xbf16>, vector<16x64xbf16>, vector<16x64xf32> -> vector<16x64xf32>
      %59 = vector.extract_strided_slice %53 {offsets = [0, 0], sizes = [1, 64], strides = [1, 1]} : vector<3x64xf32> to vector<1x64xf32>
      %60 = vector.broadcast %59 : vector<1x64xf32> to vector<16x64xf32>
      %61 = arith.addf %58, %60 : vector<16x64xf32>
      %cst_34 = arith.constant 0.000000e+00 : f32
      %62 = vector.broadcast %cst_34 : f32 to vector<16x64xf32>
      %63 = arith.maximumf %61, %62 : vector<16x64xf32>
      %64 = vector.extract_strided_slice %53 {offsets = [1, 0], sizes = [1, 64], strides = [1, 1]} : vector<3x64xf32> to vector<1x64xf32>
      %65 = vector.broadcast %64 : vector<1x64xf32> to vector<16x64xf32>
      %66 = arith.mulf %63, %65 : vector<16x64xf32>
      %67 = vector.extract_strided_slice %53 {offsets = [2, 0], sizes = [1, 64], strides = [1, 1]} : vector<3x64xf32> to vector<1x64xf32>
      %68 = vector.broadcast %67 : vector<1x64xf32> to vector<16x64xf32>
      %69 = arith.addf %66, %68 : vector<16x64xf32>
      %70 = arith.addf %69, %51 : vector<16x64xf32>
      %c3 = arith.constant 3 : index
      %c0_35 = arith.constant 0 : index
      %c0_36 = arith.constant 0 : index
      %71 = vector.load %arg7[%c3, %c0_35, %c0_36] : memref<4x3x64xf32, #tpu.memory_space<vmem>>, vector<1x3x64xf32>
      %72 = vector.shape_cast %71 : vector<1x3x64xf32> to vector<3x64xf32>
      %c3_37 = arith.constant 3 : index
      %c0_38 = arith.constant 0 : index
      %c0_39 = arith.constant 0 : index
      %73 = vector.load %arg6[%c3_37, %c0_38, %c0_39] : memref<4x64x64xf32, #tpu.memory_space<vmem>>, vector<1x64x64xf32>
      %74 = vector.shape_cast %73 : vector<1x64x64xf32> to vector<64x64xf32>
      %cst_40 = arith.constant dense<0.000000e+00> : vector<16x64xf32>
      %75 = tpu.matmul %70, %74, %cst_40 {dimension_numbers = #tpu.dot_dimension_numbers<[1], [0], [0], [1], [0, 0, 1, 1], [], []>} : vector<16x64xf32>, vector<64x64xf32>, vector<16x64xf32> -> vector<16x64xf32>
      %76 = arith.truncf %75 : vector<16x64xf32> to vector<16x64xbf16>
      %cst_41 = arith.constant dense<0.000000e+00> : vector<16x64xf32>
      %77 = tpu.matmul %7, %76, %cst_41 {dimension_numbers = #tpu.dot_dimension_numbers<[1], [0], [0], [1], [0, 0, 1, 1], [], []>} : vector<16x16xbf16>, vector<16x64xbf16>, vector<16x64xf32> -> vector<16x64xf32>
      %78 = vector.extract_strided_slice %72 {offsets = [0, 0], sizes = [1, 64], strides = [1, 1]} : vector<3x64xf32> to vector<1x64xf32>
      %79 = vector.broadcast %78 : vector<1x64xf32> to vector<16x64xf32>
      %80 = arith.addf %77, %79 : vector<16x64xf32>
      %cst_42 = arith.constant 0.000000e+00 : f32
      %81 = vector.broadcast %cst_42 : f32 to vector<16x64xf32>
      %82 = arith.maximumf %80, %81 : vector<16x64xf32>
      %83 = vector.extract_strided_slice %72 {offsets = [1, 0], sizes = [1, 64], strides = [1, 1]} : vector<3x64xf32> to vector<1x64xf32>
      %84 = vector.broadcast %83 : vector<1x64xf32> to vector<16x64xf32>
      %85 = arith.mulf %82, %84 : vector<16x64xf32>
      %86 = vector.extract_strided_slice %72 {offsets = [2, 0], sizes = [1, 64], strides = [1, 1]} : vector<3x64xf32> to vector<1x64xf32>
      %87 = vector.broadcast %86 : vector<1x64xf32> to vector<16x64xf32>
      %88 = arith.addf %85, %87 : vector<16x64xf32>
      %89 = arith.addf %88, %70 : vector<16x64xf32>
      %c0_43 = arith.constant 0 : index
      %c0_44 = arith.constant 0 : index
      %90 = vector.load %arg8[%c0_43, %c0_44] : memref<64x32xf32, #tpu.memory_space<vmem>>, vector<64x32xf32>
      %cst_45 = arith.constant dense<0.000000e+00> : vector<16x32xf32>
      %91 = tpu.matmul %89, %90, %cst_45 {dimension_numbers = #tpu.dot_dimension_numbers<[1], [0], [0], [1], [0, 0, 1, 1], [], []>} : vector<16x64xf32>, vector<64x32xf32>, vector<16x32xf32> -> vector<16x32xf32>
      %c0_46 = arith.constant 0 : index
      %c0_47 = arith.constant 0 : index
      %92 = vector.load %arg9[%c0_46, %c0_47] : memref<1x32xf32, #tpu.memory_space<vmem>>, vector<1x32xf32>
      %93 = vector.broadcast %92 : vector<1x32xf32> to vector<16x32xf32>
      %94 = arith.addf %91, %93 : vector<16x32xf32>
      %cst_48 = arith.constant 0.000000e+00 : f32
      %95 = vector.broadcast %cst_48 : f32 to vector<16x32xf32>
      %96 = arith.cmpf ogt, %94, %95 : vector<16x32xf32>
      %cst_49 = arith.constant 0.00999999977 : f32
      %97 = vector.broadcast %cst_49 : f32 to vector<16x32xf32>
      %98 = arith.mulf %97, %94 : vector<16x32xf32>
      %99 = arith.select %96, %94, %98 : vector<16x32xi1>, vector<16x32xf32>
      %c0_50 = arith.constant 0 : index
      %c0_51 = arith.constant 0 : index
      %100 = vector.load %arg10[%c0_50, %c0_51] : memref<32x2xf32, #tpu.memory_space<vmem>>, vector<32x2xf32>
      %cst_52 = arith.constant dense<0.000000e+00> : vector<16x2xf32>
      %101 = tpu.matmul %99, %100, %cst_52 {dimension_numbers = #tpu.dot_dimension_numbers<[1], [0], [0], [1], [0, 0, 1, 1], [], []>} : vector<16x32xf32>, vector<32x2xf32>, vector<16x2xf32> -> vector<16x2xf32>
      %c0_53 = arith.constant 0 : index
      %c0_54 = arith.constant 0 : index
      %102 = vector.load %arg11[%c0_53, %c0_54] : memref<1x2xf32, #tpu.memory_space<vmem>>, vector<1x2xf32>
      %103 = vector.broadcast %102 : vector<1x2xf32> to vector<16x2xf32>
      %104 = arith.addf %101, %103 : vector<16x2xf32>
      %cst_55 = arith.constant dense<0xFF800000> : vector<2xf32>
      %105 = vector.multi_reduction <maximumf>, %104, %cst_55 [0] : vector<16x2xf32> to vector<2xf32>
      %106 = vector.shape_cast %105 : vector<2xf32> to vector<1x2xf32>
      %107 = vector.broadcast %106 : vector<1x2xf32> to vector<16x2xf32>
      %108 = arith.subf %104, %107 : vector<16x2xf32>
      %109 = math.exp %108 : vector<16x2xf32>
      %cst_56 = arith.constant dense<0.000000e+00> : vector<2xf32>
      %110 = vector.multi_reduction <add>, %109, %cst_56 [0] : vector<16x2xf32> to vector<2xf32>
      %111 = vector.shape_cast %110 : vector<2xf32> to vector<1x2xf32>
      %112 = tpu.reciprocal %111 {approx = true} : vector<1x2xf32> -> vector<1x2xf32>
      %113 = vector.broadcast %112 : vector<1x2xf32> to vector<16x2xf32>
      %114 = arith.mulf %109, %113 : vector<16x2xf32>
      %c0_57 = arith.constant 0 : index
      %c0_58 = arith.constant 0 : index
      %115 = vector.load %arg12[%c0_57, %c0_58] : memref<2x64xf32, #tpu.memory_space<vmem>>, vector<2x64xf32>
      %cst_59 = arith.constant dense<0.000000e+00> : vector<16x64xf32>
      %116 = tpu.matmul %114, %115, %cst_59 {dimension_numbers = #tpu.dot_dimension_numbers<[1], [0], [0], [1], [0, 0, 1, 1], [], []>} : vector<16x2xf32>, vector<2x64xf32>, vector<16x64xf32> -> vector<16x64xf32>
      %117 = arith.mulf %89, %116 : vector<16x64xf32>
      %cst_60 = arith.constant dense<0.000000e+00> : vector<2x64xf32>
      %118 = tpu.matmul %0, %117, %cst_60 {dimension_numbers = #tpu.dot_dimension_numbers<[1], [0], [0], [1], [0, 0, 1, 1], [], []>} : vector<2x16xf32>, vector<16x64xf32>, vector<2x64xf32> -> vector<2x64xf32>
      %c0_61 = arith.constant 0 : index
      %c0_62 = arith.constant 0 : index
      %119 = vector.load %arg13[%c0_61, %c0_62] : memref<64x2xf32, #tpu.memory_space<vmem>>, vector<64x2xf32>
      %cst_63 = arith.constant dense<0.000000e+00> : vector<2x2xf32>
      %120 = tpu.matmul %118, %119, %cst_63 {dimension_numbers = #tpu.dot_dimension_numbers<[1], [0], [0], [1], [0, 0, 1, 1], [], []>} : vector<2x64xf32>, vector<64x2xf32>, vector<2x2xf32> -> vector<2x2xf32>
      %c0_64 = arith.constant 0 : index
      %c0_65 = arith.constant 0 : index
      %121 = vector.load %arg14[%c0_64, %c0_65] : memref<1x2xf32, #tpu.memory_space<vmem>>, vector<1x2xf32>
      %122 = vector.broadcast %121 : vector<1x2xf32> to vector<2x2xf32>
      %123 = arith.addf %120, %122 : vector<2x2xf32>
      %c0_66 = arith.constant 0 : index
      %c0_67 = arith.constant 0 : index
      %c0_68 = arith.constant 0 : index
      %124 = vector.load %arg23[%c0_66, %c0_67, %c0_68] : memref<1x2x2xf32, #tpu.memory_space<vmem>>, vector<1x2x2xf32>
      %125 = vector.shape_cast %124 : vector<1x2x2xf32> to vector<2x2xf32>
      %126 = vector.shape_cast %123 : vector<2x2xf32> to vector<1x2x2xf32>
      tpu.vector_store %arg23[%c0_66, %c0_67, %c0_68], %126 {strides = array<i32>} : memref<1x2x2xf32, #tpu.memory_space<vmem>>, vector<1x2x2xf32>,
    } else {
    }
    %c1_i32 = arith.constant 1 : i32
    %4 = arith.cmpi eq, %arg0, %c1_i32 : i32
    %5 = arith.extui %4 : i1 to i32
    %c0_i32_2 = arith.constant 0 : i32
    %6 = arith.cmpi ne, %5, %c0_i32_2 : i32
    scf.if %6 {
      %c0_3 = arith.constant 0 : index
      %c0_4 = arith.constant 0 : index
      %7 = vector.load %arg1[%c0_3, %c0_4] : memref<16x16xbf16, #tpu.memory_space<vmem>>, vector<16x16xbf16>
      %cst = arith.constant 0.000000e+00 : bf16
      %8 = vector.broadcast %cst : bf16 to vector<16x16xbf16>
      %9 = arith.cmpf ogt, %7, %8 : vector<16x16xbf16>
      %c0_5 = arith.constant 0 : index
      %c0_6 = arith.constant 0 : index
      %10 = vector.load %arg20[%c0_5, %c0_6] : memref<4x32xf32, #tpu.memory_space<vmem>>, vector<4x32xf32>
      %c0_7 = arith.constant 0 : index
      %c0_8 = arith.constant 0 : index
      %11 = vector.load %arg4[%c0_7, %c0_8] : memref<16x32xf32, #tpu.memory_space<vmem>>, vector<16x32xf32>
      %c0_9 = arith.constant 0 : index
      %c0_10 = arith.constant 0 : index
      %12 = vector.load %arg15[%c0_9, %c0_10] : memref<2x32xf32, #tpu.memory_space<vmem>>, vector<1x32xf32>
      %13 = vector.broadcast %12 : vector<1x32xf32> to vector<16x32xf32>
      %14 = arith.mulf %11, %13 : vector<16x32xf32>
      %c1 = arith.constant 1 : index
      %c0_11 = arith.constant 0 : index
      %15 = vector.load %arg15[%c1, %c0_11] : memref<2x32xf32, #tpu.memory_space<vmem>>, vector<1x32xf32>
      %16 = vector.broadcast %15 : vector<1x32xf32> to vector<16x32xf32>
      %17 = arith.addf %14, %16 : vector<16x32xf32>
      %c0_12 = arith.constant 0 : index
      %c0_13 = arith.constant 0 : index
      %c0_14 = arith.constant 0 : index
      %18 = vector.load %arg19[%c0_12, %c0_13, %c0_14] : memref<3x3x32xf32, #tpu.memory_space<vmem>>, vector<1x3x32xf32>
      %19 = vector.shape_cast %18 : vector<1x3x32xf32> to vector<3x32xf32>
      %c0_15 = arith.constant 0 : index
      %c0_16 = arith.constant 0 : index
      %c0_17 = arith.constant 0 : index
      %20 = vector.load %arg16[%c0_15, %c0_16, %c0_17] : memref<3x32x32xf32, #tpu.memory_space<vmem>>, vector<1x32x32xf32>
      %21 = vector.shape_cast %20 : vector<1x32x32xf32> to vector<32x32xf32>
      %cst_18 = arith.constant dense<0.000000e+00> : vector<16x32xf32>
      %22 = tpu.matmul %17, %21, %cst_18 {dimension_numbers = #tpu.dot_dimension_numbers<[1], [0], [0], [1], [0, 0, 1, 1], [], []>} : vector<16x32xf32>, vector<32x32xf32>, vector<16x32xf32> -> vector<16x32xf32>
      %c0_19 = arith.constant 0 : index
      %c0_20 = arith.constant 0 : index
      %c0_21 = arith.constant 0 : index
      %23 = vector.load %arg17[%c0_19, %c0_20, %c0_21] : memref<3x4x32xf32, #tpu.memory_space<vmem>>, vector<1x4x32xf32>
      %24 = vector.shape_cast %23 : vector<1x4x32xf32> to vector<4x32xf32>
      %cst_22 = arith.constant dense<0.000000e+00> : vector<4x16xf32>
      %25 = tpu.matmul %24, %22, %cst_22 {dimension_numbers = #tpu.dot_dimension_numbers<[1], [1], [0], [0], [0, 0, 1, 0], [], []>} : vector<4x32xf32>, vector<16x32xf32>, vector<4x16xf32> -> vector<4x16xf32>
      %c0_23 = arith.constant 0 : index
      %c0_24 = arith.constant 0 : index
      %c0_25 = arith.constant 0 : index
      %26 = vector.load %arg18[%c0_23, %c0_24, %c0_25] : memref<3x4x32xf32, #tpu.memory_space<vmem>>, vector<1x4x32xf32>
      %27 = vector.shape_cast %26 : vector<1x4x32xf32> to vector<4x32xf32>
      %cst_26 = arith.constant dense<0.000000e+00> : vector<4x16xf32>
      %28 = tpu.matmul %27, %22, %cst_26 {dimension_numbers = #tpu.dot_dimension_numbers<[1], [1], [0], [0], [0, 0, 1, 0], [], []>} : vector<4x32xf32>, vector<16x32xf32>, vector<4x16xf32> -> vector<4x16xf32>
      %29 = vector.shape_cast %28 : vector<4x16xf32> to vector<4x16x1xf32>
      %30 = vector.shape_cast %25 : vector<4x16xf32> to vector<4x1x16xf32>
      %31 = vector.broadcast %29 : vector<4x16x1xf32> to vector<4x16x16xf32>
      %32 = vector.broadcast %30 : vector<4x1x16xf32> to vector<4x16x16xf32>
      %33 = arith.addf %31, %32 : vector<4x16x16xf32>
      %cst_27 = arith.constant 0.000000e+00 : f32
      %34 = vector.broadcast %cst_27 : f32 to vector<4x16x16xf32>
      %35 = arith.cmpf ogt, %33, %34 : vector<4x16x16xf32>
      %cst_28 = arith.constant 2.000000e-01 : f32
      %36 = vector.broadcast %cst_28 : f32 to vector<4x16x16xf32>
      %37 = arith.mulf %36, %33 : vector<4x16x16xf32>
      %38 = arith.select %35, %33, %37 : vector<4x16x16xi1>, vector<4x16x16xf32>
      %39 = vector.shape_cast %9 : vector<16x16xi1> to vector<1x16x16xi1>
      %cst_29 = arith.constant -1.000000e+30 : f32
      %40 = vector.shape_cast %39 : vector<1x16x16xi1> to vector<1x16x16xi1>
      %41 = vector.broadcast %40 : vector<1x16x16xi1> to vector<4x16x16xi1>
      %42 = vector.broadcast %cst_29 : f32 to vector<4x16x16xf32>
      %43 = arith.select %41, %38, %42 : vector<4x16x16xi1>, vector<4x16x16xf32>
      %cst_30 = arith.constant dense<0xFF800000> : vector<4x16xf32>
      %44 = vector.multi_reduction <maximumf>, %43, %cst_30 [2] : vector<4x16x16xf32> to vector<4x16xf32>
      %45 = vector.shape_cast %44 : vector<4x16xf32> to vector<4x16x1xf32>
      %46 = vector.broadcast %45 : vector<4x16x1xf32> to vector<4x16x16xf32>
      %47 = arith.subf %43, %46 : vector<4x16x16xf32>
      %48 = math.exp %47 : vector<4x16x16xf32>
      %cst_31 = arith.constant dense<0.000000e+00> : vector<4x16xf32>
      %49 = vector.multi_reduction <add>, %48, %cst_31 [2] : vector<4x16x16xf32> to vector<4x16xf32>
      %50 = vector.shape_cast %49 : vector<4x16xf32> to vector<4x16x1xf32>
      %51 = tpu.reciprocal %50 {approx = true} : vector<4x16x1xf32> -> vector<4x16x1xf32>
      %52 = vector.broadcast %51 : vector<4x16x1xf32> to vector<4x16x16xf32>
      %53 = arith.mulf %48, %52 : vector<4x16x16xf32>
      %54 = vector.shape_cast %22 : vector<16x32xf32> to vector<1x16x32xf32>
      %55 = vector.shape_cast %10 : vector<4x32xf32> to vector<4x1x32xf32>
      %56 = vector.broadcast %54 : vector<1x16x32xf32> to vector<4x16x32xf32>
      %57 = vector.broadcast %55 : vector<4x1x32xf32> to vector<4x16x32xf32>
      %58 = arith.mulf %56, %57 : vector<4x16x32xf32>
      %59 = arith.truncf %58 : vector<4x16x32xf32> to vector<4x16x32xbf16>
      %60 = arith.truncf %53 : vector<4x16x16xf32> to vector<4x16x16xbf16>
      %cst_32 = arith.constant dense<0.000000e+00> : vector<4x16x32xf32>
      %61 = tpu.matmul %60, %59, %cst_32 {dimension_numbers = #tpu.dot_dimension_numbers<[2], [1], [1], [2], [0, 0, 0, 1, 1, 2], [0], [0]>} : vector<4x16x16xbf16>, vector<4x16x32xbf16>, vector<4x16x32xf32> -> vector<4x16x32xf32>
      %cst_33 = arith.constant dense<0.000000e+00> : vector<16x32xf32>
      %62 = vector.multi_reduction <add>, %61, %cst_33 [0] : vector<4x16x32xf32> to vector<16x32xf32>
      %63 = vector.extract_strided_slice %19 {offsets = [0, 0], sizes = [1, 32], strides = [1, 1]} : vector<3x32xf32> to vector<1x32xf32>
      %64 = vector.broadcast %63 : vector<1x32xf32> to vector<16x32xf32>
      %65 = arith.addf %62, %64 : vector<16x32xf32>
      %cst_34 = arith.constant 0.000000e+00 : f32
      %66 = vector.broadcast %cst_34 : f32 to vector<16x32xf32>
      %67 = arith.maximumf %65, %66 : vector<16x32xf32>
      %68 = vector.extract_strided_slice %19 {offsets = [1, 0], sizes = [1, 32], strides = [1, 1]} : vector<3x32xf32> to vector<1x32xf32>
      %69 = vector.broadcast %68 : vector<1x32xf32> to vector<16x32xf32>
      %70 = arith.mulf %67, %69 : vector<16x32xf32>
      %71 = vector.extract_strided_slice %19 {offsets = [2, 0], sizes = [1, 32], strides = [1, 1]} : vector<3x32xf32> to vector<1x32xf32>
      %72 = vector.broadcast %71 : vector<1x32xf32> to vector<16x32xf32>
      %73 = arith.addf %70, %72 : vector<16x32xf32>
      %c1_35 = arith.constant 1 : index
      %c0_36 = arith.constant 0 : index
      %c0_37 = arith.constant 0 : index
      %74 = vector.load %arg19[%c1_35, %c0_36, %c0_37] : memref<3x3x32xf32, #tpu.memory_space<vmem>>, vector<1x3x32xf32>
      %75 = vector.shape_cast %74 : vector<1x3x32xf32> to vector<3x32xf32>
      %c1_38 = arith.constant 1 : index
      %c0_39 = arith.constant 0 : index
      %c0_40 = arith.constant 0 : index
      %76 = vector.load %arg16[%c1_38, %c0_39, %c0_40] : memref<3x32x32xf32, #tpu.memory_space<vmem>>, vector<1x32x32xf32>
      %77 = vector.shape_cast %76 : vector<1x32x32xf32> to vector<32x32xf32>
      %cst_41 = arith.constant dense<0.000000e+00> : vector<16x32xf32>
      %78 = tpu.matmul %73, %77, %cst_41 {dimension_numbers = #tpu.dot_dimension_numbers<[1], [0], [0], [1], [0, 0, 1, 1], [], []>} : vector<16x32xf32>, vector<32x32xf32>, vector<16x32xf32> -> vector<16x32xf32>
      %c1_42 = arith.constant 1 : index
      %c0_43 = arith.constant 0 : index
      %c0_44 = arith.constant 0 : index
      %79 = vector.load %arg17[%c1_42, %c0_43, %c0_44] : memref<3x4x32xf32, #tpu.memory_space<vmem>>, vector<1x4x32xf32>
      %80 = vector.shape_cast %79 : vector<1x4x32xf32> to vector<4x32xf32>
      %cst_45 = arith.constant dense<0.000000e+00> : vector<4x16xf32>
      %81 = tpu.matmul %80, %78, %cst_45 {dimension_numbers = #tpu.dot_dimension_numbers<[1], [1], [0], [0], [0, 0, 1, 0], [], []>} : vector<4x32xf32>, vector<16x32xf32>, vector<4x16xf32> -> vector<4x16xf32>
      %c1_46 = arith.constant 1 : index
      %c0_47 = arith.constant 0 : index
      %c0_48 = arith.constant 0 : index
      %82 = vector.load %arg18[%c1_46, %c0_47, %c0_48] : memref<3x4x32xf32, #tpu.memory_space<vmem>>, vector<1x4x32xf32>
      %83 = vector.shape_cast %82 : vector<1x4x32xf32> to vector<4x32xf32>
      %cst_49 = arith.constant dense<0.000000e+00> : vector<4x16xf32>
      %84 = tpu.matmul %83, %78, %cst_49 {dimension_numbers = #tpu.dot_dimension_numbers<[1], [1], [0], [0], [0, 0, 1, 0], [], []>} : vector<4x32xf32>, vector<16x32xf32>, vector<4x16xf32> -> vector<4x16xf32>
      %85 = vector.shape_cast %84 : vector<4x16xf32> to vector<4x16x1xf32>
      %86 = vector.shape_cast %81 : vector<4x16xf32> to vector<4x1x16xf32>
      %87 = vector.broadcast %85 : vector<4x16x1xf32> to vector<4x16x16xf32>
      %88 = vector.broadcast %86 : vector<4x1x16xf32> to vector<4x16x16xf32>
      %89 = arith.addf %87, %88 : vector<4x16x16xf32>
      %cst_50 = arith.constant 0.000000e+00 : f32
      %90 = vector.broadcast %cst_50 : f32 to vector<4x16x16xf32>
      %91 = arith.cmpf ogt, %89, %90 : vector<4x16x16xf32>
      %cst_51 = arith.constant 2.000000e-01 : f32
      %92 = vector.broadcast %cst_51 : f32 to vector<4x16x16xf32>
      %93 = arith.mulf %92, %89 : vector<4x16x16xf32>
      %94 = arith.select %91, %89, %93 : vector<4x16x16xi1>, vector<4x16x16xf32>
      %95 = vector.shape_cast %9 : vector<16x16xi1> to vector<1x16x16xi1>
      %cst_52 = arith.constant -1.000000e+30 : f32
      %96 = vector.shape_cast %95 : vector<1x16x16xi1> to vector<1x16x16xi1>
      %97 = vector.broadcast %96 : vector<1x16x16xi1> to vector<4x16x16xi1>
      %98 = vector.broadcast %cst_52 : f32 to vector<4x16x16xf32>
      %99 = arith.select %97, %94, %98 : vector<4x16x16xi1>, vector<4x16x16xf32>
      %cst_53 = arith.constant dense<0xFF800000> : vector<4x16xf32>
      %100 = vector.multi_reduction <maximumf>, %99, %cst_53 [2] : vector<4x16x16xf32> to vector<4x16xf32>
      %101 = vector.shape_cast %100 : vector<4x16xf32> to vector<4x16x1xf32>
      %102 = vector.broadcast %101 : vector<4x16x1xf32> to vector<4x16x16xf32>
      %103 = arith.subf %99, %102 : vector<4x16x16xf32>
      %104 = math.exp %103 : vector<4x16x16xf32>
      %cst_54 = arith.constant dense<0.000000e+00> : vector<4x16xf32>
      %105 = vector.multi_reduction <add>, %104, %cst_54 [2] : vector<4x16x16xf32> to vector<4x16xf32>
      %106 = vector.shape_cast %105 : vector<4x16xf32> to vector<4x16x1xf32>
      %107 = tpu.reciprocal %106 {approx = true} : vector<4x16x1xf32> -> vector<4x16x1xf32>
      %108 = vector.broadcast %107 : vector<4x16x1xf32> to vector<4x16x16xf32>
      %109 = arith.mulf %104, %108 : vector<4x16x16xf32>
      %110 = vector.shape_cast %78 : vector<16x32xf32> to vector<1x16x32xf32>
      %111 = vector.shape_cast %10 : vector<4x32xf32> to vector<4x1x32xf32>
      %112 = vector.broadcast %110 : vector<1x16x32xf32> to vector<4x16x32xf32>
      %113 = vector.broadcast %111 : vector<4x1x32xf32> to vector<4x16x32xf32>
      %114 = arith.mulf %112, %113 : vector<4x16x32xf32>
      %115 = arith.truncf %114 : vector<4x16x32xf32> to vector<4x16x32xbf16>
      %116 = arith.truncf %109 : vector<4x16x16xf32> to vector<4x16x16xbf16>
      %cst_55 = arith.constant dense<0.000000e+00> : vector<4x16x32xf32>
      %117 = tpu.matmul %116, %115, %cst_55 {dimension_numbers = #tpu.dot_dimension_numbers<[2], [1], [1], [2], [0, 0, 0, 1, 1, 2], [0], [0]>} : vector<4x16x16xbf16>, vector<4x16x32xbf16>, vector<4x16x32xf32> -> vector<4x16x32xf32>
      %cst_56 = arith.constant dense<0.000000e+00> : vector<16x32xf32>
      %118 = vector.multi_reduction <add>, %117, %cst_56 [0] : vector<4x16x32xf32> to vector<16x32xf32>
      %119 = vector.extract_strided_slice %75 {offsets = [0, 0], sizes = [1, 32], strides = [1, 1]} : vector<3x32xf32> to vector<1x32xf32>
      %120 = vector.broadcast %119 : vector<1x32xf32> to vector<16x32xf32>
      %121 = arith.addf %118, %120 : vector<16x32xf32>
      %cst_57 = arith.constant 0.000000e+00 : f32
      %122 = vector.broadcast %cst_57 : f32 to vector<16x32xf32>
      %123 = arith.maximumf %121, %122 : vector<16x32xf32>
      %124 = vector.extract_strided_slice %75 {offsets = [1, 0], sizes = [1, 32], strides = [1, 1]} : vector<3x32xf32> to vector<1x32xf32>
      %125 = vector.broadcast %124 : vector<1x32xf32> to vector<16x32xf32>
      %126 = arith.mulf %123, %125 : vector<16x32xf32>
      %127 = vector.extract_strided_slice %75 {offsets = [2, 0], sizes = [1, 32], strides = [1, 1]} : vector<3x32xf32> to vector<1x32xf32>
      %128 = vector.broadcast %127 : vector<1x32xf32> to vector<16x32xf32>
      %129 = arith.addf %126, %128 : vector<16x32xf32>
      %130 = arith.addf %129, %73 : vector<16x32xf32>
      %c2 = arith.constant 2 : index
      %c0_58 = arith.constant 0 : index
      %c0_59 = arith.constant 0 : index
      %131 = vector.load %arg19[%c2, %c0_58, %c0_59] : memref<3x3x32xf32, #tpu.memory_space<vmem>>, vector<1x3x32xf32>
      %132 = vector.shape_cast %131 : vector<1x3x32xf32> to vector<3x32xf32>
      %c2_60 = arith.constant 2 : index
      %c0_61 = arith.constant 0 : index
      %c0_62 = arith.constant 0 : index
      %133 = vector.load %arg16[%c2_60, %c0_61, %c0_62] : memref<3x32x32xf32, #tpu.memory_space<vmem>>, vector<1x32x32xf32>
      %134 = vector.shape_cast %133 : vector<1x32x32xf32> to vector<32x32xf32>
      %cst_63 = arith.constant dense<0.000000e+00> : vector<16x32xf32>
      %135 = tpu.matmul %130, %134, %cst_63 {dimension_numbers = #tpu.dot_dimension_numbers<[1], [0], [0], [1], [0, 0, 1, 1], [], []>} : vector<16x32xf32>, vector<32x32xf32>, vector<16x32xf32> -> vector<16x32xf32>
      %c2_64 = arith.constant 2 : index
      %c0_65 = arith.constant 0 : index
      %c0_66 = arith.constant 0 : index
      %136 = vector.load %arg17[%c2_64, %c0_65, %c0_66] : memref<3x4x32xf32, #tpu.memory_space<vmem>>, vector<1x4x32xf32>
      %137 = vector.shape_cast %136 : vector<1x4x32xf32> to vector<4x32xf32>
      %cst_67 = arith.constant dense<0.000000e+00> : vector<4x16xf32>
      %138 = tpu.matmul %137, %135, %cst_67 {dimension_numbers = #tpu.dot_dimension_numbers<[1], [1], [0], [0], [0, 0, 1, 0], [], []>} : vector<4x32xf32>, vector<16x32xf32>, vector<4x16xf32> -> vector<4x16xf32>
      %c2_68 = arith.constant 2 : index
      %c0_69 = arith.constant 0 : index
      %c0_70 = arith.constant 0 : index
      %139 = vector.load %arg18[%c2_68, %c0_69, %c0_70] : memref<3x4x32xf32, #tpu.memory_space<vmem>>, vector<1x4x32xf32>
      %140 = vector.shape_cast %139 : vector<1x4x32xf32> to vector<4x32xf32>
      %cst_71 = arith.constant dense<0.000000e+00> : vector<4x16xf32>
      %141 = tpu.matmul %140, %135, %cst_71 {dimension_numbers = #tpu.dot_dimension_numbers<[1], [1], [0], [0], [0, 0, 1, 0], [], []>} : vector<4x32xf32>, vector<16x32xf32>, vector<4x16xf32> -> vector<4x16xf32>
      %142 = vector.shape_cast %141 : vector<4x16xf32> to vector<4x16x1xf32>
      %143 = vector.shape_cast %138 : vector<4x16xf32> to vector<4x1x16xf32>
      %144 = vector.broadcast %142 : vector<4x16x1xf32> to vector<4x16x16xf32>
      %145 = vector.broadcast %143 : vector<4x1x16xf32> to vector<4x16x16xf32>
      %146 = arith.addf %144, %145 : vector<4x16x16xf32>
      %cst_72 = arith.constant 0.000000e+00 : f32
      %147 = vector.broadcast %cst_72 : f32 to vector<4x16x16xf32>
      %148 = arith.cmpf ogt, %146, %147 : vector<4x16x16xf32>
      %cst_73 = arith.constant 2.000000e-01 : f32
      %149 = vector.broadcast %cst_73 : f32 to vector<4x16x16xf32>
      %150 = arith.mulf %149, %146 : vector<4x16x16xf32>
      %151 = arith.select %148, %146, %150 : vector<4x16x16xi1>, vector<4x16x16xf32>
      %152 = vector.shape_cast %9 : vector<16x16xi1> to vector<1x16x16xi1>
      %cst_74 = arith.constant -1.000000e+30 : f32
      %153 = vector.shape_cast %152 : vector<1x16x16xi1> to vector<1x16x16xi1>
      %154 = vector.broadcast %153 : vector<1x16x16xi1> to vector<4x16x16xi1>
      %155 = vector.broadcast %cst_74 : f32 to vector<4x16x16xf32>
      %156 = arith.select %154, %151, %155 : vector<4x16x16xi1>, vector<4x16x16xf32>
      %cst_75 = arith.constant dense<0xFF800000> : vector<4x16xf32>
      %157 = vector.multi_reduction <maximumf>, %156, %cst_75 [2] : vector<4x16x16xf32> to vector<4x16xf32>
      %158 = vector.shape_cast %157 : vector<4x16xf32> to vector<4x16x1xf32>
      %159 = vector.broadcast %158 : vector<4x16x1xf32> to vector<4x16x16xf32>
      %160 = arith.subf %156, %159 : vector<4x16x16xf32>
      %161 = math.exp %160 : vector<4x16x16xf32>
      %cst_76 = arith.constant dense<0.000000e+00> : vector<4x16xf32>
      %162 = vector.multi_reduction <add>, %161, %cst_76 [2] : vector<4x16x16xf32> to vector<4x16xf32>
      %163 = vector.shape_cast %162 : vector<4x16xf32> to vector<4x16x1xf32>
      %164 = tpu.reciprocal %163 {approx = true} : vector<4x16x1xf32> -> vector<4x16x1xf32>
      %165 = vector.broadcast %164 : vector<4x16x1xf32> to vector<4x16x16xf32>
      %166 = arith.mulf %161, %165 : vector<4x16x16xf32>
      %167 = vector.shape_cast %135 : vector<16x32xf32> to vector<1x16x32xf32>
      %168 = vector.shape_cast %10 : vector<4x32xf32> to vector<4x1x32xf32>
      %169 = vector.broadcast %167 : vector<1x16x32xf32> to vector<4x16x32xf32>
      %170 = vector.broadcast %168 : vector<4x1x32xf32> to vector<4x16x32xf32>
      %171 = arith.mulf %169, %170 : vector<4x16x32xf32>
      %172 = arith.truncf %171 : vector<4x16x32xf32> to vector<4x16x32xbf16>
      %173 = arith.truncf %166 : vector<4x16x16xf32> to vector<4x16x16xbf16>
      %cst_77 = arith.constant dense<0.000000e+00> : vector<4x16x32xf32>
      %174 = tpu.matmul %173, %172, %cst_77 {dimension_numbers = #tpu.dot_dimension_numbers<[2], [1], [1], [2], [0, 0, 0, 1, 1, 2], [0], [0]>} : vector<4x16x16xbf16>, vector<4x16x32xbf16>, vector<4x16x32xf32> -> vector<4x16x32xf32>
      %cst_78 = arith.constant dense<0.000000e+00> : vector<16x32xf32>
      %175 = vector.multi_reduction <add>, %174, %cst_78 [0] : vector<4x16x32xf32> to vector<16x32xf32>
      %176 = vector.extract_strided_slice %132 {offsets = [0, 0], sizes = [1, 32], strides = [1, 1]} : vector<3x32xf32> to vector<1x32xf32>
      %177 = vector.broadcast %176 : vector<1x32xf32> to vector<16x32xf32>
      %178 = arith.addf %175, %177 : vector<16x32xf32>
      %cst_79 = arith.constant 0.000000e+00 : f32
      %179 = vector.broadcast %cst_79 : f32 to vector<16x32xf32>
      %180 = arith.maximumf %178, %179 : vector<16x32xf32>
      %181 = vector.extract_strided_slice %132 {offsets = [1, 0], sizes = [1, 32], strides = [1, 1]} : vector<3x32xf32> to vector<1x32xf32>
      %182 = vector.broadcast %181 : vector<1x32xf32> to vector<16x32xf32>
      %183 = arith.mulf %180, %182 : vector<16x32xf32>
      %184 = vector.extract_strided_slice %132 {offsets = [2, 0], sizes = [1, 32], strides = [1, 1]} : vector<3x32xf32> to vector<1x32xf32>
      %185 = vector.broadcast %184 : vector<1x32xf32> to vector<16x32xf32>
      %186 = arith.addf %183, %185 : vector<16x32xf32>
      %187 = arith.addf %186, %130 : vector<16x32xf32>
      %cst_80 = arith.constant dense<0.000000e+00> : vector<2x32xf32>
      %188 = tpu.matmul %0, %187, %cst_80 {dimension_numbers = #tpu.dot_dimension_numbers<[1], [0], [0], [1], [0, 0, 1, 1], [], []>} : vector<2x16xf32>, vector<16x32xf32>, vector<2x32xf32> -> vector<2x32xf32>
      %c0_81 = arith.constant 0 : index
      %c0_82 = arith.constant 0 : index
      %189 = vector.load %arg21[%c0_81, %c0_82] : memref<32x2xf32, #tpu.memory_space<vmem>>, vector<32x2xf32>
      %cst_83 = arith.constant dense<0.000000e+00> : vector<2x2xf32>
      %190 = tpu.matmul %188, %189, %cst_83 {dimension_numbers = #tpu.dot_dimension_numbers<[1], [0], [0], [1], [0, 0, 1, 1], [], []>} : vector<2x32xf32>, vector<32x2xf32>, vector<2x2xf32> -> vector<2x2xf32>
      %c0_84 = arith.constant 0 : index
      %c0_85 = arith.constant 0 : index
      %191 = vector.load %arg22[%c0_84, %c0_85] : memref<1x2xf32, #tpu.memory_space<vmem>>, vector<1x2xf32>
      %192 = vector.broadcast %191 : vector<1x2xf32> to vector<2x2xf32>
      %193 = arith.addf %190, %192 : vector<2x2xf32>
      %c0_86 = arith.constant 0 : index
      %c0_87 = arith.constant 0 : index
      %c0_88 = arith.constant 0 : index
      %194 = vector.load %arg23[%c0_86, %c0_87, %c0_88] : memref<1x2x2xf32, #tpu.memory_space<vmem>>, vector<1x2x2xf32>
      %195 = vector.shape_cast %194 : vector<1x2x2xf32> to vector<2x2xf32>
      %196 = vector.shape_cast %193 : vector<2x2xf32> to vector<1x2x2xf32>
      tpu.vector_store %arg23[%c0_86, %c0_87, %c0_88], %196 {strides = array<i32>} : memref<1x2x2xf32, #tpu.memory_space<vmem>>, vector<1x2x2xf32>,
    } else {
    }
    return
  }
  func.func @transform_0(%arg0: i32) -> (i32, i32) {
    %c0_i32 = arith.constant 0 : i32
    %c0_i32_0 = arith.constant 0 : i32
    %c0_i32_1 = arith.constant 0 : i32
    return %c0_i32, %c0_i32_0 : i32, i32
  }
  func.func @transform_1(%arg0: i32) -> (i32, i32) {
    %c0_i32 = arith.constant 0 : i32
    %c0_i32_0 = arith.constant 0 : i32
    %c0_i32_1 = arith.constant 0 : i32
    return %c0_i32, %c0_i32_0 : i32, i32
  }
  func.func @transform_2(%arg0: i32) -> (i32, i32) {
    %c0_i32 = arith.constant 0 : i32
    %c0_i32_0 = arith.constant 0 : i32
    %c0_i32_1 = arith.constant 0 : i32
    return %c0_i32, %c0_i32_0 : i32, i32
  }
  func.func @transform_3(%arg0: i32) -> (i32, i32) {
    %c0_i32 = arith.constant 0 : i32
    %c0_i32_0 = arith.constant 0 : i32
    %c0_i32_1 = arith.constant 0 : i32
    return %c0_i32, %c0_i32_0 : i32, i32
  }
  func.func @transform_4(%arg0: i32) -> (i32, i32) {
    %c0_i32 = arith.constant 0 : i32
    %c0_i32_0 = arith.constant 0 : i32
    %c0_i32_1 = arith.constant 0 : i32
    return %c0_i32, %c0_i32_0 : i32, i32
  }
  func.func @transform_5(%arg0: i32) -> (i32, i32, i32) {
    %c0_i32 = arith.constant 0 : i32
    %c0_i32_0 = arith.constant 0 : i32
    %c0_i32_1 = arith.constant 0 : i32
    %c0_i32_2 = arith.constant 0 : i32
    return %c0_i32, %c0_i32_0, %c0_i32_1 : i32, i32, i32
  }
  func.func @transform_6(%arg0: i32) -> (i32, i32, i32) {
    %c0_i32 = arith.constant 0 : i32
    %c0_i32_0 = arith.constant 0 : i32
    %c0_i32_1 = arith.constant 0 : i32
    %c0_i32_2 = arith.constant 0 : i32
    return %c0_i32, %c0_i32_0, %c0_i32_1 : i32, i32, i32
  }
  func.func @transform_7(%arg0: i32) -> (i32, i32) {
    %c0_i32 = arith.constant 0 : i32
    %c0_i32_0 = arith.constant 0 : i32
    %c0_i32_1 = arith.constant 0 : i32
    return %c0_i32, %c0_i32_0 : i32, i32
  }
  func.func @transform_8(%arg0: i32) -> (i32, i32) {
    %c0_i32 = arith.constant 0 : i32
    %c0_i32_0 = arith.constant 0 : i32
    %c0_i32_1 = arith.constant 0 : i32
    return %c0_i32, %c0_i32_0 : i32, i32
  }
  func.func @transform_9(%arg0: i32) -> (i32, i32) {
    %c0_i32 = arith.constant 0 : i32
    %c0_i32_0 = arith.constant 0 : i32
    %c0_i32_1 = arith.constant 0 : i32
    return %c0_i32, %c0_i32_0 : i32, i32
  }
  func.func @transform_10(%arg0: i32) -> (i32, i32) {
    %c0_i32 = arith.constant 0 : i32
    %c0_i32_0 = arith.constant 0 : i32
    %c0_i32_1 = arith.constant 0 : i32
    return %c0_i32, %c0_i32_0 : i32, i32
  }
  func.func @transform_11(%arg0: i32) -> (i32, i32) {
    %c0_i32 = arith.constant 0 : i32
    %c0_i32_0 = arith.constant 0 : i32
    %c0_i32_1 = arith.constant 0 : i32
    return %c0_i32, %c0_i32_0 : i32, i32
  }
  func.func @transform_12(%arg0: i32) -> (i32, i32) {
    %c0_i32 = arith.constant 0 : i32
    %c0_i32_0 = arith.constant 0 : i32
    %c0_i32_1 = arith.constant 0 : i32
    return %c0_i32, %c0_i32_0 : i32, i32
  }
  func.func @transform_13(%arg0: i32) -> (i32, i32) {
    %c0_i32 = arith.constant 0 : i32
    %c0_i32_0 = arith.constant 0 : i32
    %c0_i32_1 = arith.constant 0 : i32
    return %c0_i32, %c0_i32_0 : i32, i32
  }
  func.func @transform_14(%arg0: i32) -> (i32, i32) {
    %c0_i32 = arith.constant 0 : i32
    %c0_i32_0 = arith.constant 0 : i32
    %c0_i32_1 = arith.constant 0 : i32
    return %c0_i32, %c0_i32_0 : i32, i32
  }
  func.func @transform_15(%arg0: i32) -> (i32, i32, i32) {
    %c0_i32 = arith.constant 0 : i32
    %c0_i32_0 = arith.constant 0 : i32
    %c0_i32_1 = arith.constant 0 : i32
    %c0_i32_2 = arith.constant 0 : i32
    return %c0_i32, %c0_i32_0, %c0_i32_1 : i32, i32, i32
  }
  func.func @transform_16(%arg0: i32) -> (i32, i32, i32) {
    %c0_i32 = arith.constant 0 : i32
    %c0_i32_0 = arith.constant 0 : i32
    %c0_i32_1 = arith.constant 0 : i32
    %c0_i32_2 = arith.constant 0 : i32
    return %c0_i32, %c0_i32_0, %c0_i32_1 : i32, i32, i32
  }
  func.func @transform_17(%arg0: i32) -> (i32, i32, i32) {
    %c0_i32 = arith.constant 0 : i32
    %c0_i32_0 = arith.constant 0 : i32
    %c0_i32_1 = arith.constant 0 : i32
    %c0_i32_2 = arith.constant 0 : i32
    return %c0_i32, %c0_i32_0, %c0_i32_1 : i32, i32, i32
  }
  func.func @transform_18(%arg0: i32) -> (i32, i32, i32) {
    %c0_i32 = arith.constant 0 : i32
    %c0_i32_0 = arith.constant 0 : i32
    %c0_i32_1 = arith.constant 0 : i32
    %c0_i32_2 = arith.constant 0 : i32
    return %c0_i32, %c0_i32_0, %c0_i32_1 : i32, i32, i32
  }
  func.func @transform_19(%arg0: i32) -> (i32, i32) {
    %c0_i32 = arith.constant 0 : i32
    %c0_i32_0 = arith.constant 0 : i32
    %c0_i32_1 = arith.constant 0 : i32
    return %c0_i32, %c0_i32_0 : i32, i32
  }
  func.func @transform_20(%arg0: i32) -> (i32, i32) {
    %c0_i32 = arith.constant 0 : i32
    %c0_i32_0 = arith.constant 0 : i32
    %c0_i32_1 = arith.constant 0 : i32
    return %c0_i32, %c0_i32_0 : i32, i32
  }
  func.func @transform_21(%arg0: i32) -> (i32, i32) {
    %c0_i32 = arith.constant 0 : i32
    %c0_i32_0 = arith.constant 0 : i32
    %c0_i32_1 = arith.constant 0 : i32
    return %c0_i32, %c0_i32_0 : i32, i32
  }
  func.func @transform_22(%arg0: i32) -> (i32, i32, i32) {
    %c0_i32 = arith.constant 0 : i32
    %c0_i32_0 = arith.constant 0 : i32
    %c0_i32_1 = arith.constant 0 : i32
    return %arg0, %c0_i32, %c0_i32_0 : i32, i32, i32
  }
}

</mosaic_0001>

<llo_original>
// kernel: ensemble_forward.1
$region0: #{ensemble_forward.1}
  #allocation0 [shape = 'u32[]', space=smem, size = 0x4, offset = 0x4, fixed_abs, tag = 'smem constant byte address 0x4 - core index']
  #allocation1 [shape = 'u32[72,128]{1,0:T(1,128)}', space=vmem, size = 0x9000, scoped, tag = 'internal scratch']
  %s0 = inlined_call_operand.vmem [shape: bf16[16,16], index: 0, kind: input, shape index: {}]
  %s1 = inlined_call_operand.vmem [shape: f32[2,16], index: 1, kind: input, shape index: {}]
  %s2 = inlined_call_operand.vmem [shape: f32[16,64], index: 2, kind: input, shape index: {}]
  %s3 = inlined_call_operand.vmem [shape: f32[16,32], index: 3, kind: input, shape index: {}]
  %s4 = inlined_call_operand.vmem [shape: f32[2,64], index: 4, kind: input, shape index: {}]
  %s5 = inlined_call_operand.hbm [shape: f32[4,64,64], index: 5, kind: input, shape index: {}]
  %s6 = inlined_call_operand.vmem [shape: f32[4,3,64], index: 6, kind: input, shape index: {}]
  %s7 = inlined_call_operand.vmem [shape: f32[64,32], index: 7, kind: input, shape index: {}]
  %s8 = inlined_call_operand.vmem [shape: f32[1,32], index: 8, kind: input, shape index: {}]
  %s9 = inlined_call_operand.vmem [shape: f32[32,2], index: 9, kind: input, shape index: {}]
  %s10 = inlined_call_operand.vmem [shape: f32[1,2], index: 10, kind: input, shape index: {}]
  %s11 = inlined_call_operand.vmem [shape: f32[2,64], index: 11, kind: input, shape index: {}]
  %s12 = inlined_call_operand.vmem [shape: f32[64,2], index: 12, kind: input, shape index: {}]
  %s13 = inlined_call_operand.vmem [shape: f32[1,2], index: 13, kind: input, shape index: {}]
  %s14 = inlined_call_operand.vmem [shape: f32[2,32], index: 14, kind: input, shape index: {}]
  %s15 = inlined_call_operand.vmem [shape: f32[3,32,32], index: 15, kind: input, shape index: {}]
  %s16 = inlined_call_operand.vmem [shape: f32[3,4,32], index: 16, kind: input, shape index: {}]
  %s17 = inlined_call_operand.vmem [shape: f32[3,4,32], index: 17, kind: input, shape index: {}]
  %s18 = inlined_call_operand.vmem [shape: f32[3,3,32], index: 18, kind: input, shape index: {}]
  %s19 = inlined_call_operand.vmem [shape: f32[4,32], index: 19, kind: input, shape index: {}]
  %s20 = inlined_call_operand.vmem [shape: f32[32,2], index: 20, kind: input, shape index: {}]
  %s21 = inlined_call_operand.vmem [shape: f32[1,2], index: 21, kind: input, shape index: {}]
  %s22 = inlined_call_operand.vmem [shape: f32[2,2,2], index: 22, kind: output, shape index: {}]
  %s23 = sld [smem:[#allocation0]]
  $region133: #{ensemble_forward.1} parent=0
    _
  %s25 = ssub.s32 1, %s23
  %s26 = scalar_select 0, %s25, %s23
  $region1: #{ensemble_forward.1} parent=0
    #allocation2 [shape = 'u8[131072]{0}', space=vmem, size = 0x20000, scoped, tag = 'input window, operand 5, single buffered']
    #allocation3 [shape = 's32[2]{0}', space=sflag, size = 0x8, scoped, tag = 'scoped memory for ensemble_forward.1']
    %27 = vsyncpa [#allocation3], 0
    loop: start=0, step=1, limit=4
    $region2: #{ensemble_forward.1} parent=1 // loop_pre_header
      _
    $region3: #{ensemble_forward.1} parent=1 // loop_header
      %s29 = sphi 0, %s33
      %p30 = scmp.ge.s32.totalorder %s29, 4
      %s37 = sphi 0, %s37
      %s39 = sphi 0, %s37
      %s40 = sphi 0, %s39
      %s54 = sphi 0, %s40
      %s58 = sphi 0, %s58
      %s60 = sphi 0, %s58
      %s61 = sphi 0, %s60
      %s75 = sphi 0, %s61
      %s79 = sphi 0, %s79
      %s81 = sphi 0, %s79
      %s82 = sphi 0, %s81
      %s96 = sphi 0, %s82
      %s100 = sphi 0, %s100
      %s102 = sphi 0, %s100
      %s103 = sphi 0, %s102
      %s117 = sphi 0, %s103
      %s121 = sphi 0, %s121
      %s123 = sphi 0, %s121
      %s124 = sphi 0, %s123
      %s138 = sphi 0, %s124
      %s142 = sphi 0, %s142
      %s144 = sphi 0, %s142
      %s145 = sphi 0, %s144
      %s159 = sphi 0, %s145
      %s163 = sphi 0, %s163
      %s165 = sphi 0, %s163
      %s166 = sphi 0, %s165
      %s180 = sphi 0, %s166
      %s184 = sphi 0, %s184
      %s186 = sphi 0, %s184
      %s187 = sphi 0, %s186
      %s201 = sphi 0, %s187
      %s205 = sphi 0, %s205
      %s207 = sphi 0, %s205
      %s208 = sphi 0, %s207
      %s222 = sphi 0, %s208
      %s226 = sphi 0, %s226
      %s228 = sphi 0, %s226
      %s229 = sphi 0, %s228
      %s243 = sphi 0, %s229
      %s247 = sphi 0, %s247
      %s249 = sphi 0, %s247
      %s250 = sphi 0, %s249
      %s264 = sphi 0, %s250
      %s268 = sphi 0, %s268
      %s270 = sphi 0, %s268
      %s271 = sphi 0, %s270
      %s285 = sphi 0, %s271
      %s289 = sphi 0, %s289
      %s291 = sphi 0, %s289
      %s292 = sphi 0, %s291
      %s306 = sphi 0, %s292
      %s310 = sphi 0, %s310
      %s312 = sphi 0, %s310
      %s313 = sphi 0, %s312
      %s327 = sphi 0, %s313
      %s331 = sphi 0, %s331
      %s333 = sphi 0, %s331
      %s334 = sphi 0, %s333
      %s348 = sphi 0, %s334
      %s352 = sphi 0, %s352
      %s354 = sphi 0, %s352
      %s355 = sphi 0, %s354
      %s369 = sphi 0, %s355
      %s373 = sphi 0, %s373
      %s375 = sphi 0, %s373
      %s376 = sphi 0, %s375
      %s390 = sphi 0, %s376
      %s394 = sphi 0, %s394
      %s396 = sphi 0, %s394
      %s397 = sphi 0, %s396
      %s411 = sphi 0, %s397
      %s415 = sphi 0, %s415
      %s417 = sphi 0, %s415
      %s418 = sphi 0, %s417
      %s432 = sphi 0, %s418
      %s436 = sphi 0, %s436
      %s438 = sphi 0, %s436
      %s439 = sphi 0, %s438
      %s453 = sphi 0, %s439
      %s457 = sphi 0, %s457
      %s459 = sphi 0, %s457
      %s460 = sphi 0, %s459
      %s474 = sphi 0, %s460
      %s478 = sphi 0, %s478
      %s480 = sphi 0, %s478
      %s481 = sphi 0, %s480
      %s495 = sphi 0, %s481
      %s501 = sphi 0, %s503
      %s504 = sphi 0, %s501
      %s505 = sphi 0, %s504
      %s521 = sphi 0, %s505
    $region4: #{ensemble_forward.1} parent=1 // loop_header_branch
      %32 = sbr.rel (%p30) target = $region8
    $region5: #{ensemble_forward.1} parent=1 // loop_body
      %s34 = ssub.s32 %s29, 1
      %s35 = ssub.s32 %s29, 2
      %s36 = sadd.s32 %s29, 1
      %s38 = sadd.s32 %s37, 1
      %p41 = scmp.eq.s32.totalorder %s29, 1
      %p42 = scmp.ne.s32.totalorder %s37, %s39
      %p43 = scmp.eq.s32.totalorder %s29, 0
      %p44 = por %p42, %p43
      %p45 = scmp.ne.s32.totalorder %s37, %s39
      %p46 = scmp.eq.s32.totalorder %s34, 1
      %p47 = por %p45, %p46
      %p48 = scmp.ne.s32.totalorder %s39, %s40
      %p49 = scmp.eq.s32.totalorder %s34, 0
      %p50 = por %p48, %p49
      %p51 = scmp.ne.s32.totalorder %s39, %s40
      %p52 = scmp.eq.s32.totalorder %s35, 1
      %p53 = por %p51, %p52
      %p55 = scmp.ne.s32.totalorder %s40, %s54
      %p56 = scmp.eq.s32.totalorder %s35, 0
      %p57 = por %p55, %p56
      %s59 = sadd.s32 %s58, 1
      %p62 = scmp.eq.s32.totalorder %s29, 1
      %p63 = scmp.ne.s32.totalorder %s58, %s60
      %p64 = scmp.eq.s32.totalorder %s29, 0
      %p65 = por %p63, %p64
      %p66 = scmp.ne.s32.totalorder %s58, %s60
      %p67 = scmp.eq.s32.totalorder %s34, 1
      %p68 = por %p66, %p67
      %p69 = scmp.ne.s32.totalorder %s60, %s61
      %p70 = scmp.eq.s32.totalorder %s34, 0
      %p71 = por %p69, %p70
      %p72 = scmp.ne.s32.totalorder %s60, %s61
      %p73 = scmp.eq.s32.totalorder %s35, 1
      %p74 = por %p72, %p73
      %p76 = scmp.ne.s32.totalorder %s61, %s75
      %p77 = scmp.eq.s32.totalorder %s35, 0
      %p78 = por %p76, %p77
      %s80 = sadd.s32 %s79, 1
      %p83 = scmp.eq.s32.totalorder %s29, 1
      %p84 = scmp.ne.s32.totalorder %s79, %s81
      %p85 = scmp.eq.s32.totalorder %s29, 0
      %p86 = por %p84, %p85
      %p87 = scmp.ne.s32.totalorder %s79, %s81
      %p88 = scmp.eq.s32.totalorder %s34, 1
      %p89 = por %p87, %p88
      %p90 = scmp.ne.s32.totalorder %s81, %s82
      %p91 = scmp.eq.s32.totalorder %s34, 0
      %p92 = por %p90, %p91
      %p93 = scmp.ne.s32.totalorder %s81, %s82
      %p94 = scmp.eq.s32.totalorder %s35, 1
      %p95 = por %p93, %p94
      %p97 = scmp.ne.s32.totalorder %s82, %s96
      %p98 = scmp.eq.s32.totalorder %s35, 0
      %p99 = por %p97, %p98
      %s101 = sadd.s32 %s100, 1
      %p104 = scmp.eq.s32.totalorder %s29, 1
      %p105 = scmp.ne.s32.totalorder %s100, %s102
      %p106 = scmp.eq.s32.totalorder %s29, 0
      %p107 = por %p105, %p106
      %p108 = scmp.ne.s32.totalorder %s100, %s102
      %p109 = scmp.eq.s32.totalorder %s34, 1
      %p110 = por %p108, %p109
      %p111 = scmp.ne.s32.totalorder %s102, %s103
      %p112 = scmp.eq.s32.totalorder %s34, 0
      %p113 = por %p111, %p112
      %p114 = scmp.ne.s32.totalorder %s102, %s103
      %p115 = scmp.eq.s32.totalorder %s35, 1
      %p116 = por %p114, %p115
      %p118 = scmp.ne.s32.totalorder %s103, %s117
      %p119 = scmp.eq.s32.totalorder %s35, 0
      %p120 = por %p118, %p119
      %s122 = sadd.s32 %s121, 1
      %p125 = scmp.eq.s32.totalorder %s29, 1
      %p126 = scmp.ne.s32.totalorder %s121, %s123
      %p127 = scmp.eq.s32.totalorder %s29, 0
      %p128 = por %p126, %p127
      %p129 = scmp.ne.s32.totalorder %s121, %s123
      %p130 = scmp.eq.s32.totalorder %s34, 1
      %p131 = por %p129, %p130
      %p132 = scmp.ne.s32.totalorder %s123, %s124
      %p133 = scmp.eq.s32.totalorder %s34, 0
      %p134 = por %p132, %p133
      %p135 = scmp.ne.s32.totalorder %s123, %s124
      %p136 = scmp.eq.s32.totalorder %s35, 1
      %p137 = por %p135, %p136
      %p139 = scmp.ne.s32.totalorder %s124, %s138
      %p140 = scmp.eq.s32.totalorder %s35, 0
      %p141 = por %p139, %p140
      %s143 = sadd.s32 %s142, 1
      %p146 = scmp.eq.s32.totalorder %s29, 1
      %p147 = scmp.ne.s32.totalorder %s142, %s144
      %p148 = scmp.eq.s32.totalorder %s29, 0
      %p149 = por %p147, %p148
      %p150 = scmp.ne.s32.totalorder %s142, %s144
      %p151 = scmp.eq.s32.totalorder %s34, 1
      %p152 = por %p150, %p151
      %p153 = scmp.ne.s32.totalorder %s144, %s145
      %p154 = scmp.eq.s32.totalorder %s34, 0
      %p155 = por %p153, %p154
      %p156 = scmp.ne.s32.totalorder %s144, %s145
      %p157 = scmp.eq.s32.totalorder %s35, 1
      %p158 = por %p156, %p157
      %p160 = scmp.ne.s32.totalorder %s145, %s159
      %p161 = scmp.eq.s32.totalorder %s35, 0
      %p162 = por %p160, %p161
      %s164 = sadd.s32 %s163, 1
      %p167 = scmp.eq.s32.totalorder %s29, 1
      %p168 = scmp.ne.s32.totalorder %s163, %s165
      %p169 = scmp.eq.s32.totalorder %s29, 0
      %p170 = por %p168, %p169
      %p171 = scmp.ne.s32.totalorder %s163, %s165
      %p172 = scmp.eq.s32.totalorder %s34, 1
      %p173 = por %p171, %p172
      %p174 = scmp.ne.s32.totalorder %s165, %s166
      %p175 = scmp.eq.s32.totalorder %s34, 0
      %p176 = por %p174, %p175
      %p177 = scmp.ne.s32.totalorder %s165, %s166
      %p178 = scmp.eq.s32.totalorder %s35, 1
      %p179 = por %p177, %p178
      %p181 = scmp.ne.s32.totalorder %s166, %s180
      %p182 = scmp.eq.s32.totalorder %s35, 0
      %p183 = por %p181, %p182
      %s185 = sadd.s32 %s184, 1
      %p188 = scmp.eq.s32.totalorder %s29, 1
      %p189 = scmp.ne.s32.totalorder %s184, %s186
      %p190 = scmp.eq.s32.totalorder %s29, 0
      %p191 = por %p189, %p190
      %p192 = scmp.ne.s32.totalorder %s184, %s186
      %p193 = scmp.eq.s32.totalorder %s34, 1
      %p194 = por %p192, %p193
      %p195 = scmp.ne.s32.totalorder %s186, %s187
      %p196 = scmp.eq.s32.totalorder %s34, 0
      %p197 = por %p195, %p196
      %p198 = scmp.ne.s32.totalorder %s186, %s187
      %p199 = scmp.eq.s32.totalorder %s35, 1
      %p200 = por %p198, %p199
      %p202 = scmp.ne.s32.totalorder %s187, %s201
      %p203 = scmp.eq.s32.totalorder %s35, 0
      %p204 = por %p202, %p203
      %s206 = sadd.s32 %s205, 1
      %p209 = scmp.eq.s32.totalorder %s29, 1
      %p210 = scmp.ne.s32.totalorder %s205, %s207
      %p211 = scmp.eq.s32.totalorder %s29, 0
      %p212 = por %p210, %p211
      %p213 = scmp.ne.s32.totalorder %s205, %s207
      %p214 = scmp.eq.s32.totalorder %s34, 1
      %p215 = por %p213, %p214
      %p216 = scmp.ne.s32.totalorder %s207, %s208
      %p217 = scmp.eq.s32.totalorder %s34, 0
      %p218 = por %p216, %p217
      %p219 = scmp.ne.s32.totalorder %s207, %s208
      %p220 = scmp.eq.s32.totalorder %s35, 1
      %p221 = por %p219, %p220
      %p223 = scmp.ne.s32.totalorder %s208, %s222
      %p224 = scmp.eq.s32.totalorder %s35, 0
      %p225 = por %p223, %p224
      %s227 = sadd.s32 %s226, 1
      %p230 = scmp.eq.s32.totalorder %s29, 1
      %p231 = scmp.ne.s32.totalorder %s226, %s228
      %p232 = scmp.eq.s32.totalorder %s29, 0
      %p233 = por %p231, %p232
      %p234 = scmp.ne.s32.totalorder %s226, %s228
      %p235 = scmp.eq.s32.totalorder %s34, 1
      %p236 = por %p234, %p235
      %p237 = scmp.ne.s32.totalorder %s228, %s229
      %p238 = scmp.eq.s32.totalorder %s34, 0
      %p239 = por %p237, %p238
      %p240 = scmp.ne.s32.totalorder %s228, %s229
      %p241 = scmp.eq.s32.totalorder %s35, 1
      %p242 = por %p240, %p241
      %p244 = scmp.ne.s32.totalorder %s229, %s243
      %p245 = scmp.eq.s32.totalorder %s35, 0
      %p246 = por %p244, %p245
      %s248 = sadd.s32 %s247, 1
      %p251 = scmp.eq.s32.totalorder %s29, 1
      %p252 = scmp.ne.s32.totalorder %s247, %s249
      %p253 = scmp.eq.s32.totalorder %s29, 0
      %p254 = por %p252, %p253
      %p255 = scmp.ne.s32.totalorder %s247, %s249
      %p256 = scmp.eq.s32.totalorder %s34, 1
      %p257 = por %p255, %p256
      %p258 = scmp.ne.s32.totalorder %s249, %s250
      %p259 = scmp.eq.s32.totalorder %s34, 0
      %p260 = por %p258, %p259
      %p261 = scmp.ne.s32.totalorder %s249, %s250
      %p262 = scmp.eq.s32.totalorder %s35, 1
      %p263 = por %p261, %p262
      %p265 = scmp.ne.s32.totalorder %s250, %s264
      %p266 = scmp.eq.s32.totalorder %s35, 0
      %p267 = por %p265, %p266
      %s269 = sadd.s32 %s268, 1
      %p272 = scmp.eq.s32.totalorder %s29, 1
      %p273 = scmp.ne.s32.totalorder %s268, %s270
      %p274 = scmp.eq.s32.totalorder %s29, 0
      %p275 = por %p273, %p274
      %p276 = scmp.ne.s32.totalorder %s268, %s270
      %p277 = scmp.eq.s32.totalorder %s34, 1
      %p278 = por %p276, %p277
      %p279 = scmp.ne.s32.totalorder %s270, %s271
      %p280 = scmp.eq.s32.totalorder %s34, 0
      %p281 = por %p279, %p280
      %p282 = scmp.ne.s32.totalorder %s270, %s271
      %p283 = scmp.eq.s32.totalorder %s35, 1
      %p284 = por %p282, %p283
      %p286 = scmp.ne.s32.totalorder %s271, %s285
      %p287 = scmp.eq.s32.totalorder %s35, 0
      %p288 = por %p286, %p287
      %s290 = sadd.s32 %s289, 1
      %p293 = scmp.eq.s32.totalorder %s29, 1
      %p294 = scmp.ne.s32.totalorder %s289, %s291
      %p295 = scmp.eq.s32.totalorder %s29, 0
      %p296 = por %p294, %p295
      %p297 = scmp.ne.s32.totalorder %s289, %s291
      %p298 = scmp.eq.s32.totalorder %s34, 1
      %p299 = por %p297, %p298
      %p300 = scmp.ne.s32.totalorder %s291, %s292
      %p301 = scmp.eq.s32.totalorder %s34, 0
      %p302 = por %p300, %p301
      %p303 = scmp.ne.s32.totalorder %s291, %s292
      %p304 = scmp.eq.s32.totalorder %s35, 1
      %p305 = por %p303, %p304
      %p307 = scmp.ne.s32.totalorder %s292, %s306
      %p308 = scmp.eq.s32.totalorder %s35, 0
      %p309 = por %p307, %p308
      %s311 = sadd.s32 %s310, 1
      %p314 = scmp.eq.s32.totalorder %s29, 1
      %p315 = scmp.ne.s32.totalorder %s310, %s312
      %p316 = scmp.eq.s32.totalorder %s29, 0
      %p317 = por %p315, %p316
      %p318 = scmp.ne.s32.totalorder %s310, %s312
      %p319 = scmp.eq.s32.totalorder %s34, 1
      %p320 = por %p318, %p319
      %p321 = scmp.ne.s32.totalorder %s312, %s313
      %p322 = scmp.eq.s32.totalorder %s34, 0
      %p323 = por %p321, %p322
      %p324 = scmp.ne.s32.totalorder %s312, %s313
      %p325 = scmp.eq.s32.totalorder %s35, 1
      %p326 = por %p324, %p325
      %p328 = scmp.ne.s32.totalorder %s313, %s327
      %p329 = scmp.eq.s32.totalorder %s35, 0
      %p330 = por %p328, %p329
      %s332 = sadd.s32 %s331, 1
      %p335 = scmp.eq.s32.totalorder %s29, 1
      %p336 = scmp.ne.s32.totalorder %s331, %s333
      %p337 = scmp.eq.s32.totalorder %s29, 0
      %p338 = por %p336, %p337
      %p339 = scmp.ne.s32.totalorder %s331, %s333
      %p340 = scmp.eq.s32.totalorder %s34, 1
      %p341 = por %p339, %p340
      %p342 = scmp.ne.s32.totalorder %s333, %s334
      %p343 = scmp.eq.s32.totalorder %s34, 0
      %p344 = por %p342, %p343
      %p345 = scmp.ne.s32.totalorder %s333, %s334
      %p346 = scmp.eq.s32.totalorder %s35, 1
      %p347 = por %p345, %p346
      %p349 = scmp.ne.s32.totalorder %s334, %s348
      %p350 = scmp.eq.s32.totalorder %s35, 0
      %p351 = por %p349, %p350
      %s353 = sadd.s32 %s352, 1
      %p356 = scmp.eq.s32.totalorder %s29, 1
      %p357 = scmp.ne.s32.totalorder %s352, %s354
      %p358 = scmp.eq.s32.totalorder %s29, 0
      %p359 = por %p357, %p358
      %p360 = scmp.ne.s32.totalorder %s352, %s354
      %p361 = scmp.eq.s32.totalorder %s34, 1
      %p362 = por %p360, %p361
      %p363 = scmp.ne.s32.totalorder %s354, %s355
      %p364 = scmp.eq.s32.totalorder %s34, 0
      %p365 = por %p363, %p364
      %p366 = scmp.ne.s32.totalorder %s354, %s355
      %p367 = scmp.eq.s32.totalorder %s35, 1
      %p368 = por %p366, %p367
      %p370 = scmp.ne.s32.totalorder %s355, %s369
      %p371 = scmp.eq.s32.totalorder %s35, 0
      %p372 = por %p370, %p371
      %s374 = sadd.s32 %s373, 1
      %p377 = scmp.eq.s32.totalorder %s29, 1
      %p378 = scmp.ne.s32.totalorder %s373, %s375
      %p379 = scmp.eq.s32.totalorder %s29, 0
      %p380 = por %p378, %p379
      %p381 = scmp.ne.s32.totalorder %s373, %s375
      %p382 = scmp.eq.s32.totalorder %s34, 1
      %p383 = por %p381, %p382
      %p384 = scmp.ne.s32.totalorder %s375, %s376
      %p385 = scmp.eq.s32.totalorder %s34, 0
      %p386 = por %p384, %p385
      %p387 = scmp.ne.s32.totalorder %s375, %s376
      %p388 = scmp.eq.s32.totalorder %s35, 1
      %p389 = por %p387, %p388
      %p391 = scmp.ne.s32.totalorder %s376, %s390
      %p392 = scmp.eq.s32.totalorder %s35, 0
      %p393 = por %p391, %p392
      %s395 = sadd.s32 %s394, 1
      %p398 = scmp.eq.s32.totalorder %s29, 1
      %p399 = scmp.ne.s32.totalorder %s394, %s396
      %p400 = scmp.eq.s32.totalorder %s29, 0
      %p401 = por %p399, %p400
      %p402 = scmp.ne.s32.totalorder %s394, %s396
      %p403 = scmp.eq.s32.totalorder %s34, 1
      %p404 = por %p402, %p403
      %p405 = scmp.ne.s32.totalorder %s396, %s397
      %p406 = scmp.eq.s32.totalorder %s34, 0
      %p407 = por %p405, %p406
      %p408 = scmp.ne.s32.totalorder %s396, %s397
      %p409 = scmp.eq.s32.totalorder %s35, 1
      %p410 = por %p408, %p409
      %p412 = scmp.ne.s32.totalorder %s397, %s411
      %p413 = scmp.eq.s32.totalorder %s35, 0
      %p414 = por %p412, %p413
      %s416 = sadd.s32 %s415, 1
      %p419 = scmp.eq.s32.totalorder %s29, 1
      %p420 = scmp.ne.s32.totalorder %s415, %s417
      %p421 = scmp.eq.s32.totalorder %s29, 0
      %p422 = por %p420, %p421
      %p423 = scmp.ne.s32.totalorder %s415, %s417
      %p424 = scmp.eq.s32.totalorder %s34, 1
      %p425 = por %p423, %p424
      %p426 = scmp.ne.s32.totalorder %s417, %s418
      %p427 = scmp.eq.s32.totalorder %s34, 0
      %p428 = por %p426, %p427
      %p429 = scmp.ne.s32.totalorder %s417, %s418
      %p430 = scmp.eq.s32.totalorder %s35, 1
      %p431 = por %p429, %p430
      %p433 = scmp.ne.s32.totalorder %s418, %s432
      %p434 = scmp.eq.s32.totalorder %s35, 0
      %p435 = por %p433, %p434
      %s437 = sadd.s32 %s436, 1
      %p440 = scmp.eq.s32.totalorder %s29, 1
      %p441 = scmp.ne.s32.totalorder %s436, %s438
      %p442 = scmp.eq.s32.totalorder %s29, 0
      %p443 = por %p441, %p442
      %p444 = scmp.ne.s32.totalorder %s436, %s438
      %p445 = scmp.eq.s32.totalorder %s34, 1
      %p446 = por %p444, %p445
      %p447 = scmp.ne.s32.totalorder %s438, %s439
      %p448 = scmp.eq.s32.totalorder %s34, 0
      %p449 = por %p447, %p448
      %p450 = scmp.ne.s32.totalorder %s438, %s439
      %p451 = scmp.eq.s32.totalorder %s35, 1
      %p452 = por %p450, %p451
      %p454 = scmp.ne.s32.totalorder %s439, %s453
      %p455 = scmp.eq.s32.totalorder %s35, 0
      %p456 = por %p454, %p455
      %s458 = sadd.s32 %s457, 1
      %p461 = scmp.eq.s32.totalorder %s29, 1
      %p462 = scmp.ne.s32.totalorder %s457, %s459
      %p463 = scmp.eq.s32.totalorder %s29, 0
      %p464 = por %p462, %p463
      %p465 = scmp.ne.s32.totalorder %s457, %s459
      %p466 = scmp.eq.s32.totalorder %s34, 1
      %p467 = por %p465, %p466
      %p468 = scmp.ne.s32.totalorder %s459, %s460
      %p469 = scmp.eq.s32.totalorder %s34, 0
      %p470 = por %p468, %p469
      %p471 = scmp.ne.s32.totalorder %s459, %s460
      %p472 = scmp.eq.s32.totalorder %s35, 1
      %p473 = por %p471, %p472
      %p475 = scmp.ne.s32.totalorder %s460, %s474
      %p476 = scmp.eq.s32.totalorder %s35, 0
      %p477 = por %p475, %p476
      %s479 = sadd.s32 %s478, 1
      %p482 = scmp.eq.s32.totalorder %s29, 1
      %p483 = scmp.ne.s32.totalorder %s478, %s480
      %p484 = scmp.eq.s32.totalorder %s29, 0
      %p485 = por %p483, %p484
      %p486 = scmp.ne.s32.totalorder %s478, %s480
      %p487 = scmp.eq.s32.totalorder %s34, 1
      %p488 = por %p486, %p487
      %p489 = scmp.ne.s32.totalorder %s480, %s481
      %p490 = scmp.eq.s32.totalorder %s34, 0
      %p491 = por %p489, %p490
      %p492 = scmp.ne.s32.totalorder %s480, %s481
      %p493 = scmp.eq.s32.totalorder %s35, 1
      %p494 = por %p492, %p493
      %p496 = scmp.ne.s32.totalorder %s481, %s495
      %p497 = scmp.eq.s32.totalorder %s35, 0
      %p498 = por %p496, %p497
      %s499 = ssub.s32 %s29, %s36
      %p500 = scmp.eq.s32.totalorder %s499, 0
      %s502 = sadd.s32 %s501, 1
      %s503 = scalar_select %p500, %s501, %s502
      %p506 = pneg %p500
      %p507 = scmp.eq.s32.totalorder %s29, 1
      %p508 = por %p506, %p507
      %p509 = scmp.ne.s32.totalorder %s501, %s504
      %p510 = scmp.eq.s32.totalorder %s29, 0
      %p511 = por %p509, %p510
      %p512 = scmp.ne.s32.totalorder %s501, %s504
      %p513 = scmp.eq.s32.totalorder %s34, 1
      %p514 = por %p512, %p513
      %p515 = scmp.ne.s32.totalorder %s504, %s505
      %p516 = scmp.eq.s32.totalorder %s34, 0
      %p517 = por %p515, %p516
      %p518 = scmp.ne.s32.totalorder %s504, %s505
      %p519 = scmp.eq.s32.totalorder %s35, 1
      %p520 = por %p518, %p519
      %p522 = scmp.ne.s32.totalorder %s505, %s521
      %p523 = scmp.eq.s32.totalorder %s35, 0
      %p524 = por %p522, %p523
      %p525 = scmp.le.s32.totalorder 1, %s29
      %p526 = scmp.lt.s32.totalorder %s29, 3
      %p527 = pnand %p525, %p526
      %p528 = pneg %p527
      // Predicated region
      $region9: #{ensemble_forward.1} parent=5 // pred_check
        _
      $region10: #{ensemble_forward.1} parent=5 // pred_check_branch
        %530 = sbr.rel (%p527) target = $region12
      $region11: #{ensemble_forward.1} parent=5 // pred_region
        %s531 = ssub.s32 %s29, 1
        // Predicated region
        $region13: #{ensemble_forward.1} parent=11 // pred_check
          %p532 = pneg %p50
        $region14: #{ensemble_forward.1} parent=11 // pred_check_branch
          %534 = sbr.rel (%p532) target = $region16
        $region15: #{ensemble_forward.1} parent=11 // pred_region
          _
        $region16: #{ensemble_forward.1} parent=11 // pred_fallthru
          _
        // Predicated region
        $region17: #{ensemble_forward.1} parent=11 // pred_check
          %p535 = pneg %p71
        $region18: #{ensemble_forward.1} parent=11 // pred_check_branch
          %537 = sbr.rel (%p535) target = $region20
        $region19: #{ensemble_forward.1} parent=11 // pred_region
          _
        $region20: #{ensemble_forward.1} parent=11 // pred_fallthru
          _
        // Predicated region
        $region21: #{ensemble_forward.1} parent=11 // pred_check
          %p538 = pneg %p92
        $region22: #{ensemble_forward.1} parent=11 // pred_check_branch
          %540 = sbr.rel (%p538) target = $region24
        $region23: #{ensemble_forward.1} parent=11 // pred_region
          _
        $region24: #{ensemble_forward.1} parent=11 // pred_fallthru
          _
        // Predicated region
        $region25: #{ensemble_forward.1} parent=11 // pred_check
          %p541 = pneg %p113
        $region26: #{ensemble_forward.1} parent=11 // pred_check_branch
          %543 = sbr.rel (%p541) target = $region28
        $region27: #{ensemble_forward.1} parent=11 // pred_region
          _
        $region28: #{ensemble_forward.1} parent=11 // pred_fallthru
          _
        // Predicated region
        $region29: #{ensemble_forward.1} parent=11 // pred_check
          %p544 = pneg %p134
        $region30: #{ensemble_forward.1} parent=11 // pred_check_branch
          %546 = sbr.rel (%p544) target = $region32
        $region31: #{ensemble_forward.1} parent=11 // pred_region
          _
        $region32: #{ensemble_forward.1} parent=11 // pred_fallthru
          _
        // Predicated region
        $region33: #{ensemble_forward.1} parent=11 // pred_check
          %p547 = pneg %p155
        $region34: #{ensemble_forward.1} parent=11 // pred_check_branch
          %549 = sbr.rel (%p547) target = $region36
        $region35: #{ensemble_forward.1} parent=11 // pred_region
          %551 = vsyncadd [#allocation3], 0
          %s552 = sshll.u32 %s5, 4
          %s553 = int_to_ptr.hbm [resolvable:$true] %s552
          %s554 = sshll.u32 [#allocation2], 4
          %s555 = int_to_ptr.vmem [resolvable:$true] %s554
          %560 = dma.hbm_to_vmem [thread:$0]  %s553, 4096, %s555, [#allocation3], 128, 128, 8
        $region36: #{ensemble_forward.1} parent=11 // pred_fallthru
          _
        // Predicated region
        $region37: #{ensemble_forward.1} parent=11 // pred_check
          %p561 = pneg %p176
        $region38: #{ensemble_forward.1} parent=11 // pred_check_branch
          %563 = sbr.rel (%p561) target = $region40
        $region39: #{ensemble_forward.1} parent=11 // pred_region
          _
        $region40: #{ensemble_forward.1} parent=11 // pred_fallthru
          _
        // Predicated region
        $region41: #{ensemble_forward.1} parent=11 // pred_check
          %p564 = pneg %p197
        $region42: #{ensemble_forward.1} parent=11 // pred_check_branch
          %566 = sbr.rel (%p564) target = $region44
        $region43: #{ensemble_forward.1} parent=11 // pred_region
          _
        $region44: #{ensemble_forward.1} parent=11 // pred_fallthru
          _
        // Predicated region
        $region45: #{ensemble_forward.1} parent=11 // pred_check
          %p567 = pneg %p218
        $region46: #{ensemble_forward.1} parent=11 // pred_check_branch
          %569 = sbr.rel (%p567) target = $region48
        $region47: #{ensemble_forward.1} parent=11 // pred_region
          _
        $region48: #{ensemble_forward.1} parent=11 // pred_fallthru
          _
        // Predicated region
        $region49: #{ensemble_forward.1} parent=11 // pred_check
          %p570 = pneg %p239
        $region50: #{ensemble_forward.1} parent=11 // pred_check_branch
          %572 = sbr.rel (%p570) target = $region52
        $region51: #{ensemble_forward.1} parent=11 // pred_region
          _
        $region52: #{ensemble_forward.1} parent=11 // pred_fallthru
          _
        // Predicated region
        $region53: #{ensemble_forward.1} parent=11 // pred_check
          %p573 = pneg %p260
        $region54: #{ensemble_forward.1} parent=11 // pred_check_branch
          %575 = sbr.rel (%p573) target = $region56
        $region55: #{ensemble_forward.1} parent=11 // pred_region
          _
        $region56: #{ensemble_forward.1} parent=11 // pred_fallthru
          _
        // Predicated region
        $region57: #{ensemble_forward.1} parent=11 // pred_check
          %p576 = pneg %p281
        $region58: #{ensemble_forward.1} parent=11 // pred_check_branch
          %578 = sbr.rel (%p576) target = $region60
        $region59: #{ensemble_forward.1} parent=11 // pred_region
          _
        $region60: #{ensemble_forward.1} parent=11 // pred_fallthru
          _
        // Predicated region
        $region61: #{ensemble_forward.1} parent=11 // pred_check
          %p579 = pneg %p302
        $region62: #{ensemble_forward.1} parent=11 // pred_check_branch
          %581 = sbr.rel (%p579) target = $region64
        $region63: #{ensemble_forward.1} parent=11 // pred_region
          _
        $region64: #{ensemble_forward.1} parent=11 // pred_fallthru
          _
        // Predicated region
        $region65: #{ensemble_forward.1} parent=11 // pred_check
          %p582 = pneg %p323
        $region66: #{ensemble_forward.1} parent=11 // pred_check_branch
          %584 = sbr.rel (%p582) target = $region68
        $region67: #{ensemble_forward.1} parent=11 // pred_region
          _
        $region68: #{ensemble_forward.1} parent=11 // pred_fallthru
          _
        // Predicated region
        $region69: #{ensemble_forward.1} parent=11 // pred_check
          %p585 = pneg %p344
        $region70: #{ensemble_forward.1} parent=11 // pred_check_branch
          %587 = sbr.rel (%p585) target = $region72
        $region71: #{ensemble_forward.1} parent=11 // pred_region
          _
        $region72: #{ensemble_forward.1} parent=11 // pred_fallthru
          _
        // Predicated region
        $region73: #{ensemble_forward.1} parent=11 // pred_check
          %p588 = pneg %p365
        $region74: #{ensemble_forward.1} parent=11 // pred_check_branch
          %590 = sbr.rel (%p588) target = $region76
        $region75: #{ensemble_forward.1} parent=11 // pred_region
          _
        $region76: #{ensemble_forward.1} parent=11 // pred_fallthru
          _
        // Predicated region
        $region77: #{ensemble_forward.1} parent=11 // pred_check
          %p591 = pneg %p386
        $region78: #{ensemble_forward.1} parent=11 // pred_check_branch
          %593 = sbr.rel (%p591) target = $region80
        $region79: #{ensemble_forward.1} parent=11 // pred_region
          _
        $region80: #{ensemble_forward.1} parent=11 // pred_fallthru
          _
        // Predicated region
        $region81: #{ensemble_forward.1} parent=11 // pred_check
          %p594 = pneg %p407
        $region82: #{ensemble_forward.1} parent=11 // pred_check_branch
          %596 = sbr.rel (%p594) target = $region84
        $region83: #{ensemble_forward.1} parent=11 // pred_region
          _
        $region84: #{ensemble_forward.1} parent=11 // pred_fallthru
          _
        // Predicated region
        $region85: #{ensemble_forward.1} parent=11 // pred_check
          %p597 = pneg %p428
        $region86: #{ensemble_forward.1} parent=11 // pred_check_branch
          %599 = sbr.rel (%p597) target = $region88
        $region87: #{ensemble_forward.1} parent=11 // pred_region
          _
        $region88: #{ensemble_forward.1} parent=11 // pred_fallthru
          _
        // Predicated region
        $region89: #{ensemble_forward.1} parent=11 // pred_check
          %p600 = pneg %p449
        $region90: #{ensemble_forward.1} parent=11 // pred_check_branch
          %602 = sbr.rel (%p600) target = $region92
        $region91: #{ensemble_forward.1} parent=11 // pred_region
          _
        $region92: #{ensemble_forward.1} parent=11 // pred_fallthru
          _
        // Predicated region
        $region93: #{ensemble_forward.1} parent=11 // pred_check
          %p603 = pneg %p470
        $region94: #{ensemble_forward.1} parent=11 // pred_check_branch
          %605 = sbr.rel (%p603) target = $region96
        $region95: #{ensemble_forward.1} parent=11 // pred_region
          _
        $region96: #{ensemble_forward.1} parent=11 // pred_fallthru
          _
        // Predicated region
        $region97: #{ensemble_forward.1} parent=11 // pred_check
          %p606 = pneg %p491
        $region98: #{ensemble_forward.1} parent=11 // pred_check_branch
          %608 = sbr.rel (%p606) target = $region100
        $region99: #{ensemble_forward.1} parent=11 // pred_region
          _
        $region100: #{ensemble_forward.1} parent=11 // pred_fallthru
          _
      $region12: #{ensemble_forward.1} parent=5 // pred_fallthru
        _
      %p609 = scmp.lt.s32.totalorder %s29, 2
      // Predicated region
      $region101: #{ensemble_forward.1} parent=5 // pred_check
        %p610 = pneg %p609
      $region102: #{ensemble_forward.1} parent=5 // pred_check_branch
        %612 = sbr.rel (%p610) target = $region104
      $region103: #{ensemble_forward.1} parent=5 // pred_region
        _
      $region104: #{ensemble_forward.1} parent=5 // pred_fallthru
        _
      %p613 = scmp.le.s32.totalorder 1, %s29
      %p614 = scmp.lt.s32.totalorder %s29, 3
      %p615 = pnand %p613, %p614
      %p616 = pneg %p615
      // Predicated region
      $region105: #{ensemble_forward.1} parent=5 // pred_check
        _
      $region106: #{ensemble_forward.1} parent=5 // pred_check_branch
        %618 = sbr.rel (%p615) target = $region108
      $region107: #{ensemble_forward.1} parent=5 // pred_region
        %s619 = ssub.s32 %s29, 1
        // Predicated region
        $region109: #{ensemble_forward.1} parent=107 // pred_check
          %p620 = pneg %p155
        $region110: #{ensemble_forward.1} parent=107 // pred_check_branch
          %622 = sbr.rel (%p620) target = $region112
        $region111: #{ensemble_forward.1} parent=107 // pred_region
          %624 = dma.done [#allocation3], 4096
        $region112: #{ensemble_forward.1} parent=107 // pred_fallthru
          _
        %p625 = pneg %p50
        %p626 = pneg %p47
        %p627 = pneg %p71
        %p628 = pneg %p68
        %p629 = pneg %p92
        %p630 = pneg %p89
        %p631 = pneg %p113
        %p632 = pneg %p110
        %p633 = pneg %p134
        %p634 = pneg %p131
        %p635 = pneg %p155
        %p636 = pneg %p152
        %p637 = pneg %p176
        %p638 = pneg %p173
        %p639 = pneg %p197
        %p640 = pneg %p194
        %p641 = pneg %p218
        %p642 = pneg %p215
        %p643 = pneg %p239
        %p644 = pneg %p236
        %p645 = pneg %p260
        %p646 = pneg %p257
        %p647 = pneg %p281
        %p648 = pneg %p278
        %p649 = pneg %p302
        %p650 = pneg %p299
        %p651 = pneg %p323
        %p652 = pneg %p320
        %p653 = pneg %p344
        %p654 = pneg %p341
        %p655 = pneg %p365
        %p656 = pneg %p362
        %p657 = pneg %p386
        %p658 = pneg %p383
        %p659 = pneg %p407
        %p660 = pneg %p404
        %p661 = pneg %p428
        %p662 = pneg %p425
        %p663 = pneg %p449
        %p664 = pneg %p446
        %p665 = pneg %p470
        %p666 = pneg %p467
        %p667 = pneg %p491
        %p668 = pneg %p488
        %p669 = pneg %p517
        %p670 = pneg %p514
        %p671 = scmp.lt.s32.totalorder %s34, 1
        %s672 = scalar_select %p671, %s34, 1
        %s673 = smul.addr %s672, 2
        %s674 = scalar_lea.vmem %s22, %s673
        %p675 = scmp.lt.s32.totalorder %s34, 1
        %s676 = scalar_select %p675, %s34, 1
        %s677 = smul.addr %s676, 2
        %s678 = scalar_lea.vmem %s22, %s677
        %v680 = vld [vmem:[%s1] sm:$0x3]
        %p681 = scmp.eq.s32.totalorder %s34, 0
        // Predicated region
        $region113: #{ensemble_forward.1} parent=107 // pred_check
          %p682 = pneg %p681
        $region114: #{ensemble_forward.1} parent=107 // pred_check_branch
          %684 = sbr.rel (%p682) target = $region116
        $region115: #{ensemble_forward.1} parent=107 // pred_region
          %v685 = vld [vmem:[%s0] sm:$0xf]
          %v686 = vld [vmem:[%s0 + $0x4] sm:$0xf]
          %v687 = vld [vmem:[%s2] sm:$0xff]
          %v688 = vld [vmem:[%s2 + $0x8] sm:$0xff]
          %v689 = vld [vmem:[%s4] sm:$0x1]
          %v690 = vperm.slane %v689, 0
          %v691 = vmul.f32 %v687, %v690
          %v692 = vmul.f32 %v688, %v690
          %v693 = vld [vmem:[%s4 + $0x1] sm:$0x1]
          %v694 = vperm.slane %v693, 0
          %v695 = vadd.f32 %v691, %v694
          %v696 = vadd.f32 %v692, %v694
          %v697 = vld [vmem:[%s6] sm:$0x7]
          %v698 = vld [vmem:[#allocation2] sm:$0xff]
          %v699 = vld [vmem:[#allocation2 + $0x8] sm:$0xff]
          %v700 = vld [vmem:[#allocation2 + $0x10] sm:$0xff]
          %v701 = vld [vmem:[#allocation2 + $0x18] sm:$0xff]
          %v702 = vld [vmem:[#allocation2 + $0x20] sm:$0xff]
          %v703 = vld [vmem:[#allocation2 + $0x28] sm:$0xff]
          %v704 = vld [vmem:[#allocation2 + $0x30] sm:$0xff]
          %v705 = vld [vmem:[#allocation2 + $0x38] sm:$0xff]
          %vm706 = vcmask 523264
          %v708 = vsel %vm706, %v695, 0
          %v711 = vsel %vm706, %v696, 0
          %713 = vmatpush.msra.mxu0 0.0
          %714 = vmatpush.msra.mxu0 0.0
          %715 = vmatpush.msra.mxu0 0.0
          %716 = vmatpush.msra.mxu0 0.0
          %717 = vmatpush.msra.mxu0 0.0
          %718 = vmatpush.msra.mxu0 0.0
          %719 = vmatpush.msra.mxu0 0.0
          %720 = vmatpush.msra.mxu0 0.0
          %721 = vmatpush.msra.mxu0 %v705
          %722 = vmatpush.msra.mxu0 %v704
          %723 = vmatpush.msra.mxu0 %v703
          %724 = vmatpush.msra.mxu0 %v702
          %725 = vmatpush.msra.mxu0 %v701
          %726 = vmatpush.msra.mxu0 %v700
          %727 = vmatpush.msra.mxu0 %v699
          %728 = vmatpush.msra.mxu0 %v698
          %729 = vmatmul.f32.gmra.mxu0 %v708
          %v730 = vpop.f32.mrf.mxu0
          %v731 = vadd.f32 0.0, %v730
          %732 = vmatmul.f32.gmra.mxu0 %v711
          %v733 = vpop.f32.mrf.mxu0
          %v734 = vadd.f32 0.0, %v733
          %735 = vdwg.mxu0
          %v736 = vpack.c.bf16 %v734, %v731
          %v737 = vperm.slane %v697, 0
          %v740 = vunpack.c.l.b16 %v685
          %v741 = vunpack.c.l.b16 %v686
          %v742 = vpack.c.b16 %v741, %v740
          %vm743 = vcmask 130048
          %v745 = vsel %vm743, %v742, 0
          %747 = vmatpush.bf16.msra.mxu0 0
          %748 = vmatpush.bf16.msra.mxu0 0
          %749 = vmatpush.bf16.msra.mxu0 0
          %750 = vmatpush.bf16.msra.mxu0 0
          %751 = vmatpush.bf16.msra.mxu0 0
          %752 = vmatpush.bf16.msra.mxu0 0
          %753 = vmatpush.bf16.msra.mxu0 0
          %754 = vmatpush.bf16.msra.mxu0 %v736
          %755 = vmatmul.bf16.gmra.mxu0 %v745
          %v756 = vpop.f32.mrf.mxu0
          %v757 = vadd.f32 %v737, %v756
          %v758 = vpop.f32.mrf.mxu0
          %v759 = vadd.f32 %v737, %v758
          %760 = vdwg.mxu0
          %v761 = vmax.f32 %v757, 0.0
          %v762 = vmax.f32 %v759, 0.0
          %v763 = vperm.slane %v697, 1
          %v764 = vmul.f32 %v761, %v763
          %v765 = vmul.f32 %v762, %v763
          %v766 = vperm.slane %v697, 2
          %v767 = vadd.f32 %v764, %v766
          %v768 = vadd.f32 %v765, %v766
          %s769 = scalar_lea.vmem %s6, 4
          %v770 = vld [vmem:[%s769] sm:$0x7]
          %s771 = scalar_lea.vmem [#allocation2], 64
          %v772 = vld [vmem:[%s771] sm:$0xff]
          %v773 = vld [vmem:[%s771 + $0x8] sm:$0xff]
          %v774 = vld [vmem:[%s771 + $0x10] sm:$0xff]
          %v775 = vld [vmem:[%s771 + $0x18] sm:$0xff]
          %v776 = vld [vmem:[%s771 + $0x20] sm:$0xff]
          %v777 = vld [vmem:[%s771 + $0x28] sm:$0xff]
          %v778 = vld [vmem:[%s771 + $0x30] sm:$0xff]
          %v779 = vld [vmem:[%s771 + $0x38] sm:$0xff]
          %v781 = vsel %vm706, %v767, 0
          %v784 = vsel %vm706, %v768, 0
          %786 = vmatpush.msra.mxu0 0.0
          %787 = vmatpush.msra.mxu0 0.0
          %788 = vmatpush.msra.mxu0 0.0
          %789 = vmatpush.msra.mxu0 0.0
          %790 = vmatpush.msra.mxu0 0.0
          %791 = vmatpush.msra.mxu0 0.0
          %792 = vmatpush.msra.mxu0 0.0
          %793 = vmatpush.msra.mxu0 0.0
          %794 = vmatpush.msra.mxu0 %v779
          %795 = vmatpush.msra.mxu0 %v778
          %796 = vmatpush.msra.mxu0 %v777
          %797 = vmatpush.msra.mxu0 %v776
          %798 = vmatpush.msra.mxu0 %v775
          %799 = vmatpush.msra.mxu0 %v774
          %800 = vmatpush.msra.mxu0 %v773
          %801 = vmatpush.msra.mxu0 %v772
          %802 = vmatmul.f32.gmra.mxu0 %v781
          %v803 = vpop.f32.mrf.mxu0
          %v804 = vadd.f32 0.0, %v803
          %805 = vmatmul.f32.gmra.mxu0 %v784
          %v806 = vpop.f32.mrf.mxu0
          %v807 = vadd.f32 0.0, %v806
          %808 = vdwg.mxu0
          %v809 = vpack.c.bf16 %v807, %v804
          %v810 = vperm.slane %v770, 0
          %811 = vmatpush.bf16.msra.mxu0 0
          %812 = vmatpush.bf16.msra.mxu0 0
          %813 = vmatpush.bf16.msra.mxu0 0
          %814 = vmatpush.bf16.msra.mxu0 0
          %815 = vmatpush.bf16.msra.mxu0 0
          %816 = vmatpush.bf16.msra.mxu0 0
          %817 = vmatpush.bf16.msra.mxu0 0
          %818 = vmatpush.bf16.msra.mxu0 %v809
          %819 = vmatmul.bf16.gmra.mxu0 %v745
          %v820 = vpop.f32.mrf.mxu0
          %v821 = vadd.f32 %v810, %v820
          %v822 = vpop.f32.mrf.mxu0
          %v823 = vadd.f32 %v810, %v822
          %824 = vdwg.mxu0
          %v825 = vmax.f32 %v821, 0.0
          %v826 = vmax.f32 %v823, 0.0
          %v827 = vperm.slane %v770, 1
          %v828 = vmul.f32 %v825, %v827
          %v829 = vmul.f32 %v826, %v827
          %v830 = vperm.slane %v770, 2
          %v831 = vadd.f32 %v828, %v830
          %v832 = vadd.f32 %v829, %v830
          %v833 = vadd.f32 %v831, %v767
          %v834 = vadd.f32 %v832, %v768
          %s835 = scalar_lea.vmem %s6, 8
          %v836 = vld [vmem:[%s835] sm:$0x7]
          %s837 = scalar_lea.vmem [#allocation2], 128
          %v838 = vld [vmem:[%s837] sm:$0xff]
          %v839 = vld [vmem:[%s837 + $0x8] sm:$0xff]
          %v840 = vld [vmem:[%s837 + $0x10] sm:$0xff]
          %v841 = vld [vmem:[%s837 + $0x18] sm:$0xff]
          %v842 = vld [vmem:[%s837 + $0x20] sm:$0xff]
          %v843 = vld [vmem:[%s837 + $0x28] sm:$0xff]
          %v844 = vld [vmem:[%s837 + $0x30] sm:$0xff]
          %v845 = vld [vmem:[%s837 + $0x38] sm:$0xff]
          %v847 = vsel %vm706, %v833, 0
          %v850 = vsel %vm706, %v834, 0
          %852 = vmatpush.msra.mxu0 0.0
          %853 = vmatpush.msra.mxu0 0.0
          %854 = vmatpush.msra.mxu0 0.0
          %855 = vmatpush.msra.mxu0 0.0
          %856 = vmatpush.msra.mxu0 0.0
          %857 = vmatpush.msra.mxu0 0.0
          %858 = vmatpush.msra.mxu0 0.0
          %859 = vmatpush.msra.mxu0 0.0
          %860 = vmatpush.msra.mxu0 %v845
          %861 = vmatpush.msra.mxu0 %v844
          %862 = vmatpush.msra.mxu0 %v843
          %863 = vmatpush.msra.mxu0 %v842
          %864 = vmatpush.msra.mxu0 %v841
          %865 = vmatpush.msra.mxu0 %v840
          %866 = vmatpush.msra.mxu0 %v839
          %867 = vmatpush.msra.mxu0 %v838
          %868 = vmatmul.f32.gmra.mxu0 %v847
          %v869 = vpop.f32.mrf.mxu0
          %v870 = vadd.f32 0.0, %v869
          %871 = vmatmul.f32.gmra.mxu0 %v850
          %v872 = vpop.f32.mrf.mxu0
          %v873 = vadd.f32 0.0, %v872
          %874 = vdwg.mxu0
          %v875 = vpack.c.bf16 %v873, %v870
          %v876 = vperm.slane %v836, 0
          %877 = vmatpush.bf16.msra.mxu0 0
          %878 = vmatpush.bf16.msra.mxu0 0
          %879 = vmatpush.bf16.msra.mxu0 0
          %880 = vmatpush.bf16.msra.mxu0 0
          %881 = vmatpush.bf16.msra.mxu0 0
          %882 = vmatpush.bf16.msra.mxu0 0
          %883 = vmatpush.bf16.msra.mxu0 0
          %884 = vmatpush.bf16.msra.mxu0 %v875
          %885 = vmatmul.bf16.gmra.mxu0 %v745
          %v886 = vpop.f32.mrf.mxu0
          %v887 = vadd.f32 %v876, %v886
          %v888 = vpop.f32.mrf.mxu0
          %v889 = vadd.f32 %v876, %v888
          %890 = vdwg.mxu0
          %v891 = vmax.f32 %v887, 0.0
          %v892 = vmax.f32 %v889, 0.0
          %v893 = vperm.slane %v836, 1
          %v894 = vmul.f32 %v891, %v893
          %v895 = vmul.f32 %v892, %v893
          %v896 = vperm.slane %v836, 2
          %v897 = vadd.f32 %v894, %v896
          %v898 = vadd.f32 %v895, %v896
          %v899 = vadd.f32 %v897, %v833
          %v900 = vadd.f32 %v898, %v834
          %s901 = scalar_lea.vmem %s6, 12
          %v902 = vld [vmem:[%s901] sm:$0x7]
          %s903 = scalar_lea.vmem [#allocation2], 192
          %v904 = vld [vmem:[%s903] sm:$0xff]
          %v905 = vld [vmem:[%s903 + $0x8] sm:$0xff]
          %v906 = vld [vmem:[%s903 + $0x10] sm:$0xff]
          %v907 = vld [vmem:[%s903 + $0x18] sm:$0xff]
          %v908 = vld [vmem:[%s903 + $0x20] sm:$0xff]
          %v909 = vld [vmem:[%s903 + $0x28] sm:$0xff]
          %v910 = vld [vmem:[%s903 + $0x30] sm:$0xff]
          %v911 = vld [vmem:[%s903 + $0x38] sm:$0xff]
          %v913 = vsel %vm706, %v899, 0
          %v916 = vsel %vm706, %v900, 0
          %918 = vmatpush.msra.mxu0 0.0
          %919 = vmatpush.msra.mxu0 0.0
          %920 = vmatpush.msra.mxu0 0.0
          %921 = vmatpush.msra.mxu0 0.0
          %922 = vmatpush.msra.mxu0 0.0
          %923 = vmatpush.msra.mxu0 0.0
          %924 = vmatpush.msra.mxu0 0.0
          %925 = vmatpush.msra.mxu0 0.0
          %926 = vmatpush.msra.mxu0 %v911
          %927 = vmatpush.msra.mxu0 %v910
          %928 = vmatpush.msra.mxu0 %v909
          %929 = vmatpush.msra.mxu0 %v908
          %930 = vmatpush.msra.mxu0 %v907
          %931 = vmatpush.msra.mxu0 %v906
          %932 = vmatpush.msra.mxu0 %v905
          %933 = vmatpush.msra.mxu0 %v904
          %934 = vmatmul.f32.gmra.mxu0 %v913
          %v935 = vpop.f32.mrf.mxu0
          %v936 = vadd.f32 0.0, %v935
          %937 = vmatmul.f32.gmra.mxu0 %v916
          %v938 = vpop.f32.mrf.mxu0
          %v939 = vadd.f32 0.0, %v938
          %940 = vdwg.mxu0
          %v941 = vpack.c.bf16 %v939, %v936
          %v942 = vperm.slane %v902, 0
          %943 = vmatpush.bf16.msra.mxu0 0
          %944 = vmatpush.bf16.msra.mxu0 0
          %945 = vmatpush.bf16.msra.mxu0 0
          %946 = vmatpush.bf16.msra.mxu0 0
          %947 = vmatpush.bf16.msra.mxu0 0
          %948 = vmatpush.bf16.msra.mxu0 0
          %949 = vmatpush.bf16.msra.mxu0 0
          %950 = vmatpush.bf16.msra.mxu0 %v941
          %951 = vmatmul.bf16.gmra.mxu0 %v745
          %v952 = vpop.f32.mrf.mxu0
          %v953 = vadd.f32 %v942, %v952
          %v954 = vpop.f32.mrf.mxu0
          %v955 = vadd.f32 %v942, %v954
          %956 = vdwg.mxu0
          %v957 = vmax.f32 %v953, 0.0
          %v958 = vmax.f32 %v955, 0.0
          %v959 = vperm.slane %v902, 1
          %v960 = vmul.f32 %v957, %v959
          %v961 = vmul.f32 %v958, %v959
          %v962 = vperm.slane %v902, 2
          %v963 = vadd.f32 %v960, %v962
          %v964 = vadd.f32 %v961, %v962
          %v965 = vadd.f32 %v963, %v899
          %v966 = vadd.f32 %v964, %v900
          %v967 = vld [vmem:[%s7] sm:$0xff]
          %v968 = vld [vmem:[%s7 + $0x8] sm:$0xff]
          %v969 = vld [vmem:[%s7 + $0x10] sm:$0xff]
          %v970 = vld [vmem:[%s7 + $0x18] sm:$0xff]
          %v971 = vld [vmem:[%s7 + $0x20] sm:$0xff]
          %v972 = vld [vmem:[%s7 + $0x28] sm:$0xff]
          %v973 = vld [vmem:[%s7 + $0x30] sm:$0xff]
          %v974 = vld [vmem:[%s7 + $0x38] sm:$0xff]
          %v975 = vld [vmem:[%s8] sm:$0x1]
          %v977 = vperm.slane %v975, 0
          %v980 = vsel %vm706, %v965, 0
          %v983 = vsel %vm706, %v966, 0
          %985 = vmatpush.msra.mxu0 0.0
          %986 = vmatpush.msra.mxu0 0.0
          %987 = vmatpush.msra.mxu0 0.0
          %988 = vmatpush.msra.mxu0 0.0
          %989 = vmatpush.msra.mxu0 0.0
          %990 = vmatpush.msra.mxu0 0.0
          %991 = vmatpush.msra.mxu0 0.0
          %992 = vmatpush.msra.mxu0 0.0
          %993 = vmatpush.msra.mxu0 %v974
          %994 = vmatpush.msra.mxu0 %v973
          %995 = vmatpush.msra.mxu0 %v972
          %996 = vmatpush.msra.mxu0 %v971
          %997 = vmatpush.msra.mxu0 %v970
          %998 = vmatpush.msra.mxu0 %v969
          %999 = vmatpush.msra.mxu0 %v968
          %1000 = vmatpush.msra.mxu0 %v967
          %1001 = vmatmul.f32.gmra.mxu0 %v980
          %v1002 = vpop.f32.mrf.mxu0
          %v1003 = vadd.f32 %v977, %v1002
          %1004 = vmatmul.f32.gmra.mxu0 %v983
          %v1005 = vpop.f32.mrf.mxu0
          %v1006 = vadd.f32 %v977, %v1005
          %1007 = vdwg.mxu0
          %vm1008 = vcmp.gt.f32.partialorder %v1003, 0.0
          %vm1009 = vcmp.gt.f32.partialorder %v1006, 0.0
          %v1010 = vmul.f32 %v1003, 0.01
          %v1011 = vmul.f32 %v1006, 0.01
          %v1012 = vsel %vm1008, %v1003, %v1010
          %v1013 = vsel %vm1009, %v1006, %v1011
          %v1014 = vld [vmem:[%s9] sm:$0xff]
          %v1015 = vld [vmem:[%s9 + $0x8] sm:$0xff]
          %v1016 = vld [vmem:[%s9 + $0x10] sm:$0xff]
          %v1017 = vld [vmem:[%s9 + $0x18] sm:$0xff]
          %v1018 = vld [vmem:[%s10] sm:$0x1]
          %v1020 = vperm.slane %v1018, 0
          %vm1022 = vcmask 261120
          %v1024 = vsel %vm1022, %v1012, 0
          %v1027 = vsel %vm1022, %v1013, 0
          %1029 = vmatpush.msra.mxu0 0.0
          %1030 = vmatpush.msra.mxu0 0.0
          %1031 = vmatpush.msra.mxu0 0.0
          %1032 = vmatpush.msra.mxu0 0.0
          %1033 = vmatpush.msra.mxu0 0.0
          %1034 = vmatpush.msra.mxu0 0.0
          %1035 = vmatpush.msra.mxu0 0.0
          %1036 = vmatpush.msra.mxu0 0.0
          %1037 = vmatpush.msra.mxu0 0.0
          %1038 = vmatpush.msra.mxu0 0.0
          %1039 = vmatpush.msra.mxu0 0.0
          %1040 = vmatpush.msra.mxu0 0.0
          %1041 = vmatpush.msra.mxu0 %v1017
          %1042 = vmatpush.msra.mxu0 %v1016
          %1043 = vmatpush.msra.mxu0 %v1015
          %1044 = vmatpush.msra.mxu0 %v1014
          %1045 = vmatmul.f32.gmra.mxu0 %v1024
          %v1046 = vpop.f32.mrf.mxu0
          %v1047 = vadd.f32 %v1020, %v1046
          %1048 = vmatmul.f32.gmra.mxu0 %v1027
          %v1049 = vpop.f32.mrf.mxu0
          %v1050 = vadd.f32 %v1020, %v1049
          %1051 = vdwg.mxu0
          %vm1052 = vcmask 15360
          %v1053 = vsel %vm1052, %v1047, -inf
          %v1054 = vsel %vm1052, %v1050, -inf
          %v1055 = vmax.f32 %v1053, %v1054
          %v1056 = vrot.slane %v1055, 4
          %v1057 = vmax.f32 %v1055, %v1056
          %v1058 = vrot.slane %v1057, 2
          %v1059 = vmax.f32 %v1057, %v1058
          %v1060 = vrot.slane %v1059, 1
          %v1061 = vmax.f32 %v1059, %v1060
          %v1062 = vsub.f32 %v1047, %v1061
          %v1063 = vsub.f32 %v1050, %v1061
          %v1064 = vmul.f32 %v1062, 1.442695
          %v1065 = vpow.pop %v1064
          %v1066 = vmul.f32 %v1063, 1.442695
          %v1067 = vpow.pop %v1066
          %v1068 = vsel %vm1052, %v1065, 0.0
          %v1069 = vsel %vm1052, %v1067, 0.0
          %v1070 = vadd.f32 %v1068, %v1069
          %v1071 = vrot.slane %v1070, 4
          %v1072 = vadd.f32 %v1070, %v1071
          %v1073 = vrot.slane %v1072, 2
          %v1074 = vadd.f32 %v1072, %v1073
          %v1075 = vrot.slane %v1074, 1
          %v1076 = vadd.f32 %v1074, %v1075
          %v1077 = vrcp.pop %v1076
          %v1078 = vmul.f32 %v1065, %v1077
          %v1079 = vmul.f32 %v1067, %v1077
          %v1080 = vld [vmem:[%s11] sm:$0x3]
          %v1082 = vsel %vm1052, %v1078, 0
          %v1085 = vsel %vm1052, %v1079, 0
          %vm1087 = vcmask 1041408
          %v1089 = vsel %vm1087, %v1080, 0
          %1091 = vmatpush.msra.mxu0 0.0
          %1092 = vmatpush.msra.mxu0 0.0
          %1093 = vmatpush.msra.mxu0 0.0
          %1094 = vmatpush.msra.mxu0 0.0
          %1095 = vmatpush.msra.mxu0 0.0
          %1096 = vmatpush.msra.mxu0 0.0
          %1097 = vmatpush.msra.mxu0 0.0
          %1098 = vmatpush.msra.mxu0 0.0
          %1099 = vmatpush.msra.mxu0 0.0
          %1100 = vmatpush.msra.mxu0 0.0
          %1101 = vmatpush.msra.mxu0 0.0
          %1102 = vmatpush.msra.mxu0 0.0
          %1103 = vmatpush.msra.mxu0 0.0
          %1104 = vmatpush.msra.mxu0 0.0
          %1105 = vmatpush.msra.mxu0 0.0
          %1106 = vmatpush.msra.mxu0 %v1089
          %1107 = vmatmul.f32.gmra.mxu0 %v1082
          %v1108 = vpop.f32.mrf.mxu0
          %v1109 = vadd.f32 0.0, %v1108
          %1110 = vmatmul.f32.gmra.mxu0 %v1085
          %v1111 = vpop.f32.mrf.mxu0
          %v1112 = vadd.f32 0.0, %v1111
          %1113 = vdwg.mxu0
          %v1114 = vmul.f32 %v965, %v1109
          %v1115 = vmul.f32 %v966, %v1112
          %v1117 = vsel %vm743, %v680, 0
          %1119 = vmatpush.msra.mxu0 0.0
          %1120 = vmatpush.msra.mxu0 0.0
          %1121 = vmatpush.msra.mxu0 0.0
          %1122 = vmatpush.msra.mxu0 0.0
          %1123 = vmatpush.msra.mxu0 0.0
          %1124 = vmatpush.msra.mxu0 0.0
          %1125 = vmatpush.msra.mxu0 0.0
          %1126 = vmatpush.msra.mxu0 0.0
          %1127 = vmatpush.msra.mxu0 0.0
          %1128 = vmatpush.msra.mxu0 0.0
          %1129 = vmatpush.msra.mxu0 0.0
          %1130 = vmatpush.msra.mxu0 0.0
          %1131 = vmatpush.msra.mxu0 0.0
          %1132 = vmatpush.msra.mxu0 0.0
          %1133 = vmatpush.msra.mxu0 %v1115
          %1134 = vmatpush.msra.mxu0 %v1114
          %1135 = vmatmul.f32.gmra.mxu0 %v1117
          %v1136 = vpop.f32.mrf.mxu0
          %v1137 = vadd.f32 0.0, %v1136
          %1138 = vdwg.mxu0
          %v1139 = vld [vmem:[%s12] sm:$0xff]
          %v1140 = vld [vmem:[%s12 + $0x8] sm:$0xff]
          %v1141 = vld [vmem:[%s12 + $0x10] sm:$0xff]
          %v1142 = vld [vmem:[%s12 + $0x18] sm:$0xff]
          %v1143 = vld [vmem:[%s12 + $0x20] sm:$0xff]
          %v1144 = vld [vmem:[%s12 + $0x28] sm:$0xff]
          %v1145 = vld [vmem:[%s12 + $0x30] sm:$0xff]
          %v1146 = vld [vmem:[%s12 + $0x38] sm:$0xff]
          %v1147 = vld [vmem:[%s13] sm:$0x1]
          %v1149 = vperm.slane %v1147, 0
          %v1152 = vsel %vm706, %v1137, 0
          %1154 = vmatpush.msra.mxu0 0.0
          %1155 = vmatpush.msra.mxu0 0.0
          %1156 = vmatpush.msra.mxu0 0.0
          %1157 = vmatpush.msra.mxu0 0.0
          %1158 = vmatpush.msra.mxu0 0.0
          %1159 = vmatpush.msra.mxu0 0.0
          %1160 = vmatpush.msra.mxu0 0.0
          %1161 = vmatpush.msra.mxu0 0.0
          %1162 = vmatpush.msra.mxu0 %v1146
          %1163 = vmatpush.msra.mxu0 %v1145
          %1164 = vmatpush.msra.mxu0 %v1144
          %1165 = vmatpush.msra.mxu0 %v1143
          %1166 = vmatpush.msra.mxu0 %v1142
          %1167 = vmatpush.msra.mxu0 %v1141
          %1168 = vmatpush.msra.mxu0 %v1140
          %1169 = vmatpush.msra.mxu0 %v1139
          %1170 = vmatmul.f32.gmra.mxu0 %v1152
          %v1171 = vpop.f32.mrf.mxu0
          %v1172 = vadd.f32 %v1149, %v1171
          %1173 = vdwg.mxu0
          %vm1174 = vcmask 9216
          %1175 = vst.msk [vmem:[%s678] sm:$0x3] %vm1174, %v1172
        $region116: #{ensemble_forward.1} parent=107 // pred_fallthru
          _
        %p1176 = scmp.eq.s32.totalorder %s34, 1
        // Predicated region
        $region117: #{ensemble_forward.1} parent=107 // pred_check
          %p1177 = pneg %p1176
        $region118: #{ensemble_forward.1} parent=107 // pred_check_branch
          %1179 = sbr.rel (%p1177) target = $region120
        $region119: #{ensemble_forward.1} parent=107 // pred_region
          %v1180 = vld [vmem:[%s0] sm:$0xf]
          %v1181 = vld [vmem:[%s0 + $0x4] sm:$0xf]
          %v1182 = vunpack.c.l.bf16 %v1180
          %v1183 = vunpack.c.l.bf16 %v1181
          %vm1184 = vcmp.gt.f32.partialorder %v1182, 0.0
          %vm1185 = vcmp.gt.f32.partialorder %v1183, 0.0
          %v1186 = vld [vmem:[%s19] sm:$0xf]
          %v1187 = vld [vmem:[%s3] sm:$0xff]
          %v1188 = vld [vmem:[%s3 + $0x8] sm:$0xff]
          %v1189 = vld [vmem:[%s14] sm:$0x1]
          %v1190 = vperm.slane %v1189, 0
          %v1191 = vmul.f32 %v1187, %v1190
          %v1192 = vmul.f32 %v1188, %v1190
          %v1193 = vld [vmem:[%s14 + $0x1] sm:$0x1]
          %v1194 = vperm.slane %v1193, 0
          %v1195 = vadd.f32 %v1191, %v1194
          %v1196 = vadd.f32 %v1192, %v1194
          %v1197 = vld [vmem:[%s18] sm:$0x7]
          %v1198 = vld [vmem:[%s15] sm:$0xff]
          %v1199 = vld [vmem:[%s15 + $0x8] sm:$0xff]
          %v1200 = vld [vmem:[%s15 + $0x10] sm:$0xff]
          %v1201 = vld [vmem:[%s15 + $0x18] sm:$0xff]
          %vm1202 = vcmask 261120
          %v1204 = vsel %vm1202, %v1195, 0
          %v1207 = vsel %vm1202, %v1196, 0
          %1209 = vmatpush.msra.mxu0 0.0
          %1210 = vmatpush.msra.mxu0 0.0
          %1211 = vmatpush.msra.mxu0 0.0
          %1212 = vmatpush.msra.mxu0 0.0
          %1213 = vmatpush.msra.mxu0 0.0
          %1214 = vmatpush.msra.mxu0 0.0
          %1215 = vmatpush.msra.mxu0 0.0
          %1216 = vmatpush.msra.mxu0 0.0
          %1217 = vmatpush.msra.mxu0 0.0
          %1218 = vmatpush.msra.mxu0 0.0
          %1219 = vmatpush.msra.mxu0 0.0
          %1220 = vmatpush.msra.mxu0 0.0
          %1221 = vmatpush.msra.mxu0 %v1201
          %1222 = vmatpush.msra.mxu0 %v1200
          %1223 = vmatpush.msra.mxu0 %v1199
          %1224 = vmatpush.msra.mxu0 %v1198
          %1225 = vmatmul.f32.gmra.mxu0 %v1204
          %v1226 = vpop.f32.mrf.mxu0
          %v1227 = vadd.f32 0.0, %v1226
          %1228 = vmatmul.f32.gmra.mxu0 %v1207
          %v1229 = vpop.f32.mrf.mxu0
          %v1230 = vadd.f32 0.0, %v1229
          %1231 = vdwg.mxu0
          %v1232 = vld [vmem:[%s16] sm:$0xf]
          %v1234 = vsel %vm1202, %v1232, 0
          %v1237 = vsel %vm1202, %v1227, 0
          %v1240 = vsel %vm1202, %v1230, 0
          %1242 = vmatpush.xpose.msra.mxu0 0.0
          %1243 = vmatpush.xpose.msra.mxu0 0.0
          %1244 = vmatpush.xpose.msra.mxu0 0.0
          %1245 = vmatpush.xpose.msra.mxu0 0.0
          %1246 = vmatpush.xpose.msra.mxu0 0.0
          %1247 = vmatpush.xpose.msra.mxu0 0.0
          %1248 = vmatpush.xpose.msra.mxu0 0.0
          %1249 = vmatpush.xpose.msra.mxu0 0.0
          %1250 = vmatpush.xpose.msra.mxu0 0.0
          %1251 = vmatpush.xpose.msra.mxu0 0.0
          %1252 = vmatpush.xpose.msra.mxu0 0.0
          %1253 = vmatpush.xpose.msra.mxu0 0.0
          %1254 = vmatpush.xpose.msra.mxu0 0.0
          %1255 = vmatpush.xpose.msra.mxu0 0.0
          %1256 = vmatpush.xpose.msra.mxu0 %v1240
          %1257 = vmatpush.xpose.msra.mxu0 %v1237
          %1258 = vmatmul.f32.gmra.mxu0 %v1234
          %v1259 = vpop.f32.mrf.mxu0
          %v1260 = vadd.f32 0.0, %v1259
          %1261 = vdwg.mxu0
          %v1262 = vld [vmem:[%s17] sm:$0xf]
          %v1264 = vsel %vm1202, %v1262, 0
          %1266 = vmatpush.xpose.msra.mxu0 0.0
          %1267 = vmatpush.xpose.msra.mxu0 0.0
          %1268 = vmatpush.xpose.msra.mxu0 0.0
          %1269 = vmatpush.xpose.msra.mxu0 0.0
          %1270 = vmatpush.xpose.msra.mxu0 0.0
          %1271 = vmatpush.xpose.msra.mxu0 0.0
          %1272 = vmatpush.xpose.msra.mxu0 0.0
          %1273 = vmatpush.xpose.msra.mxu0 0.0
          %1274 = vmatpush.xpose.msra.mxu0 0.0
          %1275 = vmatpush.xpose.msra.mxu0 0.0
          %1276 = vmatpush.xpose.msra.mxu0 0.0
          %1277 = vmatpush.xpose.msra.mxu0 0.0
          %1278 = vmatpush.xpose.msra.mxu0 0.0
          %1279 = vmatpush.xpose.msra.mxu0 0.0
          %1280 = vmatpush.xpose.msra.mxu0 %v1240
          %1281 = vmatpush.xpose.msra.mxu0 %v1237
          %1282 = vmatmul.f32.gmra.mxu0 %v1264
          %v1283 = vpop.f32.mrf.mxu0
          %v1284 = vadd.f32 0.0, %v1283
          %1285 = vdwg.mxu0
          %v1286 = vperm.slane %v1284, 0
          %v1287 = vlaneseq
          %v1288 = vshrl.u32 %v1287, 7
          %1290 = vset.pattern.permute.xlu0 %v1288
          %1291 = vperm.xlu0 %1290, %v1286
          %v1292 = vpop.permute.xlu0 %1291
          %v1293 = vlaneseq
          %v1294 = vshrl.u32 %v1293, 7
          %v1295 = vadd.s32 %v1294, 8
          %1296 = vset.pattern.permute.xlu0 %v1295
          %1297 = vperm.xlu0 %1296, %v1286
          %v1298 = vpop.permute.xlu0 %1297
          %v1299 = vperm.slane %v1284, 1
          %v1300 = vlaneseq
          %v1301 = vshrl.u32 %v1300, 7
          %1303 = vset.pattern.permute.xlu0 %v1301
          %1304 = vperm.xlu0 %1303, %v1299
          %v1305 = vpop.permute.xlu0 %1304
          %v1306 = vlaneseq
          %v1307 = vshrl.u32 %v1306, 7
          %v1308 = vadd.s32 %v1307, 8
          %1309 = vset.pattern.permute.xlu0 %v1308
          %1310 = vperm.xlu0 %1309, %v1299
          %v1311 = vpop.permute.xlu0 %1310
          %v1312 = vperm.slane %v1284, 2
          %v1313 = vlaneseq
          %v1314 = vshrl.u32 %v1313, 7
          %1316 = vset.pattern.permute.xlu0 %v1314
          %1317 = vperm.xlu0 %1316, %v1312
          %v1318 = vpop.permute.xlu0 %1317
          %v1319 = vlaneseq
          %v1320 = vshrl.u32 %v1319, 7
          %v1321 = vadd.s32 %v1320, 8
          %1322 = vset.pattern.permute.xlu0 %v1321
          %1323 = vperm.xlu0 %1322, %v1312
          %v1324 = vpop.permute.xlu0 %1323
          %v1325 = vperm.slane %v1284, 3
          %v1326 = vlaneseq
          %v1327 = vshrl.u32 %v1326, 7
          %1329 = vset.pattern.permute.xlu0 %v1327
          %1330 = vperm.xlu0 %1329, %v1325
          %v1331 = vpop.permute.xlu0 %1330
          %v1332 = vlaneseq
          %v1333 = vshrl.u32 %v1332, 7
          %v1334 = vadd.s32 %v1333, 8
          %1335 = vset.pattern.permute.xlu0 %v1334
          %1336 = vperm.xlu0 %1335, %v1325
          %v1337 = vpop.permute.xlu0 %1336
          %v1339 = vrot.slane %v1260, 1
          %v1340 = vrot.slane %v1260, 2
          %v1341 = vrot.slane %v1260, 3
          %v1342 = vperm.slane %v1260, 0
          %v1343 = vperm.slane %v1339, 0
          %v1344 = vperm.slane %v1340, 0
          %v1345 = vperm.slane %v1341, 0
          %v1350 = vadd.f32 %v1292, %v1342
          %v1351 = vadd.f32 %v1298, %v1342
          %v1352 = vadd.f32 %v1305, %v1343
          %v1353 = vadd.f32 %v1311, %v1343
          %v1354 = vadd.f32 %v1318, %v1344
          %v1355 = vadd.f32 %v1324, %v1344
          %v1356 = vadd.f32 %v1331, %v1345
          %v1357 = vadd.f32 %v1337, %v1345
          %vm1358 = vcmp.gt.f32.partialorder %v1350, 0.0
          %vm1359 = vcmp.gt.f32.partialorder %v1351, 0.0
          %vm1360 = vcmp.gt.f32.partialorder %v1352, 0.0
          %vm1361 = vcmp.gt.f32.partialorder %v1353, 0.0
          %vm1362 = vcmp.gt.f32.partialorder %v1354, 0.0
          %vm1363 = vcmp.gt.f32.partialorder %v1355, 0.0
          %vm1364 = vcmp.gt.f32.partialorder %v1356, 0.0
          %vm1365 = vcmp.gt.f32.partialorder %v1357, 0.0
          %v1366 = vmul.f32 %v1350, 0.2
          %v1367 = vmul.f32 %v1351, 0.2
          %v1368 = vmul.f32 %v1352, 0.2
          %v1369 = vmul.f32 %v1353, 0.2
          %v1370 = vmul.f32 %v1354, 0.2
          %v1371 = vmul.f32 %v1355, 0.2
          %v1372 = vmul.f32 %v1356, 0.2
          %v1373 = vmul.f32 %v1357, 0.2
          %v1374 = vsel %vm1358, %v1350, %v1366
          %v1375 = vsel %vm1359, %v1351, %v1367
          %v1376 = vsel %vm1360, %v1352, %v1368
          %v1377 = vsel %vm1361, %v1353, %v1369
          %v1378 = vsel %vm1362, %v1354, %v1370
          %v1379 = vsel %vm1363, %v1355, %v1371
          %v1380 = vsel %vm1364, %v1356, %v1372
          %v1381 = vsel %vm1365, %v1357, %v1373
          %v1382 = vsel %vm1184, 1, 0
          %v1383 = vsel %vm1185, 1, 0
          %vm1384 = vcmp.eq.s32.totalorder %v1382, 1
          %vm1385 = vcmp.eq.s32.totalorder %v1383, 1
          %v1386 = vsel %vm1384, %v1374, -1e+30
          %v1387 = vsel %vm1385, %v1375, -1e+30
          %v1388 = vsel %vm1384, %v1376, -1e+30
          %v1389 = vsel %vm1385, %v1377, -1e+30
          %v1390 = vsel %vm1384, %v1378, -1e+30
          %v1391 = vsel %vm1385, %v1379, -1e+30
          %v1392 = vsel %vm1384, %v1380, -1e+30
          %v1393 = vsel %vm1385, %v1381, -1e+30
          %vm1394 = vcmask 130048
          %v1395 = vsel %vm1394, %v1386, -inf
          %1396 = vmax.xlane.f32.xlu0 %v1395
          %v1397 = vpop.xlane.xlu0 %1396
          %v1398 = vsel %vm1394, %v1387, -inf
          %1399 = vmax.xlane.f32.xlu0 %v1398
          %v1400 = vpop.xlane.xlu0 %1399
          %v1401 = vsel %vm1394, %v1388, -inf
          %1402 = vmax.xlane.f32.xlu0 %v1401
          %v1403 = vpop.xlane.xlu0 %1402
          %v1404 = vsel %vm1394, %v1389, -inf
          %1405 = vmax.xlane.f32.xlu0 %v1404
          %v1406 = vpop.xlane.xlu0 %1405
          %v1407 = vsel %vm1394, %v1390, -inf
          %1408 = vmax.xlane.f32.xlu0 %v1407
          %v1409 = vpop.xlane.xlu0 %1408
          %v1410 = vsel %vm1394, %v1391, -inf
          %1411 = vmax.xlane.f32.xlu0 %v1410
          %v1412 = vpop.xlane.xlu0 %1411
          %v1413 = vsel %vm1394, %v1392, -inf
          %1414 = vmax.xlane.f32.xlu0 %v1413
          %v1415 = vpop.xlane.xlu0 %1414
          %v1416 = vsel %vm1394, %v1393, -inf
          %1417 = vmax.xlane.f32.xlu0 %v1416
          %v1418 = vpop.xlane.xlu0 %1417
          %v1419 = vsub.f32 %v1386, %v1397
          %v1420 = vsub.f32 %v1387, %v1400
          %v1421 = vsub.f32 %v1388, %v1403
          %v1422 = vsub.f32 %v1389, %v1406
          %v1423 = vsub.f32 %v1390, %v1409
          %v1424 = vsub.f32 %v1391, %v1412
          %v1425 = vsub.f32 %v1392, %v1415
          %v1426 = vsub.f32 %v1393, %v1418
          %v1427 = vmul.f32 %v1419, 1.442695
          %v1428 = vpow.pop %v1427
          %v1429 = vmul.f32 %v1420, 1.442695
          %v1430 = vpow.pop %v1429
          %v1431 = vmul.f32 %v1421, 1.442695
          %v1432 = vpow.pop %v1431
          %v1433 = vmul.f32 %v1422, 1.442695
          %v1434 = vpow.pop %v1433
          %v1435 = vmul.f32 %v1423, 1.442695
          %v1436 = vpow.pop %v1435
          %v1437 = vmul.f32 %v1424, 1.442695
          %v1438 = vpow.pop %v1437
          %v1439 = vmul.f32 %v1425, 1.442695
          %v1440 = vpow.pop %v1439
          %v1441 = vmul.f32 %v1426, 1.442695
          %v1442 = vpow.pop %v1441
          %v1443 = vsel %vm1394, %v1428, 0.0
          %1444 = vadd.xlane.f32.xlu0 %v1443
          %v1445 = vpop.xlane.xlu0 %1444
          %v1446 = vsel %vm1394, %v1430, 0.0
          %1447 = vadd.xlane.f32.xlu0 %v1446
          %v1448 = vpop.xlane.xlu0 %1447
          %v1449 = vsel %vm1394, %v1432, 0.0
          %1450 = vadd.xlane.f32.xlu0 %v1449
          %v1451 = vpop.xlane.xlu0 %1450
          %v1452 = vsel %vm1394, %v1434, 0.0
          %1453 = vadd.xlane.f32.xlu0 %v1452
          %v1454 = vpop.xlane.xlu0 %1453
          %v1455 = vsel %vm1394, %v1436, 0.0
          %1456 = vadd.xlane.f32.xlu0 %v1455
          %v1457 = vpop.xlane.xlu0 %1456
          %v1458 = vsel %vm1394, %v1438, 0.0
          %1459 = vadd.xlane.f32.xlu0 %v1458
          %v1460 = vpop.xlane.xlu0 %1459
          %v1461 = vsel %vm1394, %v1440, 0.0
          %1462 = vadd.xlane.f32.xlu0 %v1461
          %v1463 = vpop.xlane.xlu0 %1462
          %v1464 = vsel %vm1394, %v1442, 0.0
          %1465 = vadd.xlane.f32.xlu0 %v1464
          %v1466 = vpop.xlane.xlu0 %1465
          %v1467 = vrcp.pop %v1445
          %v1468 = vrcp.pop %v1448
          %v1469 = vrcp.pop %v1451
          %v1470 = vrcp.pop %v1454
          %v1471 = vrcp.pop %v1457
          %v1472 = vrcp.pop %v1460
          %v1473 = vrcp.pop %v1463
          %v1474 = vrcp.pop %v1466
          %v1475 = vmul.f32 %v1428, %v1467
          %v1476 = vmul.f32 %v1430, %v1468
          %v1477 = vmul.f32 %v1432, %v1469
          %v1478 = vmul.f32 %v1434, %v1470
          %v1479 = vmul.f32 %v1436, %v1471
          %v1480 = vmul.f32 %v1438, %v1472
          %v1481 = vmul.f32 %v1440, %v1473
          %v1482 = vmul.f32 %v1442, %v1474
          %v1484 = vrot.slane %v1186, 1
          %v1485 = vrot.slane %v1186, 2
          %v1486 = vrot.slane %v1186, 3
          %v1487 = vperm.slane %v1186, 0
          %v1488 = vperm.slane %v1484, 0
          %v1489 = vperm.slane %v1485, 0
          %v1490 = vperm.slane %v1486, 0
          %v1495 = vmul.f32 %v1227, %v1487
          %v1496 = vmul.f32 %v1230, %v1487
          %v1497 = vmul.f32 %v1227, %v1488
          %v1498 = vmul.f32 %v1230, %v1488
          %v1499 = vmul.f32 %v1227, %v1489
          %v1500 = vmul.f32 %v1230, %v1489
          %v1501 = vmul.f32 %v1227, %v1490
          %v1502 = vmul.f32 %v1230, %v1490
          %v1503 = vpack.c.bf16 %v1495, %v1495
          %v1504 = vpack.c.bf16 %v1496, %v1496
          %v1505 = vpack.c.bf16 %v1497, %v1497
          %v1506 = vpack.c.bf16 %v1498, %v1498
          %v1507 = vpack.c.bf16 %v1499, %v1499
          %v1508 = vpack.c.bf16 %v1500, %v1500
          %v1509 = vpack.c.bf16 %v1501, %v1501
          %v1510 = vpack.c.bf16 %v1502, %v1502
          %v1511 = vpack.c.bf16 %v1475, %v1475
          %v1512 = vpack.c.bf16 %v1476, %v1476
          %v1513 = vpack.c.bf16 %v1477, %v1477
          %v1514 = vpack.c.bf16 %v1478, %v1478
          %v1515 = vpack.c.bf16 %v1479, %v1479
          %v1516 = vpack.c.bf16 %v1480, %v1480
          %v1517 = vpack.c.bf16 %v1481, %v1481
          %v1518 = vpack.c.bf16 %v1482, %v1482
          %v1521 = vunpack.c.l.b16 %v1511
          %v1522 = vunpack.c.l.b16 %v1512
          %v1523 = vpack.c.b16 %v1522, %v1521
          %v1526 = vunpack.c.l.b16 %v1503
          %v1527 = vunpack.c.l.b16 %v1504
          %v1528 = vpack.c.b16 %v1527, %v1526
          %v1531 = vsel %vm1394, %v1523, 0
          %1533 = vmatpush.bf16.msra.mxu0 0
          %1534 = vmatpush.bf16.msra.mxu0 0
          %1535 = vmatpush.bf16.msra.mxu0 0
          %1536 = vmatpush.bf16.msra.mxu0 0
          %1537 = vmatpush.bf16.msra.mxu0 0
          %1538 = vmatpush.bf16.msra.mxu0 0
          %1539 = vmatpush.bf16.msra.mxu0 0
          %1540 = vmatpush.bf16.msra.mxu0 %v1528
          %1541 = vmatmul.bf16.gmra.mxu0 %v1531
          %v1542 = vpop.f32.mrf.mxu0
          %v1543 = vadd.f32 0.0, %v1542
          %v1544 = vpop.f32.mrf.mxu0
          %v1545 = vadd.f32 0.0, %v1544
          %1546 = vdwg.mxu0
          %v1549 = vunpack.c.l.b16 %v1513
          %v1550 = vunpack.c.l.b16 %v1514
          %v1551 = vpack.c.b16 %v1550, %v1549
          %v1554 = vunpack.c.l.b16 %v1505
          %v1555 = vunpack.c.l.b16 %v1506
          %v1556 = vpack.c.b16 %v1555, %v1554
          %v1559 = vsel %vm1394, %v1551, 0
          %1561 = vmatpush.bf16.msra.mxu0 0
          %1562 = vmatpush.bf16.msra.mxu0 0
          %1563 = vmatpush.bf16.msra.mxu0 0
          %1564 = vmatpush.bf16.msra.mxu0 0
          %1565 = vmatpush.bf16.msra.mxu0 0
          %1566 = vmatpush.bf16.msra.mxu0 0
          %1567 = vmatpush.bf16.msra.mxu0 0
          %1568 = vmatpush.bf16.msra.mxu0 %v1556
          %1569 = vmatmul.bf16.gmra.mxu0 %v1559
          %v1570 = vpop.f32.mrf.mxu0
          %v1571 = vadd.f32 0.0, %v1570
          %v1572 = vpop.f32.mrf.mxu0
          %v1573 = vadd.f32 0.0, %v1572
          %1574 = vdwg.mxu0
          %v1577 = vunpack.c.l.b16 %v1515
          %v1578 = vunpack.c.l.b16 %v1516
          %v1579 = vpack.c.b16 %v1578, %v1577
          %v1582 = vunpack.c.l.b16 %v1507
          %v1583 = vunpack.c.l.b16 %v1508
          %v1584 = vpack.c.b16 %v1583, %v1582
          %v1587 = vsel %vm1394, %v1579, 0
          %1589 = vmatpush.bf16.msra.mxu0 0
          %1590 = vmatpush.bf16.msra.mxu0 0
          %1591 = vmatpush.bf16.msra.mxu0 0
          %1592 = vmatpush.bf16.msra.mxu0 0
          %1593 = vmatpush.bf16.msra.mxu0 0
          %1594 = vmatpush.bf16.msra.mxu0 0
          %1595 = vmatpush.bf16.msra.mxu0 0
          %1596 = vmatpush.bf16.msra.mxu0 %v1584
          %1597 = vmatmul.bf16.gmra.mxu0 %v1587
          %v1598 = vpop.f32.mrf.mxu0
          %v1599 = vadd.f32 0.0, %v1598
          %v1600 = vpop.f32.mrf.mxu0
          %v1601 = vadd.f32 0.0, %v1600
          %1602 = vdwg.mxu0
          %v1605 = vunpack.c.l.b16 %v1517
          %v1606 = vunpack.c.l.b16 %v1518
          %v1607 = vpack.c.b16 %v1606, %v1605
          %v1610 = vunpack.c.l.b16 %v1509
          %v1611 = vunpack.c.l.b16 %v1510
          %v1612 = vpack.c.b16 %v1611, %v1610
          %v1615 = vsel %vm1394, %v1607, 0
          %1617 = vmatpush.bf16.msra.mxu0 0
          %1618 = vmatpush.bf16.msra.mxu0 0
          %1619 = vmatpush.bf16.msra.mxu0 0
          %1620 = vmatpush.bf16.msra.mxu0 0
          %1621 = vmatpush.bf16.msra.mxu0 0
          %1622 = vmatpush.bf16.msra.mxu0 0
          %1623 = vmatpush.bf16.msra.mxu0 0
          %1624 = vmatpush.bf16.msra.mxu0 %v1612
          %1625 = vmatmul.bf16.gmra.mxu0 %v1615
          %v1626 = vpop.f32.mrf.mxu0
          %v1627 = vadd.f32 0.0, %v1626
          %v1628 = vpop.f32.mrf.mxu0
          %v1629 = vadd.f32 0.0, %v1628
          %1630 = vdwg.mxu0
          %v1631 = vsel %vm1202, %v1543, 0.0
          %v1632 = vsel %vm1202, %v1571, 0.0
          %v1633 = vadd.f32 %v1631, %v1632
          %v1634 = vsel %vm1202, %v1599, 0.0
          %v1635 = vadd.f32 %v1633, %v1634
          %v1636 = vsel %vm1202, %v1627, 0.0
          %v1637 = vadd.f32 %v1635, %v1636
          %v1638 = vsel %vm1202, %v1545, 0.0
          %v1639 = vsel %vm1202, %v1573, 0.0
          %v1640 = vadd.f32 %v1638, %v1639
          %v1641 = vsel %vm1202, %v1601, 0.0
          %v1642 = vadd.f32 %v1640, %v1641
          %v1643 = vsel %vm1202, %v1629, 0.0
          %v1644 = vadd.f32 %v1642, %v1643
          %v1645 = vperm.slane %v1197, 0
          %v1646 = vadd.f32 %v1637, %v1645
          %v1647 = vadd.f32 %v1644, %v1645
          %v1648 = vmax.f32 %v1646, 0.0
          %v1649 = vmax.f32 %v1647, 0.0
          %v1650 = vperm.slane %v1197, 1
          %v1651 = vmul.f32 %v1648, %v1650
          %v1652 = vmul.f32 %v1649, %v1650
          %v1653 = vperm.slane %v1197, 2
          %v1654 = vadd.f32 %v1651, %v1653
          %v1655 = vadd.f32 %v1652, %v1653
          %s1656 = scalar_lea.vmem %s18, 4
          %v1657 = vld [vmem:[%s1656] sm:$0x7]
          %s1658 = scalar_lea.vmem %s15, 32
          %v1659 = vld [vmem:[%s1658] sm:$0xff]
          %v1660 = vld [vmem:[%s1658 + $0x8] sm:$0xff]
          %v1661 = vld [vmem:[%s1658 + $0x10] sm:$0xff]
          %v1662 = vld [vmem:[%s1658 + $0x18] sm:$0xff]
          %v1664 = vsel %vm1202, %v1654, 0
          %v1667 = vsel %vm1202, %v1655, 0
          %1669 = vmatpush.msra.mxu0 0.0
          %1670 = vmatpush.msra.mxu0 0.0
          %1671 = vmatpush.msra.mxu0 0.0
          %1672 = vmatpush.msra.mxu0 0.0
          %1673 = vmatpush.msra.mxu0 0.0
          %1674 = vmatpush.msra.mxu0 0.0
          %1675 = vmatpush.msra.mxu0 0.0
          %1676 = vmatpush.msra.mxu0 0.0
          %1677 = vmatpush.msra.mxu0 0.0
          %1678 = vmatpush.msra.mxu0 0.0
          %1679 = vmatpush.msra.mxu0 0.0
          %1680 = vmatpush.msra.mxu0 0.0
          %1681 = vmatpush.msra.mxu0 %v1662
          %1682 = vmatpush.msra.mxu0 %v1661
          %1683 = vmatpush.msra.mxu0 %v1660
          %1684 = vmatpush.msra.mxu0 %v1659
          %1685 = vmatmul.f32.gmra.mxu0 %v1664
          %v1686 = vpop.f32.mrf.mxu0
          %v1687 = vadd.f32 0.0, %v1686
          %1688 = vmatmul.f32.gmra.mxu0 %v1667
          %v1689 = vpop.f32.mrf.mxu0
          %v1690 = vadd.f32 0.0, %v1689
          %1691 = vdwg.mxu0
          %s1692 = scalar_lea.vmem %s16, 4
          %v1693 = vld [vmem:[%s1692] sm:$0xf]
          %v1695 = vsel %vm1202, %v1693, 0
          %v1698 = vsel %vm1202, %v1687, 0
          %v1701 = vsel %vm1202, %v1690, 0
          %1703 = vmatpush.xpose.msra.mxu0 0.0
          %1704 = vmatpush.xpose.msra.mxu0 0.0
          %1705 = vmatpush.xpose.msra.mxu0 0.0
          %1706 = vmatpush.xpose.msra.mxu0 0.0
          %1707 = vmatpush.xpose.msra.mxu0 0.0
          %1708 = vmatpush.xpose.msra.mxu0 0.0
          %1709 = vmatpush.xpose.msra.mxu0 0.0
          %1710 = vmatpush.xpose.msra.mxu0 0.0
          %1711 = vmatpush.xpose.msra.mxu0 0.0
          %1712 = vmatpush.xpose.msra.mxu0 0.0
          %1713 = vmatpush.xpose.msra.mxu0 0.0
          %1714 = vmatpush.xpose.msra.mxu0 0.0
          %1715 = vmatpush.xpose.msra.mxu0 0.0
          %1716 = vmatpush.xpose.msra.mxu0 0.0
          %1717 = vmatpush.xpose.msra.mxu0 %v1701
          %1718 = vmatpush.xpose.msra.mxu0 %v1698
          %1719 = vmatmul.f32.gmra.mxu0 %v1695
          %v1720 = vpop.f32.mrf.mxu0
          %v1721 = vadd.f32 0.0, %v1720
          %1722 = vdwg.mxu0
          %s1723 = scalar_lea.vmem %s17, 4
          %v1724 = vld [vmem:[%s1723] sm:$0xf]
          %v1726 = vsel %vm1202, %v1724, 0
          %1728 = vmatpush.xpose.msra.mxu0 0.0
          %1729 = vmatpush.xpose.msra.mxu0 0.0
          %1730 = vmatpush.xpose.msra.mxu0 0.0
          %1731 = vmatpush.xpose.msra.mxu0 0.0
          %1732 = vmatpush.xpose.msra.mxu0 0.0
          %1733 = vmatpush.xpose.msra.mxu0 0.0
          %1734 = vmatpush.xpose.msra.mxu0 0.0
          %1735 = vmatpush.xpose.msra.mxu0 0.0
          %1736 = vmatpush.xpose.msra.mxu0 0.0
          %1737 = vmatpush.xpose.msra.mxu0 0.0
          %1738 = vmatpush.xpose.msra.mxu0 0.0
          %1739 = vmatpush.xpose.msra.mxu0 0.0
          %1740 = vmatpush.xpose.msra.mxu0 0.0
          %1741 = vmatpush.xpose.msra.mxu0 0.0
          %1742 = vmatpush.xpose.msra.mxu0 %v1701
          %1743 = vmatpush.xpose.msra.mxu0 %v1698
          %1744 = vmatmul.f32.gmra.mxu0 %v1726
          %v1745 = vpop.f32.mrf.mxu0
          %v1746 = vadd.f32 0.0, %v1745
          %1747 = vdwg.mxu0
          %v1748 = vperm.slane %v1746, 0
          %v1749 = vlaneseq
          %v1750 = vshrl.u32 %v1749, 7
          %1752 = vset.pattern.permute.xlu0 %v1750
          %1753 = vperm.xlu0 %1752, %v1748
          %v1754 = vpop.permute.xlu0 %1753
          %v1755 = vlaneseq
          %v1756 = vshrl.u32 %v1755, 7
          %v1757 = vadd.s32 %v1756, 8
          %1758 = vset.pattern.permute.xlu0 %v1757
          %1759 = vperm.xlu0 %1758, %v1748
          %v1760 = vpop.permute.xlu0 %1759
          %v1761 = vperm.slane %v1746, 1
          %v1762 = vlaneseq
          %v1763 = vshrl.u32 %v1762, 7
          %1765 = vset.pattern.permute.xlu0 %v1763
          %1766 = vperm.xlu0 %1765, %v1761
          %v1767 = vpop.permute.xlu0 %1766
          %v1768 = vlaneseq
          %v1769 = vshrl.u32 %v1768, 7
          %v1770 = vadd.s32 %v1769, 8
          %1771 = vset.pattern.permute.xlu0 %v1770
          %1772 = vperm.xlu0 %1771, %v1761
          %v1773 = vpop.permute.xlu0 %1772
          %v1774 = vperm.slane %v1746, 2
          %v1775 = vlaneseq
          %v1776 = vshrl.u32 %v1775, 7
          %1778 = vset.pattern.permute.xlu0 %v1776
          %1779 = vperm.xlu0 %1778, %v1774
          %v1780 = vpop.permute.xlu0 %1779
          %v1781 = vlaneseq
          %v1782 = vshrl.u32 %v1781, 7
          %v1783 = vadd.s32 %v1782, 8
          %1784 = vset.pattern.permute.xlu0 %v1783
          %1785 = vperm.xlu0 %1784, %v1774
          %v1786 = vpop.permute.xlu0 %1785
          %v1787 = vperm.slane %v1746, 3
          %v1788 = vlaneseq
          %v1789 = vshrl.u32 %v1788, 7
          %1791 = vset.pattern.permute.xlu0 %v1789
          %1792 = vperm.xlu0 %1791, %v1787
          %v1793 = vpop.permute.xlu0 %1792
          %v1794 = vlaneseq
          %v1795 = vshrl.u32 %v1794, 7
          %v1796 = vadd.s32 %v1795, 8
          %1797 = vset.pattern.permute.xlu0 %v1796
          %1798 = vperm.xlu0 %1797, %v1787
          %v1799 = vpop.permute.xlu0 %1798
          %v1801 = vrot.slane %v1721, 1
          %v1802 = vrot.slane %v1721, 2
          %v1803 = vrot.slane %v1721, 3
          %v1804 = vperm.slane %v1721, 0
          %v1805 = vperm.slane %v1801, 0
          %v1806 = vperm.slane %v1802, 0
          %v1807 = vperm.slane %v1803, 0
          %v1812 = vadd.f32 %v1754, %v1804
          %v1813 = vadd.f32 %v1760, %v1804
          %v1814 = vadd.f32 %v1767, %v1805
          %v1815 = vadd.f32 %v1773, %v1805
          %v1816 = vadd.f32 %v1780, %v1806
          %v1817 = vadd.f32 %v1786, %v1806
          %v1818 = vadd.f32 %v1793, %v1807
          %v1819 = vadd.f32 %v1799, %v1807
          %vm1820 = vcmp.gt.f32.partialorder %v1812, 0.0
          %vm1821 = vcmp.gt.f32.partialorder %v1813, 0.0
          %vm1822 = vcmp.gt.f32.partialorder %v1814, 0.0
          %vm1823 = vcmp.gt.f32.partialorder %v1815, 0.0
          %vm1824 = vcmp.gt.f32.partialorder %v1816, 0.0
          %vm1825 = vcmp.gt.f32.partialorder %v1817, 0.0
          %vm1826 = vcmp.gt.f32.partialorder %v1818, 0.0
          %vm1827 = vcmp.gt.f32.partialorder %v1819, 0.0
          %v1828 = vmul.f32 %v1812, 0.2
          %v1829 = vmul.f32 %v1813, 0.2
          %v1830 = vmul.f32 %v1814, 0.2
          %v1831 = vmul.f32 %v1815, 0.2
          %v1832 = vmul.f32 %v1816, 0.2
          %v1833 = vmul.f32 %v1817, 0.2
          %v1834 = vmul.f32 %v1818, 0.2
          %v1835 = vmul.f32 %v1819, 0.2
          %v1836 = vsel %vm1820, %v1812, %v1828
          %v1837 = vsel %vm1821, %v1813, %v1829
          %v1838 = vsel %vm1822, %v1814, %v1830
          %v1839 = vsel %vm1823, %v1815, %v1831
          %v1840 = vsel %vm1824, %v1816, %v1832
          %v1841 = vsel %vm1825, %v1817, %v1833
          %v1842 = vsel %vm1826, %v1818, %v1834
          %v1843 = vsel %vm1827, %v1819, %v1835
          %v1844 = vsel %vm1384, %v1836, -1e+30
          %v1845 = vsel %vm1385, %v1837, -1e+30
          %v1846 = vsel %vm1384, %v1838, -1e+30
          %v1847 = vsel %vm1385, %v1839, -1e+30
          %v1848 = vsel %vm1384, %v1840, -1e+30
          %v1849 = vsel %vm1385, %v1841, -1e+30
          %v1850 = vsel %vm1384, %v1842, -1e+30
          %v1851 = vsel %vm1385, %v1843, -1e+30
          %v1852 = vsel %vm1394, %v1844, -inf
          %1853 = vmax.xlane.f32.xlu0 %v1852
          %v1854 = vpop.xlane.xlu0 %1853
          %v1855 = vsel %vm1394, %v1845, -inf
          %1856 = vmax.xlane.f32.xlu0 %v1855
          %v1857 = vpop.xlane.xlu0 %1856
          %v1858 = vsel %vm1394, %v1846, -inf
          %1859 = vmax.xlane.f32.xlu0 %v1858
          %v1860 = vpop.xlane.xlu0 %1859
          %v1861 = vsel %vm1394, %v1847, -inf
          %1862 = vmax.xlane.f32.xlu0 %v1861
          %v1863 = vpop.xlane.xlu0 %1862
          %v1864 = vsel %vm1394, %v1848, -inf
          %1865 = vmax.xlane.f32.xlu0 %v1864
          %v1866 = vpop.xlane.xlu0 %1865
          %v1867 = vsel %vm1394, %v1849, -inf
          %1868 = vmax.xlane.f32.xlu0 %v1867
          %v1869 = vpop.xlane.xlu0 %1868
          %v1870 = vsel %vm1394, %v1850, -inf
          %1871 = vmax.xlane.f32.xlu0 %v1870
          %v1872 = vpop.xlane.xlu0 %1871
          %v1873 = vsel %vm1394, %v1851, -inf
          %1874 = vmax.xlane.f32.xlu0 %v1873
          %v1875 = vpop.xlane.xlu0 %1874
          %v1876 = vsub.f32 %v1844, %v1854
          %v1877 = vsub.f32 %v1845, %v1857
          %v1878 = vsub.f32 %v1846, %v1860
          %v1879 = vsub.f32 %v1847, %v1863
          %v1880 = vsub.f32 %v1848, %v1866
          %v1881 = vsub.f32 %v1849, %v1869
          %v1882 = vsub.f32 %v1850, %v1872
          %v1883 = vsub.f32 %v1851, %v1875
          %v1884 = vmul.f32 %v1876, 1.442695
          %v1885 = vpow.pop %v1884
          %v1886 = vmul.f32 %v1877, 1.442695
          %v1887 = vpow.pop %v1886
          %v1888 = vmul.f32 %v1878, 1.442695
          %v1889 = vpow.pop %v1888
          %v1890 = vmul.f32 %v1879, 1.442695
          %v1891 = vpow.pop %v1890
          %v1892 = vmul.f32 %v1880, 1.442695
          %v1893 = vpow.pop %v1892
          %v1894 = vmul.f32 %v1881, 1.442695
          %v1895 = vpow.pop %v1894
          %v1896 = vmul.f32 %v1882, 1.442695
          %v1897 = vpow.pop %v1896
          %v1898 = vmul.f32 %v1883, 1.442695
          %v1899 = vpow.pop %v1898
          %v1900 = vsel %vm1394, %v1885, 0.0
          %1901 = vadd.xlane.f32.xlu0 %v1900
          %v1902 = vpop.xlane.xlu0 %1901
          %v1903 = vsel %vm1394, %v1887, 0.0
          %1904 = vadd.xlane.f32.xlu0 %v1903
          %v1905 = vpop.xlane.xlu0 %1904
          %v1906 = vsel %vm1394, %v1889, 0.0
          %1907 = vadd.xlane.f32.xlu0 %v1906
          %v1908 = vpop.xlane.xlu0 %1907
          %v1909 = vsel %vm1394, %v1891, 0.0
          %1910 = vadd.xlane.f32.xlu0 %v1909
          %v1911 = vpop.xlane.xlu0 %1910
          %v1912 = vsel %vm1394, %v1893, 0.0
          %1913 = vadd.xlane.f32.xlu0 %v1912
          %v1914 = vpop.xlane.xlu0 %1913
          %v1915 = vsel %vm1394, %v1895, 0.0
          %1916 = vadd.xlane.f32.xlu0 %v1915
          %v1917 = vpop.xlane.xlu0 %1916
          %v1918 = vsel %vm1394, %v1897, 0.0
          %1919 = vadd.xlane.f32.xlu0 %v1918
          %v1920 = vpop.xlane.xlu0 %1919
          %v1921 = vsel %vm1394, %v1899, 0.0
          %1922 = vadd.xlane.f32.xlu0 %v1921
          %v1923 = vpop.xlane.xlu0 %1922
          %v1924 = vrcp.pop %v1902
          %v1925 = vrcp.pop %v1905
          %v1926 = vrcp.pop %v1908
          %v1927 = vrcp.pop %v1911
          %v1928 = vrcp.pop %v1914
          %v1929 = vrcp.pop %v1917
          %v1930 = vrcp.pop %v1920
          %v1931 = vrcp.pop %v1923
          %v1932 = vmul.f32 %v1885, %v1924
          %v1933 = vmul.f32 %v1887, %v1925
          %v1934 = vmul.f32 %v1889, %v1926
          %v1935 = vmul.f32 %v1891, %v1927
          %v1936 = vmul.f32 %v1893, %v1928
          %v1937 = vmul.f32 %v1895, %v1929
          %v1938 = vmul.f32 %v1897, %v1930
          %v1939 = vmul.f32 %v1899, %v1931
          %v1940 = vmul.f32 %v1687, %v1487
          %v1941 = vmul.f32 %v1690, %v1487
          %v1942 = vmul.f32 %v1687, %v1488
          %v1943 = vmul.f32 %v1690, %v1488
          %v1944 = vmul.f32 %v1687, %v1489
          %v1945 = vmul.f32 %v1690, %v1489
          %v1946 = vmul.f32 %v1687, %v1490
          %v1947 = vmul.f32 %v1690, %v1490
          %v1948 = vpack.c.bf16 %v1940, %v1940
          %v1949 = vpack.c.bf16 %v1941, %v1941
          %v1950 = vpack.c.bf16 %v1942, %v1942
          %v1951 = vpack.c.bf16 %v1943, %v1943
          %v1952 = vpack.c.bf16 %v1944, %v1944
          %v1953 = vpack.c.bf16 %v1945, %v1945
          %v1954 = vpack.c.bf16 %v1946, %v1946
          %v1955 = vpack.c.bf16 %v1947, %v1947
          %v1956 = vpack.c.bf16 %v1932, %v1932
          %v1957 = vpack.c.bf16 %v1933, %v1933
          %v1958 = vpack.c.bf16 %v1934, %v1934
          %v1959 = vpack.c.bf16 %v1935, %v1935
          %v1960 = vpack.c.bf16 %v1936, %v1936
          %v1961 = vpack.c.bf16 %v1937, %v1937
          %v1962 = vpack.c.bf16 %v1938, %v1938
          %v1963 = vpack.c.bf16 %v1939, %v1939
          %v1966 = vunpack.c.l.b16 %v1956
          %v1967 = vunpack.c.l.b16 %v1957
          %v1968 = vpack.c.b16 %v1967, %v1966
          %v1971 = vunpack.c.l.b16 %v1948
          %v1972 = vunpack.c.l.b16 %v1949
          %v1973 = vpack.c.b16 %v1972, %v1971
          %v1976 = vsel %vm1394, %v1968, 0
          %1978 = vmatpush.bf16.msra.mxu0 0
          %1979 = vmatpush.bf16.msra.mxu0 0
          %1980 = vmatpush.bf16.msra.mxu0 0
          %1981 = vmatpush.bf16.msra.mxu0 0
          %1982 = vmatpush.bf16.msra.mxu0 0
          %1983 = vmatpush.bf16.msra.mxu0 0
          %1984 = vmatpush.bf16.msra.mxu0 0
          %1985 = vmatpush.bf16.msra.mxu0 %v1973
          %1986 = vmatmul.bf16.gmra.mxu0 %v1976
          %v1987 = vpop.f32.mrf.mxu0
          %v1988 = vadd.f32 0.0, %v1987
          %v1989 = vpop.f32.mrf.mxu0
          %v1990 = vadd.f32 0.0, %v1989
          %1991 = vdwg.mxu0
          %v1994 = vunpack.c.l.b16 %v1958
          %v1995 = vunpack.c.l.b16 %v1959
          %v1996 = vpack.c.b16 %v1995, %v1994
          %v1999 = vunpack.c.l.b16 %v1950
          %v2000 = vunpack.c.l.b16 %v1951
          %v2001 = vpack.c.b16 %v2000, %v1999
          %v2004 = vsel %vm1394, %v1996, 0
          %2006 = vmatpush.bf16.msra.mxu0 0
          %2007 = vmatpush.bf16.msra.mxu0 0
          %2008 = vmatpush.bf16.msra.mxu0 0
          %2009 = vmatpush.bf16.msra.mxu0 0
          %2010 = vmatpush.bf16.msra.mxu0 0
          %2011 = vmatpush.bf16.msra.mxu0 0
          %2012 = vmatpush.bf16.msra.mxu0 0
          %2013 = vmatpush.bf16.msra.mxu0 %v2001
          %2014 = vmatmul.bf16.gmra.mxu0 %v2004
          %v2015 = vpop.f32.mrf.mxu0
          %v2016 = vadd.f32 0.0, %v2015
          %v2017 = vpop.f32.mrf.mxu0
          %v2018 = vadd.f32 0.0, %v2017
          %2019 = vdwg.mxu0
          %v2022 = vunpack.c.l.b16 %v1960
          %v2023 = vunpack.c.l.b16 %v1961
          %v2024 = vpack.c.b16 %v2023, %v2022
          %v2027 = vunpack.c.l.b16 %v1952
          %v2028 = vunpack.c.l.b16 %v1953
          %v2029 = vpack.c.b16 %v2028, %v2027
          %v2032 = vsel %vm1394, %v2024, 0
          %2034 = vmatpush.bf16.msra.mxu0 0
          %2035 = vmatpush.bf16.msra.mxu0 0
          %2036 = vmatpush.bf16.msra.mxu0 0
          %2037 = vmatpush.bf16.msra.mxu0 0
          %2038 = vmatpush.bf16.msra.mxu0 0
          %2039 = vmatpush.bf16.msra.mxu0 0
          %2040 = vmatpush.bf16.msra.mxu0 0
          %2041 = vmatpush.bf16.msra.mxu0 %v2029
          %2042 = vmatmul.bf16.gmra.mxu0 %v2032
          %v2043 = vpop.f32.mrf.mxu0
          %v2044 = vadd.f32 0.0, %v2043
          %v2045 = vpop.f32.mrf.mxu0
          %v2046 = vadd.f32 0.0, %v2045
          %2047 = vdwg.mxu0
          %v2050 = vunpack.c.l.b16 %v1962
          %v2051 = vunpack.c.l.b16 %v1963
          %v2052 = vpack.c.b16 %v2051, %v2050
          %v2055 = vunpack.c.l.b16 %v1954
          %v2056 = vunpack.c.l.b16 %v1955
          %v2057 = vpack.c.b16 %v2056, %v2055
          %v2060 = vsel %vm1394, %v2052, 0
          %2062 = vmatpush.bf16.msra.mxu0 0
          %2063 = vmatpush.bf16.msra.mxu0 0
          %2064 = vmatpush.bf16.msra.mxu0 0
          %2065 = vmatpush.bf16.msra.mxu0 0
          %2066 = vmatpush.bf16.msra.mxu0 0
          %2067 = vmatpush.bf16.msra.mxu0 0
          %2068 = vmatpush.bf16.msra.mxu0 0
          %2069 = vmatpush.bf16.msra.mxu0 %v2057
          %2070 = vmatmul.bf16.gmra.mxu0 %v2060
          %v2071 = vpop.f32.mrf.mxu0
          %v2072 = vadd.f32 0.0, %v2071
          %v2073 = vpop.f32.mrf.mxu0
          %v2074 = vadd.f32 0.0, %v2073
          %2075 = vdwg.mxu0
          %v2076 = vsel %vm1202, %v1988, 0.0
          %v2077 = vsel %vm1202, %v2016, 0.0
          %v2078 = vadd.f32 %v2076, %v2077
          %v2079 = vsel %vm1202, %v2044, 0.0
          %v2080 = vadd.f32 %v2078, %v2079
          %v2081 = vsel %vm1202, %v2072, 0.0
          %v2082 = vadd.f32 %v2080, %v2081
          %v2083 = vsel %vm1202, %v1990, 0.0
          %v2084 = vsel %vm1202, %v2018, 0.0
          %v2085 = vadd.f32 %v2083, %v2084
          %v2086 = vsel %vm1202, %v2046, 0.0
          %v2087 = vadd.f32 %v2085, %v2086
          %v2088 = vsel %vm1202, %v2074, 0.0
          %v2089 = vadd.f32 %v2087, %v2088
          %v2090 = vperm.slane %v1657, 0
          %v2091 = vadd.f32 %v2082, %v2090
          %v2092 = vadd.f32 %v2089, %v2090
          %v2093 = vmax.f32 %v2091, 0.0
          %v2094 = vmax.f32 %v2092, 0.0
          %v2095 = vperm.slane %v1657, 1
          %v2096 = vmul.f32 %v2093, %v2095
          %v2097 = vmul.f32 %v2094, %v2095
          %v2098 = vperm.slane %v1657, 2
          %v2099 = vadd.f32 %v2096, %v2098
          %v2100 = vadd.f32 %v2097, %v2098
          %v2101 = vadd.f32 %v2099, %v1654
          %v2102 = vadd.f32 %v2100, %v1655
          %s2103 = scalar_lea.vmem %s18, 8
          %v2104 = vld [vmem:[%s2103] sm:$0x7]
          %s2105 = scalar_lea.vmem %s15, 64
          %v2106 = vld [vmem:[%s2105] sm:$0xff]
          %v2107 = vld [vmem:[%s2105 + $0x8] sm:$0xff]
          %v2108 = vld [vmem:[%s2105 + $0x10] sm:$0xff]
          %v2109 = vld [vmem:[%s2105 + $0x18] sm:$0xff]
          %v2111 = vsel %vm1202, %v2101, 0
          %v2114 = vsel %vm1202, %v2102, 0
          %2116 = vmatpush.msra.mxu0 0.0
          %2117 = vmatpush.msra.mxu0 0.0
          %2118 = vmatpush.msra.mxu0 0.0
          %2119 = vmatpush.msra.mxu0 0.0
          %2120 = vmatpush.msra.mxu0 0.0
          %2121 = vmatpush.msra.mxu0 0.0
          %2122 = vmatpush.msra.mxu0 0.0
          %2123 = vmatpush.msra.mxu0 0.0
          %2124 = vmatpush.msra.mxu0 0.0
          %2125 = vmatpush.msra.mxu0 0.0
          %2126 = vmatpush.msra.mxu0 0.0
          %2127 = vmatpush.msra.mxu0 0.0
          %2128 = vmatpush.msra.mxu0 %v2109
          %2129 = vmatpush.msra.mxu0 %v2108
          %2130 = vmatpush.msra.mxu0 %v2107
          %2131 = vmatpush.msra.mxu0 %v2106
          %2132 = vmatmul.f32.gmra.mxu0 %v2111
          %v2133 = vpop.f32.mrf.mxu0
          %v2134 = vadd.f32 0.0, %v2133
          %2135 = vmatmul.f32.gmra.mxu0 %v2114
          %v2136 = vpop.f32.mrf.mxu0
          %v2137 = vadd.f32 0.0, %v2136
          %2138 = vdwg.mxu0
          %s2139 = scalar_lea.vmem %s16, 8
          %v2140 = vld [vmem:[%s2139] sm:$0xf]
          %v2142 = vsel %vm1202, %v2140, 0
          %v2145 = vsel %vm1202, %v2134, 0
          %v2148 = vsel %vm1202, %v2137, 0
          %2150 = vmatpush.xpose.msra.mxu0 0.0
          %2151 = vmatpush.xpose.msra.mxu0 0.0
          %2152 = vmatpush.xpose.msra.mxu0 0.0
          %2153 = vmatpush.xpose.msra.mxu0 0.0
          %2154 = vmatpush.xpose.msra.mxu0 0.0
          %2155 = vmatpush.xpose.msra.mxu0 0.0
          %2156 = vmatpush.xpose.msra.mxu0 0.0
          %2157 = vmatpush.xpose.msra.mxu0 0.0
          %2158 = vmatpush.xpose.msra.mxu0 0.0
          %2159 = vmatpush.xpose.msra.mxu0 0.0
          %2160 = vmatpush.xpose.msra.mxu0 0.0
          %2161 = vmatpush.xpose.msra.mxu0 0.0
          %2162 = vmatpush.xpose.msra.mxu0 0.0
          %2163 = vmatpush.xpose.msra.mxu0 0.0
          %2164 = vmatpush.xpose.msra.mxu0 %v2148
          %2165 = vmatpush.xpose.msra.mxu0 %v2145
          %2166 = vmatmul.f32.gmra.mxu0 %v2142
          %v2167 = vpop.f32.mrf.mxu0
          %v2168 = vadd.f32 0.0, %v2167
          %2169 = vdwg.mxu0
          %s2170 = scalar_lea.vmem %s17, 8
          %v2171 = vld [vmem:[%s2170] sm:$0xf]
          %v2173 = vsel %vm1202, %v2171, 0
          %2175 = vmatpush.xpose.msra.mxu0 0.0
          %2176 = vmatpush.xpose.msra.mxu0 0.0
          %2177 = vmatpush.xpose.msra.mxu0 0.0
          %2178 = vmatpush.xpose.msra.mxu0 0.0
          %2179 = vmatpush.xpose.msra.mxu0 0.0
          %2180 = vmatpush.xpose.msra.mxu0 0.0
          %2181 = vmatpush.xpose.msra.mxu0 0.0
          %2182 = vmatpush.xpose.msra.mxu0 0.0
          %2183 = vmatpush.xpose.msra.mxu0 0.0
          %2184 = vmatpush.xpose.msra.mxu0 0.0
          %2185 = vmatpush.xpose.msra.mxu0 0.0
          %2186 = vmatpush.xpose.msra.mxu0 0.0
          %2187 = vmatpush.xpose.msra.mxu0 0.0
          %2188 = vmatpush.xpose.msra.mxu0 0.0
          %2189 = vmatpush.xpose.msra.mxu0 %v2148
          %2190 = vmatpush.xpose.msra.mxu0 %v2145
          %2191 = vmatmul.f32.gmra.mxu0 %v2173
          %v2192 = vpop.f32.mrf.mxu0
          %v2193 = vadd.f32 0.0, %v2192
          %2194 = vdwg.mxu0
          %v2195 = vperm.slane %v2193, 0
          %v2196 = vlaneseq
          %v2197 = vshrl.u32 %v2196, 7
          %2199 = vset.pattern.permute.xlu0 %v2197
          %2200 = vperm.xlu0 %2199, %v2195
          %v2201 = vpop.permute.xlu0 %2200
          %v2202 = vlaneseq
          %v2203 = vshrl.u32 %v2202, 7
          %v2204 = vadd.s32 %v2203, 8
          %2205 = vset.pattern.permute.xlu0 %v2204
          %2206 = vperm.xlu0 %2205, %v2195
          %v2207 = vpop.permute.xlu0 %2206
          %v2208 = vperm.slane %v2193, 1
          %v2209 = vlaneseq
          %v2210 = vshrl.u32 %v2209, 7
          %2212 = vset.pattern.permute.xlu0 %v2210
          %2213 = vperm.xlu0 %2212, %v2208
          %v2214 = vpop.permute.xlu0 %2213
          %v2215 = vlaneseq
          %v2216 = vshrl.u32 %v2215, 7
          %v2217 = vadd.s32 %v2216, 8
          %2218 = vset.pattern.permute.xlu0 %v2217
          %2219 = vperm.xlu0 %2218, %v2208
          %v2220 = vpop.permute.xlu0 %2219
          %v2221 = vperm.slane %v2193, 2
          %v2222 = vlaneseq
          %v2223 = vshrl.u32 %v2222, 7
          %2225 = vset.pattern.permute.xlu0 %v2223
          %2226 = vperm.xlu0 %2225, %v2221
          %v2227 = vpop.permute.xlu0 %2226
          %v2228 = vlaneseq
          %v2229 = vshrl.u32 %v2228, 7
          %v2230 = vadd.s32 %v2229, 8
          %2231 = vset.pattern.permute.xlu0 %v2230
          %2232 = vperm.xlu0 %2231, %v2221
          %v2233 = vpop.permute.xlu0 %2232
          %v2234 = vperm.slane %v2193, 3
          %v2235 = vlaneseq
          %v2236 = vshrl.u32 %v2235, 7
          %2238 = vset.pattern.permute.xlu0 %v2236
          %2239 = vperm.xlu0 %2238, %v2234
          %v2240 = vpop.permute.xlu0 %2239
          %v2241 = vlaneseq
          %v2242 = vshrl.u32 %v2241, 7
          %v2243 = vadd.s32 %v2242, 8
          %2244 = vset.pattern.permute.xlu0 %v2243
          %2245 = vperm.xlu0 %2244, %v2234
          %v2246 = vpop.permute.xlu0 %2245
          %v2248 = vrot.slane %v2168, 1
          %v2249 = vrot.slane %v2168, 2
          %v2250 = vrot.slane %v2168, 3
          %v2251 = vperm.slane %v2168, 0
          %v2252 = vperm.slane %v2248, 0
          %v2253 = vperm.slane %v2249, 0
          %v2254 = vperm.slane %v2250, 0
          %v2259 = vadd.f32 %v2201, %v2251
          %v2260 = vadd.f32 %v2207, %v2251
          %v2261 = vadd.f32 %v2214, %v2252
          %v2262 = vadd.f32 %v2220, %v2252
          %v2263 = vadd.f32 %v2227, %v2253
          %v2264 = vadd.f32 %v2233, %v2253
          %v2265 = vadd.f32 %v2240, %v2254
          %v2266 = vadd.f32 %v2246, %v2254
          %vm2267 = vcmp.gt.f32.partialorder %v2259, 0.0
          %vm2268 = vcmp.gt.f32.partialorder %v2260, 0.0
          %vm2269 = vcmp.gt.f32.partialorder %v2261, 0.0
          %vm2270 = vcmp.gt.f32.partialorder %v2262, 0.0
          %vm2271 = vcmp.gt.f32.partialorder %v2263, 0.0
          %vm2272 = vcmp.gt.f32.partialorder %v2264, 0.0
          %vm2273 = vcmp.gt.f32.partialorder %v2265, 0.0
          %vm2274 = vcmp.gt.f32.partialorder %v2266, 0.0
          %v2275 = vmul.f32 %v2259, 0.2
          %v2276 = vmul.f32 %v2260, 0.2
          %v2277 = vmul.f32 %v2261, 0.2
          %v2278 = vmul.f32 %v2262, 0.2
          %v2279 = vmul.f32 %v2263, 0.2
          %v2280 = vmul.f32 %v2264, 0.2
          %v2281 = vmul.f32 %v2265, 0.2
          %v2282 = vmul.f32 %v2266, 0.2
          %v2283 = vsel %vm2267, %v2259, %v2275
          %v2284 = vsel %vm2268, %v2260, %v2276
          %v2285 = vsel %vm2269, %v2261, %v2277
          %v2286 = vsel %vm2270, %v2262, %v2278
          %v2287 = vsel %vm2271, %v2263, %v2279
          %v2288 = vsel %vm2272, %v2264, %v2280
          %v2289 = vsel %vm2273, %v2265, %v2281
          %v2290 = vsel %vm2274, %v2266, %v2282
          %v2291 = vsel %vm1384, %v2283, -1e+30
          %v2292 = vsel %vm1385, %v2284, -1e+30
          %v2293 = vsel %vm1384, %v2285, -1e+30
          %v2294 = vsel %vm1385, %v2286, -1e+30
          %v2295 = vsel %vm1384, %v2287, -1e+30
          %v2296 = vsel %vm1385, %v2288, -1e+30
          %v2297 = vsel %vm1384, %v2289, -1e+30
          %v2298 = vsel %vm1385, %v2290, -1e+30
          %v2299 = vsel %vm1394, %v2291, -inf
          %2300 = vmax.xlane.f32.xlu0 %v2299
          %v2301 = vpop.xlane.xlu0 %2300
          %v2302 = vsel %vm1394, %v2292, -inf
          %2303 = vmax.xlane.f32.xlu0 %v2302
          %v2304 = vpop.xlane.xlu0 %2303
          %v2305 = vsel %vm1394, %v2293, -inf
          %2306 = vmax.xlane.f32.xlu0 %v2305
          %v2307 = vpop.xlane.xlu0 %2306
          %v2308 = vsel %vm1394, %v2294, -inf
          %2309 = vmax.xlane.f32.xlu0 %v2308
          %v2310 = vpop.xlane.xlu0 %2309
          %v2311 = vsel %vm1394, %v2295, -inf
          %2312 = vmax.xlane.f32.xlu0 %v2311
          %v2313 = vpop.xlane.xlu0 %2312
          %v2314 = vsel %vm1394, %v2296, -inf
          %2315 = vmax.xlane.f32.xlu0 %v2314
          %v2316 = vpop.xlane.xlu0 %2315
          %v2317 = vsel %vm1394, %v2297, -inf
          %2318 = vmax.xlane.f32.xlu0 %v2317
          %v2319 = vpop.xlane.xlu0 %2318
          %v2320 = vsel %vm1394, %v2298, -inf
          %2321 = vmax.xlane.f32.xlu0 %v2320
          %v2322 = vpop.xlane.xlu0 %2321
          %v2323 = vsub.f32 %v2291, %v2301
          %v2324 = vsub.f32 %v2292, %v2304
          %v2325 = vsub.f32 %v2293, %v2307
          %v2326 = vsub.f32 %v2294, %v2310
          %v2327 = vsub.f32 %v2295, %v2313
          %v2328 = vsub.f32 %v2296, %v2316
          %v2329 = vsub.f32 %v2297, %v2319
          %v2330 = vsub.f32 %v2298, %v2322
          %v2331 = vmul.f32 %v2323, 1.442695
          %v2332 = vpow.pop %v2331
          %v2333 = vmul.f32 %v2324, 1.442695
          %v2334 = vpow.pop %v2333
          %v2335 = vmul.f32 %v2325, 1.442695
          %v2336 = vpow.pop %v2335
          %v2337 = vmul.f32 %v2326, 1.442695
          %v2338 = vpow.pop %v2337
          %v2339 = vmul.f32 %v2327, 1.442695
          %v2340 = vpow.pop %v2339
          %v2341 = vmul.f32 %v2328, 1.442695
          %v2342 = vpow.pop %v2341
          %v2343 = vmul.f32 %v2329, 1.442695
          %v2344 = vpow.pop %v2343
          %v2345 = vmul.f32 %v2330, 1.442695
          %v2346 = vpow.pop %v2345
          %v2347 = vsel %vm1394, %v2332, 0.0
          %2348 = vadd.xlane.f32.xlu0 %v2347
          %v2349 = vpop.xlane.xlu0 %2348
          %v2350 = vsel %vm1394, %v2334, 0.0
          %2351 = vadd.xlane.f32.xlu0 %v2350
          %v2352 = vpop.xlane.xlu0 %2351
          %v2353 = vsel %vm1394, %v2336, 0.0
          %2354 = vadd.xlane.f32.xlu0 %v2353
          %v2355 = vpop.xlane.xlu0 %2354
          %v2356 = vsel %vm1394, %v2338, 0.0
          %2357 = vadd.xlane.f32.xlu0 %v2356
          %v2358 = vpop.xlane.xlu0 %2357
          %v2359 = vsel %vm1394, %v2340, 0.0
          %2360 = vadd.xlane.f32.xlu0 %v2359
          %v2361 = vpop.xlane.xlu0 %2360
          %v2362 = vsel %vm1394, %v2342, 0.0
          %2363 = vadd.xlane.f32.xlu0 %v2362
          %v2364 = vpop.xlane.xlu0 %2363
          %v2365 = vsel %vm1394, %v2344, 0.0
          %2366 = vadd.xlane.f32.xlu0 %v2365
          %v2367 = vpop.xlane.xlu0 %2366
          %v2368 = vsel %vm1394, %v2346, 0.0
          %2369 = vadd.xlane.f32.xlu0 %v2368
          %v2370 = vpop.xlane.xlu0 %2369
          %v2371 = vrcp.pop %v2349
          %v2372 = vrcp.pop %v2352
          %v2373 = vrcp.pop %v2355
          %v2374 = vrcp.pop %v2358
          %v2375 = vrcp.pop %v2361
          %v2376 = vrcp.pop %v2364
          %v2377 = vrcp.pop %v2367
          %v2378 = vrcp.pop %v2370
          %v2379 = vmul.f32 %v2332, %v2371
          %v2380 = vmul.f32 %v2334, %v2372
          %v2381 = vmul.f32 %v2336, %v2373
          %v2382 = vmul.f32 %v2338, %v2374
          %v2383 = vmul.f32 %v2340, %v2375
          %v2384 = vmul.f32 %v2342, %v2376
          %v2385 = vmul.f32 %v2344, %v2377
          %v2386 = vmul.f32 %v2346, %v2378
          %v2387 = vmul.f32 %v2134, %v1487
          %v2388 = vmul.f32 %v2137, %v1487
          %v2389 = vmul.f32 %v2134, %v1488
          %v2390 = vmul.f32 %v2137, %v1488
          %v2391 = vmul.f32 %v2134, %v1489
          %v2392 = vmul.f32 %v2137, %v1489
          %v2393 = vmul.f32 %v2134, %v1490
          %v2394 = vmul.f32 %v2137, %v1490
          %v2395 = vpack.c.bf16 %v2387, %v2387
          %v2396 = vpack.c.bf16 %v2388, %v2388
          %v2397 = vpack.c.bf16 %v2389, %v2389
          %v2398 = vpack.c.bf16 %v2390, %v2390
          %v2399 = vpack.c.bf16 %v2391, %v2391
          %v2400 = vpack.c.bf16 %v2392, %v2392
          %v2401 = vpack.c.bf16 %v2393, %v2393
          %v2402 = vpack.c.bf16 %v2394, %v2394
          %v2403 = vpack.c.bf16 %v2379, %v2379
          %v2404 = vpack.c.bf16 %v2380, %v2380
          %v2405 = vpack.c.bf16 %v2381, %v2381
          %v2406 = vpack.c.bf16 %v2382, %v2382
          %v2407 = vpack.c.bf16 %v2383, %v2383
          %v2408 = vpack.c.bf16 %v2384, %v2384
          %v2409 = vpack.c.bf16 %v2385, %v2385
          %v2410 = vpack.c.bf16 %v2386, %v2386
          %v2413 = vunpack.c.l.b16 %v2403
          %v2414 = vunpack.c.l.b16 %v2404
          %v2415 = vpack.c.b16 %v2414, %v2413
          %v2418 = vunpack.c.l.b16 %v2395
          %v2419 = vunpack.c.l.b16 %v2396
          %v2420 = vpack.c.b16 %v2419, %v2418
          %v2423 = vsel %vm1394, %v2415, 0
          %2425 = vmatpush.bf16.msra.mxu0 0
          %2426 = vmatpush.bf16.msra.mxu0 0
          %2427 = vmatpush.bf16.msra.mxu0 0
          %2428 = vmatpush.bf16.msra.mxu0 0
          %2429 = vmatpush.bf16.msra.mxu0 0
          %2430 = vmatpush.bf16.msra.mxu0 0
          %2431 = vmatpush.bf16.msra.mxu0 0
          %2432 = vmatpush.bf16.msra.mxu0 %v2420
          %2433 = vmatmul.bf16.gmra.mxu0 %v2423
          %v2434 = vpop.f32.mrf.mxu0
          %v2435 = vadd.f32 0.0, %v2434
          %v2436 = vpop.f32.mrf.mxu0
          %v2437 = vadd.f32 0.0, %v2436
          %2438 = vdwg.mxu0
          %v2441 = vunpack.c.l.b16 %v2405
          %v2442 = vunpack.c.l.b16 %v2406
          %v2443 = vpack.c.b16 %v2442, %v2441
          %v2446 = vunpack.c.l.b16 %v2397
          %v2447 = vunpack.c.l.b16 %v2398
          %v2448 = vpack.c.b16 %v2447, %v2446
          %v2451 = vsel %vm1394, %v2443, 0
          %2453 = vmatpush.bf16.msra.mxu0 0
          %2454 = vmatpush.bf16.msra.mxu0 0
          %2455 = vmatpush.bf16.msra.mxu0 0
          %2456 = vmatpush.bf16.msra.mxu0 0
          %2457 = vmatpush.bf16.msra.mxu0 0
          %2458 = vmatpush.bf16.msra.mxu0 0
          %2459 = vmatpush.bf16.msra.mxu0 0
          %2460 = vmatpush.bf16.msra.mxu0 %v2448
          %2461 = vmatmul.bf16.gmra.mxu0 %v2451
          %v2462 = vpop.f32.mrf.mxu0
          %v2463 = vadd.f32 0.0, %v2462
          %v2464 = vpop.f32.mrf.mxu0
          %v2465 = vadd.f32 0.0, %v2464
          %2466 = vdwg.mxu0
          %v2469 = vunpack.c.l.b16 %v2407
          %v2470 = vunpack.c.l.b16 %v2408
          %v2471 = vpack.c.b16 %v2470, %v2469
          %v2474 = vunpack.c.l.b16 %v2399
          %v2475 = vunpack.c.l.b16 %v2400
          %v2476 = vpack.c.b16 %v2475, %v2474
          %v2479 = vsel %vm1394, %v2471, 0
          %2481 = vmatpush.bf16.msra.mxu0 0
          %2482 = vmatpush.bf16.msra.mxu0 0
          %2483 = vmatpush.bf16.msra.mxu0 0
          %2484 = vmatpush.bf16.msra.mxu0 0
          %2485 = vmatpush.bf16.msra.mxu0 0
          %2486 = vmatpush.bf16.msra.mxu0 0
          %2487 = vmatpush.bf16.msra.mxu0 0
          %2488 = vmatpush.bf16.msra.mxu0 %v2476
          %2489 = vmatmul.bf16.gmra.mxu0 %v2479
          %v2490 = vpop.f32.mrf.mxu0
          %v2491 = vadd.f32 0.0, %v2490
          %v2492 = vpop.f32.mrf.mxu0
          %v2493 = vadd.f32 0.0, %v2492
          %2494 = vdwg.mxu0
          %v2497 = vunpack.c.l.b16 %v2409
          %v2498 = vunpack.c.l.b16 %v2410
          %v2499 = vpack.c.b16 %v2498, %v2497
          %v2502 = vunpack.c.l.b16 %v2401
          %v2503 = vunpack.c.l.b16 %v2402
          %v2504 = vpack.c.b16 %v2503, %v2502
          %v2507 = vsel %vm1394, %v2499, 0
          %2509 = vmatpush.bf16.msra.mxu0 0
          %2510 = vmatpush.bf16.msra.mxu0 0
          %2511 = vmatpush.bf16.msra.mxu0 0
          %2512 = vmatpush.bf16.msra.mxu0 0
          %2513 = vmatpush.bf16.msra.mxu0 0
          %2514 = vmatpush.bf16.msra.mxu0 0
          %2515 = vmatpush.bf16.msra.mxu0 0
          %2516 = vmatpush.bf16.msra.mxu0 %v2504
          %2517 = vmatmul.bf16.gmra.mxu0 %v2507
          %v2518 = vpop.f32.mrf.mxu0
          %v2519 = vadd.f32 0.0, %v2518
          %v2520 = vpop.f32.mrf.mxu0
          %v2521 = vadd.f32 0.0, %v2520
          %2522 = vdwg.mxu0
          %v2523 = vsel %vm1202, %v2435, 0.0
          %v2524 = vsel %vm1202, %v2463, 0.0
          %v2525 = vadd.f32 %v2523, %v2524
          %v2526 = vsel %vm1202, %v2491, 0.0
          %v2527 = vadd.f32 %v2525, %v2526
          %v2528 = vsel %vm1202, %v2519, 0.0
          %v2529 = vadd.f32 %v2527, %v2528
          %v2530 = vsel %vm1202, %v2437, 0.0
          %v2531 = vsel %vm1202, %v2465, 0.0
          %v2532 = vadd.f32 %v2530, %v2531
          %v2533 = vsel %vm1202, %v2493, 0.0
          %v2534 = vadd.f32 %v2532, %v2533
          %v2535 = vsel %vm1202, %v2521, 0.0
          %v2536 = vadd.f32 %v2534, %v2535
          %v2537 = vperm.slane %v2104, 0
          %v2538 = vadd.f32 %v2529, %v2537
          %v2539 = vadd.f32 %v2536, %v2537
          %v2540 = vmax.f32 %v2538, 0.0
          %v2541 = vmax.f32 %v2539, 0.0
          %v2542 = vperm.slane %v2104, 1
          %v2543 = vmul.f32 %v2540, %v2542
          %v2544 = vmul.f32 %v2541, %v2542
          %v2545 = vperm.slane %v2104, 2
          %v2546 = vadd.f32 %v2543, %v2545
          %v2547 = vadd.f32 %v2544, %v2545
          %v2548 = vadd.f32 %v2546, %v2101
          %v2549 = vadd.f32 %v2547, %v2102
          %v2551 = vsel %vm1394, %v680, 0
          %2553 = vmatpush.msra.mxu0 0.0
          %2554 = vmatpush.msra.mxu0 0.0
          %2555 = vmatpush.msra.mxu0 0.0
          %2556 = vmatpush.msra.mxu0 0.0
          %2557 = vmatpush.msra.mxu0 0.0
          %2558 = vmatpush.msra.mxu0 0.0
          %2559 = vmatpush.msra.mxu0 0.0
          %2560 = vmatpush.msra.mxu0 0.0
          %2561 = vmatpush.msra.mxu0 0.0
          %2562 = vmatpush.msra.mxu0 0.0
          %2563 = vmatpush.msra.mxu0 0.0
          %2564 = vmatpush.msra.mxu0 0.0
          %2565 = vmatpush.msra.mxu0 0.0
          %2566 = vmatpush.msra.mxu0 0.0
          %2567 = vmatpush.msra.mxu0 %v2549
          %2568 = vmatpush.msra.mxu0 %v2548
          %2569 = vmatmul.f32.gmra.mxu0 %v2551
          %v2570 = vpop.f32.mrf.mxu0
          %v2571 = vadd.f32 0.0, %v2570
          %2572 = vdwg.mxu0
          %v2573 = vld [vmem:[%s20] sm:$0xff]
          %v2574 = vld [vmem:[%s20 + $0x8] sm:$0xff]
          %v2575 = vld [vmem:[%s20 + $0x10] sm:$0xff]
          %v2576 = vld [vmem:[%s20 + $0x18] sm:$0xff]
          %v2577 = vld [vmem:[%s21] sm:$0x1]
          %v2579 = vperm.slane %v2577, 0
          %v2582 = vsel %vm1202, %v2571, 0
          %2584 = vmatpush.msra.mxu0 0.0
          %2585 = vmatpush.msra.mxu0 0.0
          %2586 = vmatpush.msra.mxu0 0.0
          %2587 = vmatpush.msra.mxu0 0.0
          %2588 = vmatpush.msra.mxu0 0.0
          %2589 = vmatpush.msra.mxu0 0.0
          %2590 = vmatpush.msra.mxu0 0.0
          %2591 = vmatpush.msra.mxu0 0.0
          %2592 = vmatpush.msra.mxu0 0.0
          %2593 = vmatpush.msra.mxu0 0.0
          %2594 = vmatpush.msra.mxu0 0.0
          %2595 = vmatpush.msra.mxu0 0.0
          %2596 = vmatpush.msra.mxu0 %v2576
          %2597 = vmatpush.msra.mxu0 %v2575
          %2598 = vmatpush.msra.mxu0 %v2574
          %2599 = vmatpush.msra.mxu0 %v2573
          %2600 = vmatmul.f32.gmra.mxu0 %v2582
          %v2601 = vpop.f32.mrf.mxu0
          %v2602 = vadd.f32 %v2579, %v2601
          %2603 = vdwg.mxu0
          %vm2604 = vcmask 9216
          %2605 = vst.msk [vmem:[%s678] sm:$0x3] %vm2604, %v2602
        $region120: #{ensemble_forward.1} parent=107 // pred_fallthru
          _
        %p2606 = scmp.lt.s32.totalorder %s34, 1
        %s2607 = scalar_select %p2606, %s34, 1
        %s2608 = smul.addr %s2607, 2
        %s2609 = scalar_lea.vmem %s22, %s2608
        // Predicated region
        $region121: #{ensemble_forward.1} parent=107 // pred_check
          %p2610 = pneg %p514
        $region122: #{ensemble_forward.1} parent=107 // pred_check_branch
          %2612 = sbr.rel (%p2610) target = $region124
        $region123: #{ensemble_forward.1} parent=107 // pred_region
          _
        $region124: #{ensemble_forward.1} parent=107 // pred_fallthru
          _
      $region108: #{ensemble_forward.1} parent=5 // pred_fallthru
        _
      %p2613 = scmp.le.s32.totalorder 2, %s29
      // Predicated region
      $region125: #{ensemble_forward.1} parent=5 // pred_check
        %p2614 = pneg %p2613
      $region126: #{ensemble_forward.1} parent=5 // pred_check_branch
        %2616 = sbr.rel (%p2614) target = $region128
      $region127: #{ensemble_forward.1} parent=5 // pred_region
        %s2617 = ssub.s32 %s29, 2
        // Predicated region
        $region129: #{ensemble_forward.1} parent=127 // pred_check
          %p2618 = pneg %p520
        $region130: #{ensemble_forward.1} parent=127 // pred_check_branch
          %2620 = sbr.rel (%p2618) target = $region132
        $region131: #{ensemble_forward.1} parent=127 // pred_region
          %p2621 = scmp.lt.s32.totalorder %s35, 1
          %s2622 = scalar_select %p2621, %s35, 1
          %s2623 = smul.addr %s2622, 2
          %s2624 = scalar_lea.vmem %s22, %s2623
        $region132: #{ensemble_forward.1} parent=127 // pred_fallthru
          _
      $region128: #{ensemble_forward.1} parent=5 // pred_fallthru
        _
    $region6: #{ensemble_forward.1} parent=1 // loop_footer
      %s33 = sadd.s32 1, %s29
    $region7: #{ensemble_forward.1} parent=1 // loop_footer_branch
      %28 = sbr.rel target = $region3
    $region8: #{ensemble_forward.1} parent=1 // loop_exit
      _
    %2625 = vsyncpa [#allocation3], 1
    %s2626 = scalar_lea.sflag [#allocation3], 1
    %2627 = vsyncpa %s2626, 1

</llo_original>
